<compile_context>
chip_gen: v6e
topology: v6e:2x2x1
jax: 0.10.0
libtpu: 0.0.40
codegen_flags: <defaults>
</compile_context>

<pallas_src>
import functools

import jax
import jax.numpy as jnp
from jax import lax
from jax.experimental import pallas as pl
from jax.experimental.pallas import tpu as pltpu


# ----------------------------- kernel helpers --------------------------------

def _mmt(a, w):
    """a @ w.T with w kept in PyTorch (out, in) row layout (MXU transposed-RHS)."""
    return lax.dot_general(a, w, (((1,), (1,)), ((), ())),
                           preferred_element_type=jnp.float32)


def _select_batch(src, n, rows, n_batch):
    """Gather batch n's rows {l*n_batch + n} of a seq-major-flattened
    (rows*n_batch, E) slab as a contiguous (rows, E) tile via a 0/1 selection
    matmul (the MXU is idle at these sizes).  This folds the (L, N, E) ->
    batch-major relayout into the kernel with no strided/sub-lane memory ops
    and no standalone XLA transpose kernels."""
    if n_batch == 1:
        return src.astype(jnp.float32)
    total = rows * n_batch
    out_r = lax.broadcasted_iota(jnp.int32, (rows, total), 0)
    src_r = lax.broadcasted_iota(jnp.int32, (rows, total), 1)
    sel = jnp.where(src_r == out_r * n_batch + n, 1.0, 0.0).astype(src.dtype)
    return jnp.dot(sel, src, preferred_element_type=jnp.float32)


def _attention(wp_ref, qb_ref, xq, kv, *, wq0, wk0, wv0, wo0, ob_row, qb0,
               nhead, hd):
    """One multi-head attention block + out-projection + residual.

    xq : (Lq, E) queries (and residual source); kv : (Lkv, E) keys/values.
    Per head h, the q/k/v projections use 8-row-aligned ROW slices of the
    packed weight buffer and the out-projection uses row slices of
    out_proj_weight.T, so no activation or weight is sliced along lanes."""
    e = nhead * hd
    lq = xq.shape[0]

    def head(h, acc):
        hb = pl.multiple_of(h * hd, hd)
        wq = wp_ref[pl.ds(wq0 + hb, hd), :]      # (hd, E), pre-scaled by hd**-0.5
        wk = wp_ref[pl.ds(wk0 + hb, hd), :]      # (hd, E)
        wv = wp_ref[pl.ds(wv0 + hb, hd), :]      # (hd, E)
        wo = wp_ref[pl.ds(wo0 + hb, hd), :]      # (hd, E) rows of out_proj_w.T
        qb = qb_ref[pl.ds(qb0 + h, 1), :]        # (1, hd) pre-scaled q bias

        q = _mmt(xq, wq) + qb                    # (Lq, hd)
        k = _mmt(kv, wk)                         # (Lkv, hd)  k-bias: softmax no-op
        v = _mmt(kv, wv)                         # (Lkv, hd)  v-bias: folded in out bias

        s = _mmt(q, k)                           # (Lq, Lkv) logits
        s = s - jnp.max(s, axis=-1, keepdims=True)
        p = jnp.exp(s)
        p = p / jnp.sum(p, axis=-1, keepdims=True)          # exact divide
        oh = jnp.dot(p, v, preferred_element_type=jnp.float32)   # (Lq, hd)
        # Fold the out-projection per head (no lane-dim concat of head chunks).
        return acc + jnp.dot(oh, wo, preferred_element_type=jnp.float32)

    acc = lax.fori_loop(0, nhead, head, jnp.zeros((lq, e), jnp.float32),
                        unroll=True)
    return xq + acc + wp_ref[pl.ds(ob_row, 1), :]


# ----------------------------- fused kernel ----------------------------------

def _decoder_layer_kernel(x_ref, mem_ref, wp_ref, qb_ref, o_ref, *,
                          n_batch, l_tgt, l_mem, nhead, hd, d_model, off):
    n = pl.program_id(0)

    # Per-batch (rows, E) slabs gathered from the seq-major inputs.
    xq = _select_batch(x_ref[...], n, l_tgt, n_batch)     # (L, E)
    mem = _select_batch(mem_ref[...], n, l_mem, n_batch)  # (S, E)

    # tgt = tgt + self_attn(tgt, tgt, tgt)              (dropout1: p=0 -> id)
    t1 = _attention(wp_ref, qb_ref, xq, xq,
                    wq0=off["sa_wq"], wk0=off["sa_wk"], wv0=off["sa_wv"],
                    wo0=off["sa_wo"], ob_row=off["sa_ob"], qb0=0,
                    nhead=nhead, hd=hd)

    # tgt = tgt + multihead_attn(tgt, memory, memory)   (dropout2: p=0 -> id)
    t2 = _attention(wp_ref, qb_ref, t1, mem,
                    wq0=off["ca_wq"], wk0=off["ca_wk"], wv0=off["ca_wv"],
                    wo0=off["ca_wo"], ob_row=off["ca_ob"], qb0=nhead,
                    nhead=nhead, hd=hd)

    # tgt = tgt + linear2(activation(linear1(tgt)))     (dropout/dropout3: p=0)
    # activation = nn.LeakyReLU(True) -> negative_slope == 1.0 -> exact
    # identity, so no compare/select is emitted.
    w1 = wp_ref[pl.ds(off["w1"], d_model), :]     # (E, E), zero rows >= dim_ff
    b1 = wp_ref[pl.ds(off["b1"], 1), :]           # (1, E), zero lanes >= dim_ff
    h1 = _mmt(t2, w1) + b1                        # (L, E); lanes >= dim_ff stay 0
    w2t = wp_ref[pl.ds(off["w2t"], d_model), :]   # (E, E) = linear2_w.T zero-padded
    b2 = wp_ref[pl.ds(off["b2"], 1), :]
    y = jnp.dot(h1, w2t, preferred_element_type=jnp.float32) + b2
    o_ref[...] = (t2 + y).astype(o_ref.dtype)


# ------------------------------ wrappers --------------------------------------

def prepare_params(params, d_model, nhead, dim_feedforward):
    """One-time parameter prep (outside the hot path).

    Packs everything into:
      wpack : (10E + 8, E) f32   row layout, 8-row-aligned segments
      qbias : (2*nhead, hd) f32  per-head q biases (self then cross), pre-scaled
    plus a dict of static row offsets.  Also performs the exact bias folds
    (drop k-bias, fold v-bias through out_proj) and the hd**-0.5 pre-scale."""
    E, F = d_model, dim_feedforward
    hd = E // nhead
    scale = hd ** -0.5
    if F > E:
        # TODO(synk): widen the packed buffer / drop the lane-padding trick
        # when dim_feedforward > d_model.
        raise NotImplementedError("packing assumes dim_feedforward <= d_model")
    f32 = jnp.float32

    def attn_pack(p):
        w_in = jnp.asarray(p["in_proj_weight"], f32)   # (3E, E) = [Wq; Wk; Wv]
        b_in = jnp.asarray(p["in_proj_bias"], f32)     # (3E,)
        w_out = jnp.asarray(p["out_proj_weight"], f32)  # (E, E)
        b_out = jnp.asarray(p["out_proj_bias"], f32)    # (E,)
        wq = w_in[:E] * scale
        wk = w_in[E:2 * E]
        wv = w_in[2 * E:]
        bq = b_in[:E] * scale
        bv = b_in[2 * E:]
        # k-bias adds a per-row constant to the logits -> exact no-op under
        # softmax -> dropped.  v-bias: softmax rows sum to 1, so it adds bv to
        # every attention row -> fold through out_proj into its bias.
        b_out_eff = b_out + w_out @ bv
        rows = jnp.concatenate([wq, wk, wv, w_out.T], axis=0)   # (4E, E)
        return rows, b_out_eff, bq.reshape(nhead, hd)

    sa_rows, sa_ob, sa_bq = attn_pack(params["self_attn"])
    ca_rows, ca_ob, ca_bq = attn_pack(params["multihead_attn"])

    w1 = jnp.asarray(params["linear1_w"], f32)           # (F, E)
    b1 = jnp.asarray(params["linear1_b"], f32)           # (F,)
    w2 = jnp.asarray(params["linear2_w"], f32)           # (E, F)
    b2 = jnp.asarray(params["linear2_b"], f32)           # (E,)
    pad = E - F
    w1_pad = jnp.pad(w1, ((0, pad), (0, 0)))              # (E, E)
    w2t_pad = jnp.pad(w2.T, ((0, pad), (0, 0)))           # (E, E)
    b1_pad = jnp.pad(b1, (0, pad))                        # (E,)

    bias_block = jnp.zeros((8, E), f32)
    bias_block = bias_block.at[0].set(sa_ob)
    bias_block = bias_block.at[1].set(ca_ob)
    bias_block = bias_block.at[2].set(b1_pad)
    bias_block = bias_block.at[3].set(b2)

    wpack = jnp.concatenate([sa_rows, ca_rows, w1_pad, w2t_pad, bias_block],
                            axis=0)                       # (10E + 8, E)
    qbias = jnp.concatenate([sa_bq, ca_bq], axis=0)       # (2*nhead, hd)

    off = dict(
        sa_wq=0, sa_wk=E, sa_wv=2 * E, sa_wo=3 * E,
        ca_wq=4 * E, ca_wk=5 * E, ca_wv=6 * E, ca_wo=7 * E,
        w1=8 * E, w2t=9 * E,
        sa_ob=10 * E + 0, ca_ob=10 * E + 1, b1=10 * E + 2, b2=10 * E + 3,
    )
    return wpack, qbias, off


def transformer_decoder_layer(tgt, memory, wpack, qbias, *, nhead, off):
    """tgt, memory: (seq, batch, d_model) -- PyTorch MultiheadAttention layout."""
    L, N, E = tgt.shape
    S = memory.shape[0]
    hd = E // nhead

    # Free reshapes (no transpose): row (l, n) -> l*N + n, seq-major.
    x2d = tgt.reshape(L * N, E)
    mem2d = memory.reshape(S * N, E)

    kernel = functools.partial(
        _decoder_layer_kernel,
        n_batch=N, l_tgt=L, l_mem=S, nhead=nhead, hd=hd, d_model=E, off=off)

    # TODO(synk): at realistic sizes (E/dim_ff >= 128, long sequences) add
    # row-tiling grid axes + pltpu.CompilerParams(vmem_limit_bytes=...) sized
    # against v7x's 64 MiB VMEM and feed the MXU in bf16; at these tiny shapes
    # whole-array residency is the right call on all generations.
    out_nle = pl.pallas_call(
        kernel,
        out_shape=jax.ShapeDtypeStruct((N, L, E), tgt.dtype),
        grid=(N,),
        in_specs=[
            pl.BlockSpec((L * N, E), lambda n: (0, 0)),   # resident across steps
            pl.BlockSpec((S * N, E), lambda n: (0, 0)),
            pl.BlockSpec(wpack.shape, lambda n: (0, 0)),
            pl.BlockSpec(qbias.shape, lambda n: (0, 0)),
        ],
        out_specs=pl.BlockSpec((None, L, E), lambda n: (n, 0, 0)),
        compiler_params=pltpu.CompilerParams(
            dimension_semantics=("parallel",)),
    )(x2d, mem2d, wpack, qbias)

    # Only remaining relayout: 2 KB batch-major -> seq-major output transpose.
    return out_nle.transpose(1, 0, 2)


# ------------------------------ reference -------------------------------------

def _ref_mha(query, key, value, p, nhead):
    L, N, E = query.shape
    S = key.shape[0]
    hd = E // nhead
    wq, wk, wv = jnp.split(p["in_proj_weight"], 3, axis=0)
    bq, bk, bv = jnp.split(p["in_proj_bias"], 3, axis=0)
    q = (query @ wq.T + bq) * (hd ** -0.5)
    k = key @ wk.T + bk
    v = value @ wv.T + bv
    q = q.reshape(L, N * nhead, hd).transpose(1, 0, 2)
    k = k.reshape(S, N * nhead, hd).transpose(1, 0, 2)
    v = v.reshape(S, N * nhead, hd).transpose(1, 0, 2)
    w = jax.nn.softmax(jnp.einsum("bld,bsd->bls", q, k), axis=-1)
    o = jnp.einsum("bls,bsd->bld", w, v).transpose(1, 0, 2).reshape(L, N, E)
    return o @ p["out_proj_weight"].T + p["out_proj_bias"]


def _ref_layer(tgt, memory, params, nhead):
    t = tgt + _ref_mha(tgt, tgt, tgt, params["self_attn"], nhead)
    t = t + _ref_mha(t, memory, memory, params["multihead_attn"], nhead)
    h = t @ params["linear1_w"].T + params["linear1_b"]
    h = jnp.where(h >= 0, h, 1.0 * h)     # LeakyReLU(negative_slope=True -> 1.0)
    return t + (h @ params["linear2_w"].T + params["linear2_b"])


# --------------------------------- main ----------------------------------------

def _init_params(key, d_model, nhead, dim_ff):
    ks = jax.random.split(key, 12)
    s = 0.1

    def mha_params(k0, k1, k2, k3):
        return {
            "in_proj_weight": jax.random.normal(k0, (3 * d_model, d_model), jnp.float32) * s,
            "in_proj_bias": jax.random.normal(k1, (3 * d_model,), jnp.float32) * s,
            "out_proj_weight": jax.random.normal(k2, (d_model, d_model), jnp.float32) * s,
            "out_proj_bias": jax.random.normal(k3, (d_model,), jnp.float32) * s,
        }

    return {
        "self_attn": mha_params(ks[0], ks[1], ks[2], ks[3]),
        "multihead_attn": mha_params(ks[4], ks[5], ks[6], ks[7]),
        "linear1_w": jax.random.normal(ks[8], (dim_ff, d_model), jnp.float32) * s,
        "linear1_b": jax.random.normal(ks[9], (dim_ff,), jnp.float32) * s,
        "linear2_w": jax.random.normal(ks[10], (d_model, dim_ff), jnp.float32) * s,
        "linear2_b": jax.random.normal(ks[11], (d_model,), jnp.float32) * s,
    }


if __name__ == "__main__":
    d_model, nhead, dim_ff = 32, 4, 16
    L, S, N = 8, 8, 2

    key = jax.random.PRNGKey(0)
    kp, kt, km = jax.random.split(key, 3)
    params = _init_params(kp, d_model, nhead, dim_ff)
    tgt = jax.random.normal(kt, (L, N, d_model), jnp.float32)
    memory = jax.random.normal(km, (S, N, d_model), jnp.float32)

    # One-time parameter packing / bias folding (outside the hot path).
    wpack, qbias, off = prepare_params(params, d_model, nhead, dim_ff)

    # Whole wrapper (free reshapes + pallas_call + output transpose) in one jit.
    layer = jax.jit(functools.partial(transformer_decoder_layer,
                                      nhead=nhead, off=off))
    out = jax.block_until_ready(layer(tgt, memory, wpack, qbias))

    ref = _ref_layer(tgt, memory, params, nhead)
    assert out.shape == (L, N, d_model)
    # Differences vs. the reference come only from exact-in-real-arithmetic
    # refactorings (pre-scaled Wq/bq, dropped k-bias, v-bias folded through
    # out_proj) -> ~1e-6-level float reassociation, well inside 1e-3.
    assert jnp.allclose(out, ref, atol=1e-3, rtol=1e-3), "mismatch vs JAX reference"

    print("KERNEL_OK")
</pallas_src>

<mosaic_0001>
module attributes {stable_mosaic.version = 11 : i64} {
  func.func @_decoder_layer_kernel(%arg0: i32, %arg1: memref<16x32xf32, #tpu.memory_space<vmem>>, %arg2: memref<16x32xf32, #tpu.memory_space<vmem>>, %arg3: memref<328x32xf32, #tpu.memory_space<vmem>>, %arg4: memref<8x8xf32, #tpu.memory_space<vmem>>, %arg5: memref<1x8x32xf32, #tpu.memory_space<vmem>>) attributes {dimension_semantics = [#tpu.dimension_semantics<parallel>], iteration_bounds = array<i64: 2>, scalar_prefetch = 0 : i64, scratch_operands = 0 : i64, tpu.core_type = #tpu.core_type<tc>, window_params = [{pipeline_mode = #tpu.pipeline_mode<synchronous>, transform_indices = @transform_0, window_bounds = array<i64: 16, 32>}, {pipeline_mode = #tpu.pipeline_mode<synchronous>, transform_indices = @transform_1, window_bounds = array<i64: 16, 32>}, {pipeline_mode = #tpu.pipeline_mode<synchronous>, transform_indices = @transform_2, window_bounds = array<i64: 328, 32>}, {pipeline_mode = #tpu.pipeline_mode<synchronous>, transform_indices = @transform_3, window_bounds = array<i64: 8, 8>}, {transform_indices = @transform_4, window_bounds = array<i64: 1, 8, 32>}]} {
    %c0 = arith.constant 0 : index
    %c0_0 = arith.constant 0 : index
    %0 = vector.load %arg1[%c0, %c0_0] : memref<16x32xf32, #tpu.memory_space<vmem>>, vector<16x32xf32>
    %1 = tpu.iota {dimensions = array<i32: 0>} : vector<8x16xi32>
    %2 = tpu.iota {dimensions = array<i32: 1>} : vector<8x16xi32>
    %c2_i32 = arith.constant 2 : i32
    %3 = vector.broadcast %c2_i32 : i32 to vector<8x16xi32>
    %4 = arith.muli %1, %3 : vector<8x16xi32>
    %5 = vector.broadcast %arg0 : i32 to vector<8x16xi32>
    %6 = arith.addi %4, %5 : vector<8x16xi32>
    %7 = arith.cmpi eq, %2, %6 : vector<8x16xi32>
    %cst = arith.constant 1.000000e+00 : f32
    %cst_1 = arith.constant 0.000000e+00 : f32
    %8 = vector.broadcast %cst : f32 to vector<8x16xf32>
    %9 = vector.broadcast %cst_1 : f32 to vector<8x16xf32>
    %10 = arith.select %7, %8, %9 : vector<8x16xi1>, vector<8x16xf32>
    %cst_2 = arith.constant dense<0.000000e+00> : vector<8x32xf32>
    %11 = tpu.matmul %10, %0, %cst_2 {dimension_numbers = #tpu.dot_dimension_numbers<[1], [0], [0], [1], [0, 0, 1, 1], [], []>} : vector<8x16xf32>, vector<16x32xf32>, vector<8x32xf32> -> vector<8x32xf32>
    %c0_3 = arith.constant 0 : index
    %c0_4 = arith.constant 0 : index
    %12 = vector.load %arg2[%c0_3, %c0_4] : memref<16x32xf32, #tpu.memory_space<vmem>>, vector<16x32xf32>
    %13 = tpu.iota {dimensions = array<i32: 0>} : vector<8x16xi32>
    %14 = tpu.iota {dimensions = array<i32: 1>} : vector<8x16xi32>
    %c2_i32_5 = arith.constant 2 : i32
    %15 = vector.broadcast %c2_i32_5 : i32 to vector<8x16xi32>
    %16 = arith.muli %13, %15 : vector<8x16xi32>
    %17 = vector.broadcast %arg0 : i32 to vector<8x16xi32>
    %18 = arith.addi %16, %17 : vector<8x16xi32>
    %19 = arith.cmpi eq, %14, %18 : vector<8x16xi32>
    %cst_6 = arith.constant 1.000000e+00 : f32
    %cst_7 = arith.constant 0.000000e+00 : f32
    %20 = vector.broadcast %cst_6 : f32 to vector<8x16xf32>
    %21 = vector.broadcast %cst_7 : f32 to vector<8x16xf32>
    %22 = arith.select %19, %20, %21 : vector<8x16xi1>, vector<8x16xf32>
    %cst_8 = arith.constant dense<0.000000e+00> : vector<8x32xf32>
    %23 = tpu.matmul %22, %12, %cst_8 {dimension_numbers = #tpu.dot_dimension_numbers<[1], [0], [0], [1], [0, 0, 1, 1], [], []>} : vector<8x16xf32>, vector<16x32xf32>, vector<8x32xf32> -> vector<8x32xf32>
    %cst_9 = arith.constant 0.000000e+00 : f32
    %24 = vector.broadcast %cst_9 : f32 to vector<8x32xf32>
    %c0_i32 = arith.constant 0 : i32
    %c8_i32 = arith.constant 8 : i32
    %25 = arith.muli %c0_i32, %c8_i32 : i32
    %26 = tpu.assume_multiple %25, 8 : i32
    %c0_i32_10 = arith.constant 0 : i32
    %27 = arith.addi %c0_i32_10, %26 : i32
    %28 = arith.index_cast %27 : i32 to index
    %c0_11 = arith.constant 0 : index
    %29 = vector.load %arg3[%28, %c0_11] : memref<328x32xf32, #tpu.memory_space<vmem>>, vector<8x32xf32>
    %c32_i32 = arith.constant 32 : i32
    %30 = arith.addi %c32_i32, %26 : i32
    %31 = arith.index_cast %30 : i32 to index
    %c0_12 = arith.constant 0 : index
    %32 = vector.load %arg3[%31, %c0_12] : memref<328x32xf32, #tpu.memory_space<vmem>>, vector<8x32xf32>
    %c64_i32 = arith.constant 64 : i32
    %33 = arith.addi %c64_i32, %26 : i32
    %34 = arith.index_cast %33 : i32 to index
    %c0_13 = arith.constant 0 : index
    %35 = vector.load %arg3[%34, %c0_13] : memref<328x32xf32, #tpu.memory_space<vmem>>, vector<8x32xf32>
    %c96_i32 = arith.constant 96 : i32
    %36 = arith.addi %c96_i32, %26 : i32
    %37 = arith.index_cast %36 : i32 to index
    %c0_14 = arith.constant 0 : index
    %38 = vector.load %arg3[%37, %c0_14] : memref<328x32xf32, #tpu.memory_space<vmem>>, vector<8x32xf32>
    %c0_i32_15 = arith.constant 0 : i32
    %39 = arith.addi %c0_i32_15, %c0_i32 : i32
    %40 = arith.index_cast %39 : i32 to index
    %c0_16 = arith.constant 0 : index
    %41 = vector.load %arg4[%40, %c0_16] : memref<8x8xf32, #tpu.memory_space<vmem>>, vector<1x8xf32>
    %cst_17 = arith.constant dense<0.000000e+00> : vector<8x8xf32>
    %42 = tpu.matmul %11, %29, %cst_17 {dimension_numbers = #tpu.dot_dimension_numbers<[1], [1], [0], [0], [0, 0, 1, 0], [], []>} : vector<8x32xf32>, vector<8x32xf32>, vector<8x8xf32> -> vector<8x8xf32>
    %43 = vector.broadcast %41 : vector<1x8xf32> to vector<8x8xf32>
    %44 = arith.addf %42, %43 : vector<8x8xf32>
    %cst_18 = arith.constant dense<0.000000e+00> : vector<8x8xf32>
    %45 = tpu.matmul %11, %32, %cst_18 {dimension_numbers = #tpu.dot_dimension_numbers<[1], [1], [0], [0], [0, 0, 1, 0], [], []>} : vector<8x32xf32>, vector<8x32xf32>, vector<8x8xf32> -> vector<8x8xf32>
    %cst_19 = arith.constant dense<0.000000e+00> : vector<8x8xf32>
    %46 = tpu.matmul %11, %35, %cst_19 {dimension_numbers = #tpu.dot_dimension_numbers<[1], [1], [0], [0], [0, 0, 1, 0], [], []>} : vector<8x32xf32>, vector<8x32xf32>, vector<8x8xf32> -> vector<8x8xf32>
    %cst_20 = arith.constant dense<0.000000e+00> : vector<8x8xf32>
    %47 = tpu.matmul %44, %45, %cst_20 {dimension_numbers = #tpu.dot_dimension_numbers<[1], [1], [0], [0], [0, 0, 1, 0], [], []>} : vector<8x8xf32>, vector<8x8xf32>, vector<8x8xf32> -> vector<8x8xf32>
    %cst_21 = arith.constant dense<0xFF800000> : vector<8xf32>
    %48 = vector.multi_reduction <maximumf>, %47, %cst_21 [1] : vector<8x8xf32> to vector<8xf32>
    %49 = vector.shape_cast %48 : vector<8xf32> to vector<8x1xf32>
    %50 = vector.broadcast %49 : vector<8x1xf32> to vector<8x8xf32>
    %51 = arith.subf %47, %50 : vector<8x8xf32>
    %52 = math.exp %51 : vector<8x8xf32>
    %cst_22 = arith.constant dense<0.000000e+00> : vector<8xf32>
    %53 = vector.multi_reduction <add>, %52, %cst_22 [1] : vector<8x8xf32> to vector<8xf32>
    %54 = vector.shape_cast %53 : vector<8xf32> to vector<8x1xf32>
    %55 = vector.broadcast %54 : vector<8x1xf32> to vector<8x8xf32>
    %56 = arith.divf %52, %55 : vector<8x8xf32>
    %cst_23 = arith.constant dense<0.000000e+00> : vector<8x8xf32>
    %57 = tpu.matmul %56, %46, %cst_23 {dimension_numbers = #tpu.dot_dimension_numbers<[1], [0], [0], [1], [0, 0, 1, 1], [], []>} : vector<8x8xf32>, vector<8x8xf32>, vector<8x8xf32> -> vector<8x8xf32>
    %cst_24 = arith.constant dense<0.000000e+00> : vector<8x32xf32>
    %58 = tpu.matmul %57, %38, %cst_24 {dimension_numbers = #tpu.dot_dimension_numbers<[1], [0], [0], [1], [0, 0, 1, 1], [], []>} : vector<8x8xf32>, vector<8x32xf32>, vector<8x32xf32> -> vector<8x32xf32>
    %59 = arith.addf %24, %58 : vector<8x32xf32>
    %c1_i32 = arith.constant 1 : i32
    %c8_i32_25 = arith.constant 8 : i32
    %60 = arith.muli %c1_i32, %c8_i32_25 : i32
    %61 = tpu.assume_multiple %60, 8 : i32
    %c0_i32_26 = arith.constant 0 : i32
    %62 = arith.addi %c0_i32_26, %61 : i32
    %63 = arith.index_cast %62 : i32 to index
    %c0_27 = arith.constant 0 : index
    %64 = vector.load %arg3[%63, %c0_27] : memref<328x32xf32, #tpu.memory_space<vmem>>, vector<8x32xf32>
    %c32_i32_28 = arith.constant 32 : i32
    %65 = arith.addi %c32_i32_28, %61 : i32
    %66 = arith.index_cast %65 : i32 to index
    %c0_29 = arith.constant 0 : index
    %67 = vector.load %arg3[%66, %c0_29] : memref<328x32xf32, #tpu.memory_space<vmem>>, vector<8x32xf32>
    %c64_i32_30 = arith.constant 64 : i32
    %68 = arith.addi %c64_i32_30, %61 : i32
    %69 = arith.index_cast %68 : i32 to index
    %c0_31 = arith.constant 0 : index
    %70 = vector.load %arg3[%69, %c0_31] : memref<328x32xf32, #tpu.memory_space<vmem>>, vector<8x32xf32>
    %c96_i32_32 = arith.constant 96 : i32
    %71 = arith.addi %c96_i32_32, %61 : i32
    %72 = arith.index_cast %71 : i32 to index
    %c0_33 = arith.constant 0 : index
    %73 = vector.load %arg3[%72, %c0_33] : memref<328x32xf32, #tpu.memory_space<vmem>>, vector<8x32xf32>
    %c0_i32_34 = arith.constant 0 : i32
    %74 = arith.addi %c0_i32_34, %c1_i32 : i32
    %75 = arith.index_cast %74 : i32 to index
    %c0_35 = arith.constant 0 : index
    %76 = vector.load %arg4[%75, %c0_35] : memref<8x8xf32, #tpu.memory_space<vmem>>, vector<1x8xf32>
    %cst_36 = arith.constant dense<0.000000e+00> : vector<8x8xf32>
    %77 = tpu.matmul %11, %64, %cst_36 {dimension_numbers = #tpu.dot_dimension_numbers<[1], [1], [0], [0], [0, 0, 1, 0], [], []>} : vector<8x32xf32>, vector<8x32xf32>, vector<8x8xf32> -> vector<8x8xf32>
    %78 = vector.broadcast %76 : vector<1x8xf32> to vector<8x8xf32>
    %79 = arith.addf %77, %78 : vector<8x8xf32>
    %cst_37 = arith.constant dense<0.000000e+00> : vector<8x8xf32>
    %80 = tpu.matmul %11, %67, %cst_37 {dimension_numbers = #tpu.dot_dimension_numbers<[1], [1], [0], [0], [0, 0, 1, 0], [], []>} : vector<8x32xf32>, vector<8x32xf32>, vector<8x8xf32> -> vector<8x8xf32>
    %cst_38 = arith.constant dense<0.000000e+00> : vector<8x8xf32>
    %81 = tpu.matmul %11, %70, %cst_38 {dimension_numbers = #tpu.dot_dimension_numbers<[1], [1], [0], [0], [0, 0, 1, 0], [], []>} : vector<8x32xf32>, vector<8x32xf32>, vector<8x8xf32> -> vector<8x8xf32>
    %cst_39 = arith.constant dense<0.000000e+00> : vector<8x8xf32>
    %82 = tpu.matmul %79, %80, %cst_39 {dimension_numbers = #tpu.dot_dimension_numbers<[1], [1], [0], [0], [0, 0, 1, 0], [], []>} : vector<8x8xf32>, vector<8x8xf32>, vector<8x8xf32> -> vector<8x8xf32>
    %cst_40 = arith.constant dense<0xFF800000> : vector<8xf32>
    %83 = vector.multi_reduction <maximumf>, %82, %cst_40 [1] : vector<8x8xf32> to vector<8xf32>
    %84 = vector.shape_cast %83 : vector<8xf32> to vector<8x1xf32>
    %85 = vector.broadcast %84 : vector<8x1xf32> to vector<8x8xf32>
    %86 = arith.subf %82, %85 : vector<8x8xf32>
    %87 = math.exp %86 : vector<8x8xf32>
    %cst_41 = arith.constant dense<0.000000e+00> : vector<8xf32>
    %88 = vector.multi_reduction <add>, %87, %cst_41 [1] : vector<8x8xf32> to vector<8xf32>
    %89 = vector.shape_cast %88 : vector<8xf32> to vector<8x1xf32>
    %90 = vector.broadcast %89 : vector<8x1xf32> to vector<8x8xf32>
    %91 = arith.divf %87, %90 : vector<8x8xf32>
    %cst_42 = arith.constant dense<0.000000e+00> : vector<8x8xf32>
    %92 = tpu.matmul %91, %81, %cst_42 {dimension_numbers = #tpu.dot_dimension_numbers<[1], [0], [0], [1], [0, 0, 1, 1], [], []>} : vector<8x8xf32>, vector<8x8xf32>, vector<8x8xf32> -> vector<8x8xf32>
    %cst_43 = arith.constant dense<0.000000e+00> : vector<8x32xf32>
    %93 = tpu.matmul %92, %73, %cst_43 {dimension_numbers = #tpu.dot_dimension_numbers<[1], [0], [0], [1], [0, 0, 1, 1], [], []>} : vector<8x8xf32>, vector<8x32xf32>, vector<8x32xf32> -> vector<8x32xf32>
    %94 = arith.addf %59, %93 : vector<8x32xf32>
    %c2_i32_44 = arith.constant 2 : i32
    %c8_i32_45 = arith.constant 8 : i32
    %95 = arith.muli %c2_i32_44, %c8_i32_45 : i32
    %96 = tpu.assume_multiple %95, 8 : i32
    %c0_i32_46 = arith.constant 0 : i32
    %97 = arith.addi %c0_i32_46, %96 : i32
    %98 = arith.index_cast %97 : i32 to index
    %c0_47 = arith.constant 0 : index
    %99 = vector.load %arg3[%98, %c0_47] : memref<328x32xf32, #tpu.memory_space<vmem>>, vector<8x32xf32>
    %c32_i32_48 = arith.constant 32 : i32
    %100 = arith.addi %c32_i32_48, %96 : i32
    %101 = arith.index_cast %100 : i32 to index
    %c0_49 = arith.constant 0 : index
    %102 = vector.load %arg3[%101, %c0_49] : memref<328x32xf32, #tpu.memory_space<vmem>>, vector<8x32xf32>
    %c64_i32_50 = arith.constant 64 : i32
    %103 = arith.addi %c64_i32_50, %96 : i32
    %104 = arith.index_cast %103 : i32 to index
    %c0_51 = arith.constant 0 : index
    %105 = vector.load %arg3[%104, %c0_51] : memref<328x32xf32, #tpu.memory_space<vmem>>, vector<8x32xf32>
    %c96_i32_52 = arith.constant 96 : i32
    %106 = arith.addi %c96_i32_52, %96 : i32
    %107 = arith.index_cast %106 : i32 to index
    %c0_53 = arith.constant 0 : index
    %108 = vector.load %arg3[%107, %c0_53] : memref<328x32xf32, #tpu.memory_space<vmem>>, vector<8x32xf32>
    %c0_i32_54 = arith.constant 0 : i32
    %109 = arith.addi %c0_i32_54, %c2_i32_44 : i32
    %110 = arith.index_cast %109 : i32 to index
    %c0_55 = arith.constant 0 : index
    %111 = vector.load %arg4[%110, %c0_55] : memref<8x8xf32, #tpu.memory_space<vmem>>, vector<1x8xf32>
    %cst_56 = arith.constant dense<0.000000e+00> : vector<8x8xf32>
    %112 = tpu.matmul %11, %99, %cst_56 {dimension_numbers = #tpu.dot_dimension_numbers<[1], [1], [0], [0], [0, 0, 1, 0], [], []>} : vector<8x32xf32>, vector<8x32xf32>, vector<8x8xf32> -> vector<8x8xf32>
    %113 = vector.broadcast %111 : vector<1x8xf32> to vector<8x8xf32>
    %114 = arith.addf %112, %113 : vector<8x8xf32>
    %cst_57 = arith.constant dense<0.000000e+00> : vector<8x8xf32>
    %115 = tpu.matmul %11, %102, %cst_57 {dimension_numbers = #tpu.dot_dimension_numbers<[1], [1], [0], [0], [0, 0, 1, 0], [], []>} : vector<8x32xf32>, vector<8x32xf32>, vector<8x8xf32> -> vector<8x8xf32>
    %cst_58 = arith.constant dense<0.000000e+00> : vector<8x8xf32>
    %116 = tpu.matmul %11, %105, %cst_58 {dimension_numbers = #tpu.dot_dimension_numbers<[1], [1], [0], [0], [0, 0, 1, 0], [], []>} : vector<8x32xf32>, vector<8x32xf32>, vector<8x8xf32> -> vector<8x8xf32>
    %cst_59 = arith.constant dense<0.000000e+00> : vector<8x8xf32>
    %117 = tpu.matmul %114, %115, %cst_59 {dimension_numbers = #tpu.dot_dimension_numbers<[1], [1], [0], [0], [0, 0, 1, 0], [], []>} : vector<8x8xf32>, vector<8x8xf32>, vector<8x8xf32> -> vector<8x8xf32>
    %cst_60 = arith.constant dense<0xFF800000> : vector<8xf32>
    %118 = vector.multi_reduction <maximumf>, %117, %cst_60 [1] : vector<8x8xf32> to vector<8xf32>
    %119 = vector.shape_cast %118 : vector<8xf32> to vector<8x1xf32>
    %120 = vector.broadcast %119 : vector<8x1xf32> to vector<8x8xf32>
    %121 = arith.subf %117, %120 : vector<8x8xf32>
    %122 = math.exp %121 : vector<8x8xf32>
    %cst_61 = arith.constant dense<0.000000e+00> : vector<8xf32>
    %123 = vector.multi_reduction <add>, %122, %cst_61 [1] : vector<8x8xf32> to vector<8xf32>
    %124 = vector.shape_cast %123 : vector<8xf32> to vector<8x1xf32>
    %125 = vector.broadcast %124 : vector<8x1xf32> to vector<8x8xf32>
    %126 = arith.divf %122, %125 : vector<8x8xf32>
    %cst_62 = arith.constant dense<0.000000e+00> : vector<8x8xf32>
    %127 = tpu.matmul %126, %116, %cst_62 {dimension_numbers = #tpu.dot_dimension_numbers<[1], [0], [0], [1], [0, 0, 1, 1], [], []>} : vector<8x8xf32>, vector<8x8xf32>, vector<8x8xf32> -> vector<8x8xf32>
    %cst_63 = arith.constant dense<0.000000e+00> : vector<8x32xf32>
    %128 = tpu.matmul %127, %108, %cst_63 {dimension_numbers = #tpu.dot_dimension_numbers<[1], [0], [0], [1], [0, 0, 1, 1], [], []>} : vector<8x8xf32>, vector<8x32xf32>, vector<8x32xf32> -> vector<8x32xf32>
    %129 = arith.addf %94, %128 : vector<8x32xf32>
    %c3_i32 = arith.constant 3 : i32
    %c8_i32_64 = arith.constant 8 : i32
    %130 = arith.muli %c3_i32, %c8_i32_64 : i32
    %131 = tpu.assume_multiple %130, 8 : i32
    %c0_i32_65 = arith.constant 0 : i32
    %132 = arith.addi %c0_i32_65, %131 : i32
    %133 = arith.index_cast %132 : i32 to index
    %c0_66 = arith.constant 0 : index
    %134 = vector.load %arg3[%133, %c0_66] : memref<328x32xf32, #tpu.memory_space<vmem>>, vector<8x32xf32>
    %c32_i32_67 = arith.constant 32 : i32
    %135 = arith.addi %c32_i32_67, %131 : i32
    %136 = arith.index_cast %135 : i32 to index
    %c0_68 = arith.constant 0 : index
    %137 = vector.load %arg3[%136, %c0_68] : memref<328x32xf32, #tpu.memory_space<vmem>>, vector<8x32xf32>
    %c64_i32_69 = arith.constant 64 : i32
    %138 = arith.addi %c64_i32_69, %131 : i32
    %139 = arith.index_cast %138 : i32 to index
    %c0_70 = arith.constant 0 : index
    %140 = vector.load %arg3[%139, %c0_70] : memref<328x32xf32, #tpu.memory_space<vmem>>, vector<8x32xf32>
    %c96_i32_71 = arith.constant 96 : i32
    %141 = arith.addi %c96_i32_71, %131 : i32
    %142 = arith.index_cast %141 : i32 to index
    %c0_72 = arith.constant 0 : index
    %143 = vector.load %arg3[%142, %c0_72] : memref<328x32xf32, #tpu.memory_space<vmem>>, vector<8x32xf32>
    %c0_i32_73 = arith.constant 0 : i32
    %144 = arith.addi %c0_i32_73, %c3_i32 : i32
    %145 = arith.index_cast %144 : i32 to index
    %c0_74 = arith.constant 0 : index
    %146 = vector.load %arg4[%145, %c0_74] : memref<8x8xf32, #tpu.memory_space<vmem>>, vector<1x8xf32>
    %cst_75 = arith.constant dense<0.000000e+00> : vector<8x8xf32>
    %147 = tpu.matmul %11, %134, %cst_75 {dimension_numbers = #tpu.dot_dimension_numbers<[1], [1], [0], [0], [0, 0, 1, 0], [], []>} : vector<8x32xf32>, vector<8x32xf32>, vector<8x8xf32> -> vector<8x8xf32>
    %148 = vector.broadcast %146 : vector<1x8xf32> to vector<8x8xf32>
    %149 = arith.addf %147, %148 : vector<8x8xf32>
    %cst_76 = arith.constant dense<0.000000e+00> : vector<8x8xf32>
    %150 = tpu.matmul %11, %137, %cst_76 {dimension_numbers = #tpu.dot_dimension_numbers<[1], [1], [0], [0], [0, 0, 1, 0], [], []>} : vector<8x32xf32>, vector<8x32xf32>, vector<8x8xf32> -> vector<8x8xf32>
    %cst_77 = arith.constant dense<0.000000e+00> : vector<8x8xf32>
    %151 = tpu.matmul %11, %140, %cst_77 {dimension_numbers = #tpu.dot_dimension_numbers<[1], [1], [0], [0], [0, 0, 1, 0], [], []>} : vector<8x32xf32>, vector<8x32xf32>, vector<8x8xf32> -> vector<8x8xf32>
    %cst_78 = arith.constant dense<0.000000e+00> : vector<8x8xf32>
    %152 = tpu.matmul %149, %150, %cst_78 {dimension_numbers = #tpu.dot_dimension_numbers<[1], [1], [0], [0], [0, 0, 1, 0], [], []>} : vector<8x8xf32>, vector<8x8xf32>, vector<8x8xf32> -> vector<8x8xf32>
    %cst_79 = arith.constant dense<0xFF800000> : vector<8xf32>
    %153 = vector.multi_reduction <maximumf>, %152, %cst_79 [1] : vector<8x8xf32> to vector<8xf32>
    %154 = vector.shape_cast %153 : vector<8xf32> to vector<8x1xf32>
    %155 = vector.broadcast %154 : vector<8x1xf32> to vector<8x8xf32>
    %156 = arith.subf %152, %155 : vector<8x8xf32>
    %157 = math.exp %156 : vector<8x8xf32>
    %cst_80 = arith.constant dense<0.000000e+00> : vector<8xf32>
    %158 = vector.multi_reduction <add>, %157, %cst_80 [1] : vector<8x8xf32> to vector<8xf32>
    %159 = vector.shape_cast %158 : vector<8xf32> to vector<8x1xf32>
    %160 = vector.broadcast %159 : vector<8x1xf32> to vector<8x8xf32>
    %161 = arith.divf %157, %160 : vector<8x8xf32>
    %cst_81 = arith.constant dense<0.000000e+00> : vector<8x8xf32>
    %162 = tpu.matmul %161, %151, %cst_81 {dimension_numbers = #tpu.dot_dimension_numbers<[1], [0], [0], [1], [0, 0, 1, 1], [], []>} : vector<8x8xf32>, vector<8x8xf32>, vector<8x8xf32> -> vector<8x8xf32>
    %cst_82 = arith.constant dense<0.000000e+00> : vector<8x32xf32>
    %163 = tpu.matmul %162, %143, %cst_82 {dimension_numbers = #tpu.dot_dimension_numbers<[1], [0], [0], [1], [0, 0, 1, 1], [], []>} : vector<8x8xf32>, vector<8x32xf32>, vector<8x32xf32> -> vector<8x32xf32>
    %164 = arith.addf %129, %163 : vector<8x32xf32>
    %c4_i32 = arith.constant 4 : i32
    %165 = arith.addf %11, %164 : vector<8x32xf32>
    %c320 = arith.constant 320 : index
    %c0_83 = arith.constant 0 : index
    %166 = vector.load %arg3[%c320, %c0_83] : memref<328x32xf32, #tpu.memory_space<vmem>>, vector<1x32xf32>
    %167 = vector.broadcast %166 : vector<1x32xf32> to vector<8x32xf32>
    %168 = arith.addf %165, %167 : vector<8x32xf32>
    %cst_84 = arith.constant 0.000000e+00 : f32
    %169 = vector.broadcast %cst_84 : f32 to vector<8x32xf32>
    %c0_i32_85 = arith.constant 0 : i32
    %c8_i32_86 = arith.constant 8 : i32
    %170 = arith.muli %c0_i32_85, %c8_i32_86 : i32
    %171 = tpu.assume_multiple %170, 8 : i32
    %c128_i32 = arith.constant 128 : i32
    %172 = arith.addi %c128_i32, %171 : i32
    %173 = arith.index_cast %172 : i32 to index
    %c0_87 = arith.constant 0 : index
    %174 = vector.load %arg3[%173, %c0_87] : memref<328x32xf32, #tpu.memory_space<vmem>>, vector<8x32xf32>
    %c160_i32 = arith.constant 160 : i32
    %175 = arith.addi %c160_i32, %171 : i32
    %176 = arith.index_cast %175 : i32 to index
    %c0_88 = arith.constant 0 : index
    %177 = vector.load %arg3[%176, %c0_88] : memref<328x32xf32, #tpu.memory_space<vmem>>, vector<8x32xf32>
    %c192_i32 = arith.constant 192 : i32
    %178 = arith.addi %c192_i32, %171 : i32
    %179 = arith.index_cast %178 : i32 to index
    %c0_89 = arith.constant 0 : index
    %180 = vector.load %arg3[%179, %c0_89] : memref<328x32xf32, #tpu.memory_space<vmem>>, vector<8x32xf32>
    %c224_i32 = arith.constant 224 : i32
    %181 = arith.addi %c224_i32, %171 : i32
    %182 = arith.index_cast %181 : i32 to index
    %c0_90 = arith.constant 0 : index
    %183 = vector.load %arg3[%182, %c0_90] : memref<328x32xf32, #tpu.memory_space<vmem>>, vector<8x32xf32>
    %c4_i32_91 = arith.constant 4 : i32
    %184 = arith.addi %c4_i32_91, %c0_i32_85 : i32
    %185 = arith.index_cast %184 : i32 to index
    %c0_92 = arith.constant 0 : index
    %186 = vector.load %arg4[%185, %c0_92] : memref<8x8xf32, #tpu.memory_space<vmem>>, vector<1x8xf32>
    %cst_93 = arith.constant dense<0.000000e+00> : vector<8x8xf32>
    %187 = tpu.matmul %168, %174, %cst_93 {dimension_numbers = #tpu.dot_dimension_numbers<[1], [1], [0], [0], [0, 0, 1, 0], [], []>} : vector<8x32xf32>, vector<8x32xf32>, vector<8x8xf32> -> vector<8x8xf32>
    %188 = vector.broadcast %186 : vector<1x8xf32> to vector<8x8xf32>
    %189 = arith.addf %187, %188 : vector<8x8xf32>
    %cst_94 = arith.constant dense<0.000000e+00> : vector<8x8xf32>
    %190 = tpu.matmul %23, %177, %cst_94 {dimension_numbers = #tpu.dot_dimension_numbers<[1], [1], [0], [0], [0, 0, 1, 0], [], []>} : vector<8x32xf32>, vector<8x32xf32>, vector<8x8xf32> -> vector<8x8xf32>
    %cst_95 = arith.constant dense<0.000000e+00> : vector<8x8xf32>
    %191 = tpu.matmul %23, %180, %cst_95 {dimension_numbers = #tpu.dot_dimension_numbers<[1], [1], [0], [0], [0, 0, 1, 0], [], []>} : vector<8x32xf32>, vector<8x32xf32>, vector<8x8xf32> -> vector<8x8xf32>
    %cst_96 = arith.constant dense<0.000000e+00> : vector<8x8xf32>
    %192 = tpu.matmul %189, %190, %cst_96 {dimension_numbers = #tpu.dot_dimension_numbers<[1], [1], [0], [0], [0, 0, 1, 0], [], []>} : vector<8x8xf32>, vector<8x8xf32>, vector<8x8xf32> -> vector<8x8xf32>
    %cst_97 = arith.constant dense<0xFF800000> : vector<8xf32>
    %193 = vector.multi_reduction <maximumf>, %192, %cst_97 [1] : vector<8x8xf32> to vector<8xf32>
    %194 = vector.shape_cast %193 : vector<8xf32> to vector<8x1xf32>
    %195 = vector.broadcast %194 : vector<8x1xf32> to vector<8x8xf32>
    %196 = arith.subf %192, %195 : vector<8x8xf32>
    %197 = math.exp %196 : vector<8x8xf32>
    %cst_98 = arith.constant dense<0.000000e+00> : vector<8xf32>
    %198 = vector.multi_reduction <add>, %197, %cst_98 [1] : vector<8x8xf32> to vector<8xf32>
    %199 = vector.shape_cast %198 : vector<8xf32> to vector<8x1xf32>
    %200 = vector.broadcast %199 : vector<8x1xf32> to vector<8x8xf32>
    %201 = arith.divf %197, %200 : vector<8x8xf32>
    %cst_99 = arith.constant dense<0.000000e+00> : vector<8x8xf32>
    %202 = tpu.matmul %201, %191, %cst_99 {dimension_numbers = #tpu.dot_dimension_numbers<[1], [0], [0], [1], [0, 0, 1, 1], [], []>} : vector<8x8xf32>, vector<8x8xf32>, vector<8x8xf32> -> vector<8x8xf32>
    %cst_100 = arith.constant dense<0.000000e+00> : vector<8x32xf32>
    %203 = tpu.matmul %202, %183, %cst_100 {dimension_numbers = #tpu.dot_dimension_numbers<[1], [0], [0], [1], [0, 0, 1, 1], [], []>} : vector<8x8xf32>, vector<8x32xf32>, vector<8x32xf32> -> vector<8x32xf32>
    %204 = arith.addf %169, %203 : vector<8x32xf32>
    %c1_i32_101 = arith.constant 1 : i32
    %c8_i32_102 = arith.constant 8 : i32
    %205 = arith.muli %c1_i32_101, %c8_i32_102 : i32
    %206 = tpu.assume_multiple %205, 8 : i32
    %c128_i32_103 = arith.constant 128 : i32
    %207 = arith.addi %c128_i32_103, %206 : i32
    %208 = arith.index_cast %207 : i32 to index
    %c0_104 = arith.constant 0 : index
    %209 = vector.load %arg3[%208, %c0_104] : memref<328x32xf32, #tpu.memory_space<vmem>>, vector<8x32xf32>
    %c160_i32_105 = arith.constant 160 : i32
    %210 = arith.addi %c160_i32_105, %206 : i32
    %211 = arith.index_cast %210 : i32 to index
    %c0_106 = arith.constant 0 : index
    %212 = vector.load %arg3[%211, %c0_106] : memref<328x32xf32, #tpu.memory_space<vmem>>, vector<8x32xf32>
    %c192_i32_107 = arith.constant 192 : i32
    %213 = arith.addi %c192_i32_107, %206 : i32
    %214 = arith.index_cast %213 : i32 to index
    %c0_108 = arith.constant 0 : index
    %215 = vector.load %arg3[%214, %c0_108] : memref<328x32xf32, #tpu.memory_space<vmem>>, vector<8x32xf32>
    %c224_i32_109 = arith.constant 224 : i32
    %216 = arith.addi %c224_i32_109, %206 : i32
    %217 = arith.index_cast %216 : i32 to index
    %c0_110 = arith.constant 0 : index
    %218 = vector.load %arg3[%217, %c0_110] : memref<328x32xf32, #tpu.memory_space<vmem>>, vector<8x32xf32>
    %c4_i32_111 = arith.constant 4 : i32
    %219 = arith.addi %c4_i32_111, %c1_i32_101 : i32
    %220 = arith.index_cast %219 : i32 to index
    %c0_112 = arith.constant 0 : index
    %221 = vector.load %arg4[%220, %c0_112] : memref<8x8xf32, #tpu.memory_space<vmem>>, vector<1x8xf32>
    %cst_113 = arith.constant dense<0.000000e+00> : vector<8x8xf32>
    %222 = tpu.matmul %168, %209, %cst_113 {dimension_numbers = #tpu.dot_dimension_numbers<[1], [1], [0], [0], [0, 0, 1, 0], [], []>} : vector<8x32xf32>, vector<8x32xf32>, vector<8x8xf32> -> vector<8x8xf32>
    %223 = vector.broadcast %221 : vector<1x8xf32> to vector<8x8xf32>
    %224 = arith.addf %222, %223 : vector<8x8xf32>
    %cst_114 = arith.constant dense<0.000000e+00> : vector<8x8xf32>
    %225 = tpu.matmul %23, %212, %cst_114 {dimension_numbers = #tpu.dot_dimension_numbers<[1], [1], [0], [0], [0, 0, 1, 0], [], []>} : vector<8x32xf32>, vector<8x32xf32>, vector<8x8xf32> -> vector<8x8xf32>
    %cst_115 = arith.constant dense<0.000000e+00> : vector<8x8xf32>
    %226 = tpu.matmul %23, %215, %cst_115 {dimension_numbers = #tpu.dot_dimension_numbers<[1], [1], [0], [0], [0, 0, 1, 0], [], []>} : vector<8x32xf32>, vector<8x32xf32>, vector<8x8xf32> -> vector<8x8xf32>
    %cst_116 = arith.constant dense<0.000000e+00> : vector<8x8xf32>
    %227 = tpu.matmul %224, %225, %cst_116 {dimension_numbers = #tpu.dot_dimension_numbers<[1], [1], [0], [0], [0, 0, 1, 0], [], []>} : vector<8x8xf32>, vector<8x8xf32>, vector<8x8xf32> -> vector<8x8xf32>
    %cst_117 = arith.constant dense<0xFF800000> : vector<8xf32>
    %228 = vector.multi_reduction <maximumf>, %227, %cst_117 [1] : vector<8x8xf32> to vector<8xf32>
    %229 = vector.shape_cast %228 : vector<8xf32> to vector<8x1xf32>
    %230 = vector.broadcast %229 : vector<8x1xf32> to vector<8x8xf32>
    %231 = arith.subf %227, %230 : vector<8x8xf32>
    %232 = math.exp %231 : vector<8x8xf32>
    %cst_118 = arith.constant dense<0.000000e+00> : vector<8xf32>
    %233 = vector.multi_reduction <add>, %232, %cst_118 [1] : vector<8x8xf32> to vector<8xf32>
    %234 = vector.shape_cast %233 : vector<8xf32> to vector<8x1xf32>
    %235 = vector.broadcast %234 : vector<8x1xf32> to vector<8x8xf32>
    %236 = arith.divf %232, %235 : vector<8x8xf32>
    %cst_119 = arith.constant dense<0.000000e+00> : vector<8x8xf32>
    %237 = tpu.matmul %236, %226, %cst_119 {dimension_numbers = #tpu.dot_dimension_numbers<[1], [0], [0], [1], [0, 0, 1, 1], [], []>} : vector<8x8xf32>, vector<8x8xf32>, vector<8x8xf32> -> vector<8x8xf32>
    %cst_120 = arith.constant dense<0.000000e+00> : vector<8x32xf32>
    %238 = tpu.matmul %237, %218, %cst_120 {dimension_numbers = #tpu.dot_dimension_numbers<[1], [0], [0], [1], [0, 0, 1, 1], [], []>} : vector<8x8xf32>, vector<8x32xf32>, vector<8x32xf32> -> vector<8x32xf32>
    %239 = arith.addf %204, %238 : vector<8x32xf32>
    %c2_i32_121 = arith.constant 2 : i32
    %c8_i32_122 = arith.constant 8 : i32
    %240 = arith.muli %c2_i32_121, %c8_i32_122 : i32
    %241 = tpu.assume_multiple %240, 8 : i32
    %c128_i32_123 = arith.constant 128 : i32
    %242 = arith.addi %c128_i32_123, %241 : i32
    %243 = arith.index_cast %242 : i32 to index
    %c0_124 = arith.constant 0 : index
    %244 = vector.load %arg3[%243, %c0_124] : memref<328x32xf32, #tpu.memory_space<vmem>>, vector<8x32xf32>
    %c160_i32_125 = arith.constant 160 : i32
    %245 = arith.addi %c160_i32_125, %241 : i32
    %246 = arith.index_cast %245 : i32 to index
    %c0_126 = arith.constant 0 : index
    %247 = vector.load %arg3[%246, %c0_126] : memref<328x32xf32, #tpu.memory_space<vmem>>, vector<8x32xf32>
    %c192_i32_127 = arith.constant 192 : i32
    %248 = arith.addi %c192_i32_127, %241 : i32
    %249 = arith.index_cast %248 : i32 to index
    %c0_128 = arith.constant 0 : index
    %250 = vector.load %arg3[%249, %c0_128] : memref<328x32xf32, #tpu.memory_space<vmem>>, vector<8x32xf32>
    %c224_i32_129 = arith.constant 224 : i32
    %251 = arith.addi %c224_i32_129, %241 : i32
    %252 = arith.index_cast %251 : i32 to index
    %c0_130 = arith.constant 0 : index
    %253 = vector.load %arg3[%252, %c0_130] : memref<328x32xf32, #tpu.memory_space<vmem>>, vector<8x32xf32>
    %c4_i32_131 = arith.constant 4 : i32
    %254 = arith.addi %c4_i32_131, %c2_i32_121 : i32
    %255 = arith.index_cast %254 : i32 to index
    %c0_132 = arith.constant 0 : index
    %256 = vector.load %arg4[%255, %c0_132] : memref<8x8xf32, #tpu.memory_space<vmem>>, vector<1x8xf32>
    %cst_133 = arith.constant dense<0.000000e+00> : vector<8x8xf32>
    %257 = tpu.matmul %168, %244, %cst_133 {dimension_numbers = #tpu.dot_dimension_numbers<[1], [1], [0], [0], [0, 0, 1, 0], [], []>} : vector<8x32xf32>, vector<8x32xf32>, vector<8x8xf32> -> vector<8x8xf32>
    %258 = vector.broadcast %256 : vector<1x8xf32> to vector<8x8xf32>
    %259 = arith.addf %257, %258 : vector<8x8xf32>
    %cst_134 = arith.constant dense<0.000000e+00> : vector<8x8xf32>
    %260 = tpu.matmul %23, %247, %cst_134 {dimension_numbers = #tpu.dot_dimension_numbers<[1], [1], [0], [0], [0, 0, 1, 0], [], []>} : vector<8x32xf32>, vector<8x32xf32>, vector<8x8xf32> -> vector<8x8xf32>
    %cst_135 = arith.constant dense<0.000000e+00> : vector<8x8xf32>
    %261 = tpu.matmul %23, %250, %cst_135 {dimension_numbers = #tpu.dot_dimension_numbers<[1], [1], [0], [0], [0, 0, 1, 0], [], []>} : vector<8x32xf32>, vector<8x32xf32>, vector<8x8xf32> -> vector<8x8xf32>
    %cst_136 = arith.constant dense<0.000000e+00> : vector<8x8xf32>
    %262 = tpu.matmul %259, %260, %cst_136 {dimension_numbers = #tpu.dot_dimension_numbers<[1], [1], [0], [0], [0, 0, 1, 0], [], []>} : vector<8x8xf32>, vector<8x8xf32>, vector<8x8xf32> -> vector<8x8xf32>
    %cst_137 = arith.constant dense<0xFF800000> : vector<8xf32>
    %263 = vector.multi_reduction <maximumf>, %262, %cst_137 [1] : vector<8x8xf32> to vector<8xf32>
    %264 = vector.shape_cast %263 : vector<8xf32> to vector<8x1xf32>
    %265 = vector.broadcast %264 : vector<8x1xf32> to vector<8x8xf32>
    %266 = arith.subf %262, %265 : vector<8x8xf32>
    %267 = math.exp %266 : vector<8x8xf32>
    %cst_138 = arith.constant dense<0.000000e+00> : vector<8xf32>
    %268 = vector.multi_reduction <add>, %267, %cst_138 [1] : vector<8x8xf32> to vector<8xf32>
    %269 = vector.shape_cast %268 : vector<8xf32> to vector<8x1xf32>
    %270 = vector.broadcast %269 : vector<8x1xf32> to vector<8x8xf32>
    %271 = arith.divf %267, %270 : vector<8x8xf32>
    %cst_139 = arith.constant dense<0.000000e+00> : vector<8x8xf32>
    %272 = tpu.matmul %271, %261, %cst_139 {dimension_numbers = #tpu.dot_dimension_numbers<[1], [0], [0], [1], [0, 0, 1, 1], [], []>} : vector<8x8xf32>, vector<8x8xf32>, vector<8x8xf32> -> vector<8x8xf32>
    %cst_140 = arith.constant dense<0.000000e+00> : vector<8x32xf32>
    %273 = tpu.matmul %272, %253, %cst_140 {dimension_numbers = #tpu.dot_dimension_numbers<[1], [0], [0], [1], [0, 0, 1, 1], [], []>} : vector<8x8xf32>, vector<8x32xf32>, vector<8x32xf32> -> vector<8x32xf32>
    %274 = arith.addf %239, %273 : vector<8x32xf32>
    %c3_i32_141 = arith.constant 3 : i32
    %c8_i32_142 = arith.constant 8 : i32
    %275 = arith.muli %c3_i32_141, %c8_i32_142 : i32
    %276 = tpu.assume_multiple %275, 8 : i32
    %c128_i32_143 = arith.constant 128 : i32
    %277 = arith.addi %c128_i32_143, %276 : i32
    %278 = arith.index_cast %277 : i32 to index
    %c0_144 = arith.constant 0 : index
    %279 = vector.load %arg3[%278, %c0_144] : memref<328x32xf32, #tpu.memory_space<vmem>>, vector<8x32xf32>
    %c160_i32_145 = arith.constant 160 : i32
    %280 = arith.addi %c160_i32_145, %276 : i32
    %281 = arith.index_cast %280 : i32 to index
    %c0_146 = arith.constant 0 : index
    %282 = vector.load %arg3[%281, %c0_146] : memref<328x32xf32, #tpu.memory_space<vmem>>, vector<8x32xf32>
    %c192_i32_147 = arith.constant 192 : i32
    %283 = arith.addi %c192_i32_147, %276 : i32
    %284 = arith.index_cast %283 : i32 to index
    %c0_148 = arith.constant 0 : index
    %285 = vector.load %arg3[%284, %c0_148] : memref<328x32xf32, #tpu.memory_space<vmem>>, vector<8x32xf32>
    %c224_i32_149 = arith.constant 224 : i32
    %286 = arith.addi %c224_i32_149, %276 : i32
    %287 = arith.index_cast %286 : i32 to index
    %c0_150 = arith.constant 0 : index
    %288 = vector.load %arg3[%287, %c0_150] : memref<328x32xf32, #tpu.memory_space<vmem>>, vector<8x32xf32>
    %c4_i32_151 = arith.constant 4 : i32
    %289 = arith.addi %c4_i32_151, %c3_i32_141 : i32
    %290 = arith.index_cast %289 : i32 to index
    %c0_152 = arith.constant 0 : index
    %291 = vector.load %arg4[%290, %c0_152] : memref<8x8xf32, #tpu.memory_space<vmem>>, vector<1x8xf32>
    %cst_153 = arith.constant dense<0.000000e+00> : vector<8x8xf32>
    %292 = tpu.matmul %168, %279, %cst_153 {dimension_numbers = #tpu.dot_dimension_numbers<[1], [1], [0], [0], [0, 0, 1, 0], [], []>} : vector<8x32xf32>, vector<8x32xf32>, vector<8x8xf32> -> vector<8x8xf32>
    %293 = vector.broadcast %291 : vector<1x8xf32> to vector<8x8xf32>
    %294 = arith.addf %292, %293 : vector<8x8xf32>
    %cst_154 = arith.constant dense<0.000000e+00> : vector<8x8xf32>
    %295 = tpu.matmul %23, %282, %cst_154 {dimension_numbers = #tpu.dot_dimension_numbers<[1], [1], [0], [0], [0, 0, 1, 0], [], []>} : vector<8x32xf32>, vector<8x32xf32>, vector<8x8xf32> -> vector<8x8xf32>
    %cst_155 = arith.constant dense<0.000000e+00> : vector<8x8xf32>
    %296 = tpu.matmul %23, %285, %cst_155 {dimension_numbers = #tpu.dot_dimension_numbers<[1], [1], [0], [0], [0, 0, 1, 0], [], []>} : vector<8x32xf32>, vector<8x32xf32>, vector<8x8xf32> -> vector<8x8xf32>
    %cst_156 = arith.constant dense<0.000000e+00> : vector<8x8xf32>
    %297 = tpu.matmul %294, %295, %cst_156 {dimension_numbers = #tpu.dot_dimension_numbers<[1], [1], [0], [0], [0, 0, 1, 0], [], []>} : vector<8x8xf32>, vector<8x8xf32>, vector<8x8xf32> -> vector<8x8xf32>
    %cst_157 = arith.constant dense<0xFF800000> : vector<8xf32>
    %298 = vector.multi_reduction <maximumf>, %297, %cst_157 [1] : vector<8x8xf32> to vector<8xf32>
    %299 = vector.shape_cast %298 : vector<8xf32> to vector<8x1xf32>
    %300 = vector.broadcast %299 : vector<8x1xf32> to vector<8x8xf32>
    %301 = arith.subf %297, %300 : vector<8x8xf32>
    %302 = math.exp %301 : vector<8x8xf32>
    %cst_158 = arith.constant dense<0.000000e+00> : vector<8xf32>
    %303 = vector.multi_reduction <add>, %302, %cst_158 [1] : vector<8x8xf32> to vector<8xf32>
    %304 = vector.shape_cast %303 : vector<8xf32> to vector<8x1xf32>
    %305 = vector.broadcast %304 : vector<8x1xf32> to vector<8x8xf32>
    %306 = arith.divf %302, %305 : vector<8x8xf32>
    %cst_159 = arith.constant dense<0.000000e+00> : vector<8x8xf32>
    %307 = tpu.matmul %306, %296, %cst_159 {dimension_numbers = #tpu.dot_dimension_numbers<[1], [0], [0], [1], [0, 0, 1, 1], [], []>} : vector<8x8xf32>, vector<8x8xf32>, vector<8x8xf32> -> vector<8x8xf32>
    %cst_160 = arith.constant dense<0.000000e+00> : vector<8x32xf32>
    %308 = tpu.matmul %307, %288, %cst_160 {dimension_numbers = #tpu.dot_dimension_numbers<[1], [0], [0], [1], [0, 0, 1, 1], [], []>} : vector<8x8xf32>, vector<8x32xf32>, vector<8x32xf32> -> vector<8x32xf32>
    %309 = arith.addf %274, %308 : vector<8x32xf32>
    %c4_i32_161 = arith.constant 4 : i32
    %310 = arith.addf %168, %309 : vector<8x32xf32>
    %c321 = arith.constant 321 : index
    %c0_162 = arith.constant 0 : index
    %311 = vector.load %arg3[%c321, %c0_162] : memref<328x32xf32, #tpu.memory_space<vmem>>, vector<1x32xf32>
    %312 = vector.broadcast %311 : vector<1x32xf32> to vector<8x32xf32>
    %313 = arith.addf %310, %312 : vector<8x32xf32>
    %c256 = arith.constant 256 : index
    %c0_163 = arith.constant 0 : index
    %314 = vector.load %arg3[%c256, %c0_163] : memref<328x32xf32, #tpu.memory_space<vmem>>, vector<32x32xf32>
    %c322 = arith.constant 322 : index
    %c0_164 = arith.constant 0 : index
    %315 = vector.load %arg3[%c322, %c0_164] : memref<328x32xf32, #tpu.memory_space<vmem>>, vector<1x32xf32>
    %cst_165 = arith.constant dense<0.000000e+00> : vector<8x32xf32>
    %316 = tpu.matmul %313, %314, %cst_165 {dimension_numbers = #tpu.dot_dimension_numbers<[1], [1], [0], [0], [0, 0, 1, 0], [], []>} : vector<8x32xf32>, vector<32x32xf32>, vector<8x32xf32> -> vector<8x32xf32>
    %317 = vector.broadcast %315 : vector<1x32xf32> to vector<8x32xf32>
    %318 = arith.addf %316, %317 : vector<8x32xf32>
    %c288 = arith.constant 288 : index
    %c0_166 = arith.constant 0 : index
    %319 = vector.load %arg3[%c288, %c0_166] : memref<328x32xf32, #tpu.memory_space<vmem>>, vector<32x32xf32>
    %c323 = arith.constant 323 : index
    %c0_167 = arith.constant 0 : index
    %320 = vector.load %arg3[%c323, %c0_167] : memref<328x32xf32, #tpu.memory_space<vmem>>, vector<1x32xf32>
    %cst_168 = arith.constant dense<0.000000e+00> : vector<8x32xf32>
    %321 = tpu.matmul %318, %319, %cst_168 {dimension_numbers = #tpu.dot_dimension_numbers<[1], [0], [0], [1], [0, 0, 1, 1], [], []>} : vector<8x32xf32>, vector<32x32xf32>, vector<8x32xf32> -> vector<8x32xf32>
    %322 = vector.broadcast %320 : vector<1x32xf32> to vector<8x32xf32>
    %323 = arith.addf %321, %322 : vector<8x32xf32>
    %324 = arith.addf %313, %323 : vector<8x32xf32>
    %c0_169 = arith.constant 0 : index
    %c0_170 = arith.constant 0 : index
    %c0_171 = arith.constant 0 : index
    %325 = vector.load %arg5[%c0_169, %c0_170, %c0_171] : memref<1x8x32xf32, #tpu.memory_space<vmem>>, vector<1x8x32xf32>
    %326 = vector.shape_cast %325 : vector<1x8x32xf32> to vector<8x32xf32>
    %327 = vector.shape_cast %324 : vector<8x32xf32> to vector<1x8x32xf32>
    tpu.vector_store %arg5[%c0_169, %c0_170, %c0_171], %327 {strides = array<i32>} : memref<1x8x32xf32, #tpu.memory_space<vmem>>, vector<1x8x32xf32>,
    return
  }
  func.func @transform_0(%arg0: i32) -> (i32, i32) {
    %c0_i32 = arith.constant 0 : i32
    %c0_i32_0 = arith.constant 0 : i32
    %c0_i32_1 = arith.constant 0 : i32
    return %c0_i32, %c0_i32_0 : i32, i32
  }
  func.func @transform_1(%arg0: i32) -> (i32, i32) {
    %c0_i32 = arith.constant 0 : i32
    %c0_i32_0 = arith.constant 0 : i32
    %c0_i32_1 = arith.constant 0 : i32
    return %c0_i32, %c0_i32_0 : i32, i32
  }
  func.func @transform_2(%arg0: i32) -> (i32, i32) {
    %c0_i32 = arith.constant 0 : i32
    %c0_i32_0 = arith.constant 0 : i32
    %c0_i32_1 = arith.constant 0 : i32
    return %c0_i32, %c0_i32_0 : i32, i32
  }
  func.func @transform_3(%arg0: i32) -> (i32, i32) {
    %c0_i32 = arith.constant 0 : i32
    %c0_i32_0 = arith.constant 0 : i32
    %c0_i32_1 = arith.constant 0 : i32
    return %c0_i32, %c0_i32_0 : i32, i32
  }
  func.func @transform_4(%arg0: i32) -> (i32, i32, i32) {
    %c0_i32 = arith.constant 0 : i32
    %c0_i32_0 = arith.constant 0 : i32
    %c0_i32_1 = arith.constant 0 : i32
    return %arg0, %c0_i32, %c0_i32_0 : i32, i32, i32
  }
}

</mosaic_0001>

<llo_original>
// kernel: transformer_decoder_layer.1
$region0: #{transformer_decoder_layer.1}
  #allocation0 [shape = 'u32[]', space=smem, size = 0x4, offset = 0x4, fixed_abs, tag = 'smem constant byte address 0x4 - core index']
  #allocation1 [shape = 'u32[144,128]{1,0:T(1,128)}', space=vmem, size = 0x12000, scoped, tag = 'internal scratch']
  %s0 = inlined_call_operand.vmem [shape: f32[16,32], index: 0, kind: input, shape index: {}]
  %s1 = inlined_call_operand.vmem [shape: f32[16,32], index: 1, kind: input, shape index: {}]
  %s2 = inlined_call_operand.vmem [shape: f32[328,32], index: 2, kind: input, shape index: {}]
  %s3 = inlined_call_operand.vmem [shape: f32[8,8], index: 3, kind: input, shape index: {}]
  %s4 = inlined_call_operand.vmem [shape: f32[2,8,32], index: 4, kind: output, shape index: {}]
  %s5 = sld [smem:[#allocation0]]
  $region49: #{transformer_decoder_layer.1} parent=0
    _
  %s7 = ssub.s32 1, %s5
  %s8 = scalar_select 0, %s7, %s5
  loop: start=0, step=1, limit=4
  $region2: #{transformer_decoder_layer.1} parent=0 // loop_pre_header
    _
  $region3: #{transformer_decoder_layer.1} parent=0 // loop_header
    %s10 = sphi 0, %s14
    %p11 = scmp.ge.s32.totalorder %s10, 4
    %s18 = sphi 0, %s18
    %s20 = sphi 0, %s18
    %s21 = sphi 0, %s20
    %s35 = sphi 0, %s21
    %s39 = sphi 0, %s39
    %s41 = sphi 0, %s39
    %s42 = sphi 0, %s41
    %s56 = sphi 0, %s42
    %s60 = sphi 0, %s60
    %s62 = sphi 0, %s60
    %s63 = sphi 0, %s62
    %s77 = sphi 0, %s63
    %s81 = sphi 0, %s81
    %s83 = sphi 0, %s81
    %s84 = sphi 0, %s83
    %s98 = sphi 0, %s84
    %s104 = sphi 0, %s106
    %s107 = sphi 0, %s104
    %s108 = sphi 0, %s107
    %s124 = sphi 0, %s108
  $region4: #{transformer_decoder_layer.1} parent=0 // loop_header_branch
    %13 = sbr.rel (%p11) target = $region8
  $region5: #{transformer_decoder_layer.1} parent=0 // loop_body
    %s15 = ssub.s32 %s10, 1
    %s16 = ssub.s32 %s10, 2
    %s17 = sadd.s32 %s10, 1
    %s19 = sadd.s32 %s18, 1
    %p22 = scmp.eq.s32.totalorder %s10, 1
    %p23 = scmp.ne.s32.totalorder %s18, %s20
    %p24 = scmp.eq.s32.totalorder %s10, 0
    %p25 = por %p23, %p24
    %p26 = scmp.ne.s32.totalorder %s18, %s20
    %p27 = scmp.eq.s32.totalorder %s15, 1
    %p28 = por %p26, %p27
    %p29 = scmp.ne.s32.totalorder %s20, %s21
    %p30 = scmp.eq.s32.totalorder %s15, 0
    %p31 = por %p29, %p30
    %p32 = scmp.ne.s32.totalorder %s20, %s21
    %p33 = scmp.eq.s32.totalorder %s16, 1
    %p34 = por %p32, %p33
    %p36 = scmp.ne.s32.totalorder %s21, %s35
    %p37 = scmp.eq.s32.totalorder %s16, 0
    %p38 = por %p36, %p37
    %s40 = sadd.s32 %s39, 1
    %p43 = scmp.eq.s32.totalorder %s10, 1
    %p44 = scmp.ne.s32.totalorder %s39, %s41
    %p45 = scmp.eq.s32.totalorder %s10, 0
    %p46 = por %p44, %p45
    %p47 = scmp.ne.s32.totalorder %s39, %s41
    %p48 = scmp.eq.s32.totalorder %s15, 1
    %p49 = por %p47, %p48
    %p50 = scmp.ne.s32.totalorder %s41, %s42
    %p51 = scmp.eq.s32.totalorder %s15, 0
    %p52 = por %p50, %p51
    %p53 = scmp.ne.s32.totalorder %s41, %s42
    %p54 = scmp.eq.s32.totalorder %s16, 1
    %p55 = por %p53, %p54
    %p57 = scmp.ne.s32.totalorder %s42, %s56
    %p58 = scmp.eq.s32.totalorder %s16, 0
    %p59 = por %p57, %p58
    %s61 = sadd.s32 %s60, 1
    %p64 = scmp.eq.s32.totalorder %s10, 1
    %p65 = scmp.ne.s32.totalorder %s60, %s62
    %p66 = scmp.eq.s32.totalorder %s10, 0
    %p67 = por %p65, %p66
    %p68 = scmp.ne.s32.totalorder %s60, %s62
    %p69 = scmp.eq.s32.totalorder %s15, 1
    %p70 = por %p68, %p69
    %p71 = scmp.ne.s32.totalorder %s62, %s63
    %p72 = scmp.eq.s32.totalorder %s15, 0
    %p73 = por %p71, %p72
    %p74 = scmp.ne.s32.totalorder %s62, %s63
    %p75 = scmp.eq.s32.totalorder %s16, 1
    %p76 = por %p74, %p75
    %p78 = scmp.ne.s32.totalorder %s63, %s77
    %p79 = scmp.eq.s32.totalorder %s16, 0
    %p80 = por %p78, %p79
    %s82 = sadd.s32 %s81, 1
    %p85 = scmp.eq.s32.totalorder %s10, 1
    %p86 = scmp.ne.s32.totalorder %s81, %s83
    %p87 = scmp.eq.s32.totalorder %s10, 0
    %p88 = por %p86, %p87
    %p89 = scmp.ne.s32.totalorder %s81, %s83
    %p90 = scmp.eq.s32.totalorder %s15, 1
    %p91 = por %p89, %p90
    %p92 = scmp.ne.s32.totalorder %s83, %s84
    %p93 = scmp.eq.s32.totalorder %s15, 0
    %p94 = por %p92, %p93
    %p95 = scmp.ne.s32.totalorder %s83, %s84
    %p96 = scmp.eq.s32.totalorder %s16, 1
    %p97 = por %p95, %p96
    %p99 = scmp.ne.s32.totalorder %s84, %s98
    %p100 = scmp.eq.s32.totalorder %s16, 0
    %p101 = por %p99, %p100
    %s102 = ssub.s32 %s10, %s17
    %p103 = scmp.eq.s32.totalorder %s102, 0
    %s105 = sadd.s32 %s104, 1
    %s106 = scalar_select %p103, %s104, %s105
    %p109 = pneg %p103
    %p110 = scmp.eq.s32.totalorder %s10, 1
    %p111 = por %p109, %p110
    %p112 = scmp.ne.s32.totalorder %s104, %s107
    %p113 = scmp.eq.s32.totalorder %s10, 0
    %p114 = por %p112, %p113
    %p115 = scmp.ne.s32.totalorder %s104, %s107
    %p116 = scmp.eq.s32.totalorder %s15, 1
    %p117 = por %p115, %p116
    %p118 = scmp.ne.s32.totalorder %s107, %s108
    %p119 = scmp.eq.s32.totalorder %s15, 0
    %p120 = por %p118, %p119
    %p121 = scmp.ne.s32.totalorder %s107, %s108
    %p122 = scmp.eq.s32.totalorder %s16, 1
    %p123 = por %p121, %p122
    %p125 = scmp.ne.s32.totalorder %s108, %s124
    %p126 = scmp.eq.s32.totalorder %s16, 0
    %p127 = por %p125, %p126
    %p128 = scmp.le.s32.totalorder 1, %s10
    %p129 = scmp.lt.s32.totalorder %s10, 3
    %p130 = pnand %p128, %p129
    %p131 = pneg %p130
    // Predicated region
    $region9: #{transformer_decoder_layer.1} parent=5 // pred_check
      _
    $region10: #{transformer_decoder_layer.1} parent=5 // pred_check_branch
      %133 = sbr.rel (%p130) target = $region12
    $region11: #{transformer_decoder_layer.1} parent=5 // pred_region
      %s134 = ssub.s32 %s10, 1
      // Predicated region
      $region13: #{transformer_decoder_layer.1} parent=11 // pred_check
        %p135 = pneg %p31
      $region14: #{transformer_decoder_layer.1} parent=11 // pred_check_branch
        %137 = sbr.rel (%p135) target = $region16
      $region15: #{transformer_decoder_layer.1} parent=11 // pred_region
        _
      $region16: #{transformer_decoder_layer.1} parent=11 // pred_fallthru
        _
      // Predicated region
      $region17: #{transformer_decoder_layer.1} parent=11 // pred_check
        %p138 = pneg %p52
      $region18: #{transformer_decoder_layer.1} parent=11 // pred_check_branch
        %140 = sbr.rel (%p138) target = $region20
      $region19: #{transformer_decoder_layer.1} parent=11 // pred_region
        _
      $region20: #{transformer_decoder_layer.1} parent=11 // pred_fallthru
        _
      // Predicated region
      $region21: #{transformer_decoder_layer.1} parent=11 // pred_check
        %p141 = pneg %p73
      $region22: #{transformer_decoder_layer.1} parent=11 // pred_check_branch
        %143 = sbr.rel (%p141) target = $region24
      $region23: #{transformer_decoder_layer.1} parent=11 // pred_region
        _
      $region24: #{transformer_decoder_layer.1} parent=11 // pred_fallthru
        _
      // Predicated region
      $region25: #{transformer_decoder_layer.1} parent=11 // pred_check
        %p144 = pneg %p94
      $region26: #{transformer_decoder_layer.1} parent=11 // pred_check_branch
        %146 = sbr.rel (%p144) target = $region28
      $region27: #{transformer_decoder_layer.1} parent=11 // pred_region
        _
      $region28: #{transformer_decoder_layer.1} parent=11 // pred_fallthru
        _
    $region12: #{transformer_decoder_layer.1} parent=5 // pred_fallthru
      _
    %p147 = scmp.lt.s32.totalorder %s10, 2
    // Predicated region
    $region29: #{transformer_decoder_layer.1} parent=5 // pred_check
      %p148 = pneg %p147
    $region30: #{transformer_decoder_layer.1} parent=5 // pred_check_branch
      %150 = sbr.rel (%p148) target = $region32
    $region31: #{transformer_decoder_layer.1} parent=5 // pred_region
      _
    $region32: #{transformer_decoder_layer.1} parent=5 // pred_fallthru
      _
    %p151 = scmp.le.s32.totalorder 1, %s10
    %p152 = scmp.lt.s32.totalorder %s10, 3
    %p153 = pnand %p151, %p152
    %p154 = pneg %p153
    // Predicated region
    $region33: #{transformer_decoder_layer.1} parent=5 // pred_check
      _
    $region34: #{transformer_decoder_layer.1} parent=5 // pred_check_branch
      %156 = sbr.rel (%p153) target = $region36
    $region35: #{transformer_decoder_layer.1} parent=5 // pred_region
      %s157 = ssub.s32 %s10, 1
      %p158 = pneg %p31
      %p159 = pneg %p28
      %p160 = pneg %p52
      %p161 = pneg %p49
      %p162 = pneg %p73
      %p163 = pneg %p70
      %p164 = pneg %p94
      %p165 = pneg %p91
      %p166 = pneg %p120
      %p167 = pneg %p117
      %p168 = scmp.lt.s32.totalorder %s15, 1
      %s169 = scalar_select %p168, %s15, 1
      %s170 = smul.addr %s169, 8
      %s171 = scalar_lea.vmem %s4, %s170
      %p172 = scmp.lt.s32.totalorder %s15, 1
      %s173 = scalar_select %p172, %s15, 1
      %s174 = smul.addr %s173, 8
      %s175 = scalar_lea.vmem %s4, %s174
      %v176 = vld [vmem:[%s0] sm:$0xff]
      %v177 = vld [vmem:[%s0 + $0x8] sm:$0xff]
      %v178 = vlaneseq
      %v179 = vshrl.u32 %v178, 7
      %v180 = vlaneseq
      %v181 = vand.u32 %v180, 127
      %v182 = vmul.u32 %v179, 2
      %v183 = vstv %s15
      %v184 = vadd.s32 %v182, %v183
      %vm185 = vcmp.eq.s32.totalorder %v181, %v184
      %v186 = vsel %vm185, 1.0, 0.0
      %vm187 = vcmask 130048
      %v189 = vsel %vm187, %v186, 0
      %191 = vmatprep.subr.mxu0 0.0
      %192 = vmatpush1.msra.mxu0 0.0
      %193 = vmatprep.subr.mxu0 0.0
      %194 = vmatpush1.msra.mxu0 0.0
      %195 = vmatprep.subr.mxu0 0.0
      %196 = vmatpush1.msra.mxu0 0.0
      %197 = vmatprep.subr.mxu0 0.0
      %198 = vmatpush1.msra.mxu0 0.0
      %199 = vmatprep.subr.mxu0 0.0
      %200 = vmatpush1.msra.mxu0 0.0
      %201 = vmatprep.subr.mxu0 0.0
      %202 = vmatpush1.msra.mxu0 0.0
      %203 = vmatprep.subr.mxu0 0.0
      %204 = vmatpush1.msra.mxu0 0.0
      %205 = vmatprep.subr.mxu0 0.0
      %206 = vmatpush1.msra.mxu0 0.0
      %207 = vmatprep.subr.mxu0 0.0
      %208 = vmatpush1.msra.mxu0 0.0
      %209 = vmatprep.subr.mxu0 0.0
      %210 = vmatpush1.msra.mxu0 0.0
      %211 = vmatprep.subr.mxu0 0.0
      %212 = vmatpush1.msra.mxu0 0.0
      %213 = vmatprep.subr.mxu0 0.0
      %214 = vmatpush1.msra.mxu0 0.0
      %215 = vmatprep.subr.mxu0 0.0
      %216 = vmatpush1.msra.mxu0 0.0
      %217 = vmatprep.subr.mxu0 0.0
      %218 = vmatpush1.msra.mxu0 0.0
      %219 = vmatprep.subr.mxu0 0.0
      %220 = vmatpush1.msra.mxu0 %v177
      %221 = vmatprep.subr.mxu0 0.0
      %222 = vmatpush1.msra.mxu0 %v176
      %223 = vmatprep.subr.mxu0 0.0
      %224 = vmatpush2.msra.mxu0 0.0
      %225 = vmatprep.subr.mxu0 0.0
      %226 = vmatpush2.msra.mxu0 0.0
      %227 = vmatprep.subr.mxu0 0.0
      %228 = vmatpush2.msra.mxu0 0.0
      %229 = vmatprep.subr.mxu0 0.0
      %230 = vmatpush2.msra.mxu0 0.0
      %231 = vmatprep.subr.mxu0 0.0
      %232 = vmatpush2.msra.mxu0 0.0
      %233 = vmatprep.subr.mxu0 0.0
      %234 = vmatpush2.msra.mxu0 0.0
      %235 = vmatprep.subr.mxu0 0.0
      %236 = vmatpush2.msra.mxu0 0.0
      %237 = vmatprep.subr.mxu0 0.0
      %238 = vmatpush2.msra.mxu0 0.0
      %239 = vmatprep.subr.mxu0 0.0
      %240 = vmatpush2.msra.mxu0 0.0
      %241 = vmatprep.subr.mxu0 0.0
      %242 = vmatpush2.msra.mxu0 0.0
      %243 = vmatprep.subr.mxu0 0.0
      %244 = vmatpush2.msra.mxu0 0.0
      %245 = vmatprep.subr.mxu0 0.0
      %246 = vmatpush2.msra.mxu0 0.0
      %247 = vmatprep.subr.mxu0 0.0
      %248 = vmatpush2.msra.mxu0 0.0
      %249 = vmatprep.subr.mxu0 0.0
      %250 = vmatpush2.msra.mxu0 0.0
      %251 = vmatprep.subr.mxu0 0.0
      %252 = vmatpush2.msra.mxu0 0.0
      %253 = vmatprep.subr.mxu0 0.0
      %254 = vmatpush2.msra.mxu0 0.0
      %255 = vmatprep.mubr.f32.mxu0 0.0
      %256 = vmatmul.mubr.f32.gmra.mxu0 %v189
      %v257 = vpop.f32.mrf.mxu0
      %v258 = vadd.f32 0.0, %v257
      %v259 = vpop.f32.mrf.mxu0
      %260 = vdwg.mxu0
      %v261 = vld [vmem:[%s1] sm:$0xff]
      %v262 = vld [vmem:[%s1 + $0x8] sm:$0xff]
      %263 = vmatprep.subr.mxu0 0.0
      %264 = vmatpush1.msra.mxu0 0.0
      %265 = vmatprep.subr.mxu0 0.0
      %266 = vmatpush1.msra.mxu0 0.0
      %267 = vmatprep.subr.mxu0 0.0
      %268 = vmatpush1.msra.mxu0 0.0
      %269 = vmatprep.subr.mxu0 0.0
      %270 = vmatpush1.msra.mxu0 0.0
      %271 = vmatprep.subr.mxu0 0.0
      %272 = vmatpush1.msra.mxu0 0.0
      %273 = vmatprep.subr.mxu0 0.0
      %274 = vmatpush1.msra.mxu0 0.0
      %275 = vmatprep.subr.mxu0 0.0
      %276 = vmatpush1.msra.mxu0 0.0
      %277 = vmatprep.subr.mxu0 0.0
      %278 = vmatpush1.msra.mxu0 0.0
      %279 = vmatprep.subr.mxu0 0.0
      %280 = vmatpush1.msra.mxu0 0.0
      %281 = vmatprep.subr.mxu0 0.0
      %282 = vmatpush1.msra.mxu0 0.0
      %283 = vmatprep.subr.mxu0 0.0
      %284 = vmatpush1.msra.mxu0 0.0
      %285 = vmatprep.subr.mxu0 0.0
      %286 = vmatpush1.msra.mxu0 0.0
      %287 = vmatprep.subr.mxu0 0.0
      %288 = vmatpush1.msra.mxu0 0.0
      %289 = vmatprep.subr.mxu0 0.0
      %290 = vmatpush1.msra.mxu0 0.0
      %291 = vmatprep.subr.mxu0 0.0
      %292 = vmatpush1.msra.mxu0 %v262
      %293 = vmatprep.subr.mxu0 0.0
      %294 = vmatpush1.msra.mxu0 %v261
      %295 = vmatprep.subr.mxu0 0.0
      %296 = vmatpush2.msra.mxu0 0.0
      %297 = vmatprep.subr.mxu0 0.0
      %298 = vmatpush2.msra.mxu0 0.0
      %299 = vmatprep.subr.mxu0 0.0
      %300 = vmatpush2.msra.mxu0 0.0
      %301 = vmatprep.subr.mxu0 0.0
      %302 = vmatpush2.msra.mxu0 0.0
      %303 = vmatprep.subr.mxu0 0.0
      %304 = vmatpush2.msra.mxu0 0.0
      %305 = vmatprep.subr.mxu0 0.0
      %306 = vmatpush2.msra.mxu0 0.0
      %307 = vmatprep.subr.mxu0 0.0
      %308 = vmatpush2.msra.mxu0 0.0
      %309 = vmatprep.subr.mxu0 0.0
      %310 = vmatpush2.msra.mxu0 0.0
      %311 = vmatprep.subr.mxu0 0.0
      %312 = vmatpush2.msra.mxu0 0.0
      %313 = vmatprep.subr.mxu0 0.0
      %314 = vmatpush2.msra.mxu0 0.0
      %315 = vmatprep.subr.mxu0 0.0
      %316 = vmatpush2.msra.mxu0 0.0
      %317 = vmatprep.subr.mxu0 0.0
      %318 = vmatpush2.msra.mxu0 0.0
      %319 = vmatprep.subr.mxu0 0.0
      %320 = vmatpush2.msra.mxu0 0.0
      %321 = vmatprep.subr.mxu0 0.0
      %322 = vmatpush2.msra.mxu0 0.0
      %323 = vmatprep.subr.mxu0 0.0
      %324 = vmatpush2.msra.mxu0 0.0
      %325 = vmatprep.subr.mxu0 0.0
      %326 = vmatpush2.msra.mxu0 0.0
      %327 = vmatprep.mubr.f32.mxu0 0.0
      %328 = vmatmul.mubr.f32.gmra.mxu0 %v189
      %v329 = vpop.f32.mrf.mxu0
      %v330 = vadd.f32 0.0, %v329
      %v331 = vpop.f32.mrf.mxu0
      %332 = vdwg.mxu0
      %v333 = vld [vmem:[%s2] sm:$0xff]
      %s334 = sadd.s32 0, 32
      %s335 = scalar_lea.vmem %s2, %s334
      %v336 = vld [vmem:[%s335] sm:$0xff]
      %s337 = sadd.s32 0, 64
      %s338 = scalar_lea.vmem %s2, %s337
      %v339 = vld [vmem:[%s338] sm:$0xff]
      %s340 = sadd.s32 0, 96
      %s341 = scalar_lea.vmem %s2, %s340
      %v342 = vld [vmem:[%s341] sm:$0xff]
      %v343 = vld [vmem:[%s3] sm:$0x1]
      %v344 = vlaneseq
      %v345 = vshrl.u32 %v344, 7
      %v346 = vsub.s32 0, %v345
      %v347 = vrot.slane %v343, %v346
      %vm348 = vcmask 261120
      %v350 = vsel %vm348, %v258, 0
      %v353 = vsel %vm348, %v333, 0
      %355 = vmatprep.subr.mxu0 0.0
      %356 = vmatpush1.xpose.msra.mxu0 0.0
      %357 = vmatprep.subr.mxu0 0.0
      %358 = vmatpush1.xpose.msra.mxu0 0.0
      %359 = vmatprep.subr.mxu0 0.0
      %360 = vmatpush1.xpose.msra.mxu0 0.0
      %361 = vmatprep.subr.mxu0 0.0
      %362 = vmatpush1.xpose.msra.mxu0 0.0
      %363 = vmatprep.subr.mxu0 0.0
      %364 = vmatpush1.xpose.msra.mxu0 0.0
      %365 = vmatprep.subr.mxu0 0.0
      %366 = vmatpush1.xpose.msra.mxu0 0.0
      %367 = vmatprep.subr.mxu0 0.0
      %368 = vmatpush1.xpose.msra.mxu0 0.0
      %369 = vmatprep.subr.mxu0 0.0
      %370 = vmatpush1.xpose.msra.mxu0 0.0
      %371 = vmatprep.subr.mxu0 0.0
      %372 = vmatpush1.xpose.msra.mxu0 0.0
      %373 = vmatprep.subr.mxu0 0.0
      %374 = vmatpush1.xpose.msra.mxu0 0.0
      %375 = vmatprep.subr.mxu0 0.0
      %376 = vmatpush1.xpose.msra.mxu0 0.0
      %377 = vmatprep.subr.mxu0 0.0
      %378 = vmatpush1.xpose.msra.mxu0 0.0
      %379 = vmatprep.subr.mxu0 0.0
      %380 = vmatpush1.xpose.msra.mxu0 0.0
      %381 = vmatprep.subr.mxu0 0.0
      %382 = vmatpush1.xpose.msra.mxu0 0.0
      %383 = vmatprep.subr.mxu0 0.0
      %384 = vmatpush1.xpose.msra.mxu0 0.0
      %385 = vmatprep.subr.mxu0 0.0
      %386 = vmatpush1.xpose.msra.mxu0 %v353
      %387 = vmatprep.subr.mxu0 0.0
      %388 = vmatpush2.xpose.msra.mxu0 0.0
      %389 = vmatprep.subr.mxu0 0.0
      %390 = vmatpush2.xpose.msra.mxu0 0.0
      %391 = vmatprep.subr.mxu0 0.0
      %392 = vmatpush2.xpose.msra.mxu0 0.0
      %393 = vmatprep.subr.mxu0 0.0
      %394 = vmatpush2.xpose.msra.mxu0 0.0
      %395 = vmatprep.subr.mxu0 0.0
      %396 = vmatpush2.xpose.msra.mxu0 0.0
      %397 = vmatprep.subr.mxu0 0.0
      %398 = vmatpush2.xpose.msra.mxu0 0.0
      %399 = vmatprep.subr.mxu0 0.0
      %400 = vmatpush2.xpose.msra.mxu0 0.0
      %401 = vmatprep.subr.mxu0 0.0
      %402 = vmatpush2.xpose.msra.mxu0 0.0
      %403 = vmatprep.subr.mxu0 0.0
      %404 = vmatpush2.xpose.msra.mxu0 0.0
      %405 = vmatprep.subr.mxu0 0.0
      %406 = vmatpush2.xpose.msra.mxu0 0.0
      %407 = vmatprep.subr.mxu0 0.0
      %408 = vmatpush2.xpose.msra.mxu0 0.0
      %409 = vmatprep.subr.mxu0 0.0
      %410 = vmatpush2.xpose.msra.mxu0 0.0
      %411 = vmatprep.subr.mxu0 0.0
      %412 = vmatpush2.xpose.msra.mxu0 0.0
      %413 = vmatprep.subr.mxu0 0.0
      %414 = vmatpush2.xpose.msra.mxu0 0.0
      %415 = vmatprep.subr.mxu0 0.0
      %416 = vmatpush2.xpose.msra.mxu0 0.0
      %417 = vmatprep.subr.mxu0 0.0
      %418 = vmatpush2.xpose.msra.mxu0 0.0
      %419 = vmatprep.mubr.f32.mxu0 0.0
      %420 = vmatmul.mubr.f32.gmra.mxu0 %v350
      %v421 = vpop.f32.mrf.mxu0
      %v422 = vadd.f32 %v347, %v421
      %v423 = vpop.f32.mrf.mxu0
      %424 = vdwg.mxu0
      %v426 = vsel %vm348, %v336, 0
      %428 = vmatprep.subr.mxu0 0.0
      %429 = vmatpush1.xpose.msra.mxu0 0.0
      %430 = vmatprep.subr.mxu0 0.0
      %431 = vmatpush1.xpose.msra.mxu0 0.0
      %432 = vmatprep.subr.mxu0 0.0
      %433 = vmatpush1.xpose.msra.mxu0 0.0
      %434 = vmatprep.subr.mxu0 0.0
      %435 = vmatpush1.xpose.msra.mxu0 0.0
      %436 = vmatprep.subr.mxu0 0.0
      %437 = vmatpush1.xpose.msra.mxu0 0.0
      %438 = vmatprep.subr.mxu0 0.0
      %439 = vmatpush1.xpose.msra.mxu0 0.0
      %440 = vmatprep.subr.mxu0 0.0
      %441 = vmatpush1.xpose.msra.mxu0 0.0
      %442 = vmatprep.subr.mxu0 0.0
      %443 = vmatpush1.xpose.msra.mxu0 0.0
      %444 = vmatprep.subr.mxu0 0.0
      %445 = vmatpush1.xpose.msra.mxu0 0.0
      %446 = vmatprep.subr.mxu0 0.0
      %447 = vmatpush1.xpose.msra.mxu0 0.0
      %448 = vmatprep.subr.mxu0 0.0
      %449 = vmatpush1.xpose.msra.mxu0 0.0
      %450 = vmatprep.subr.mxu0 0.0
      %451 = vmatpush1.xpose.msra.mxu0 0.0
      %452 = vmatprep.subr.mxu0 0.0
      %453 = vmatpush1.xpose.msra.mxu0 0.0
      %454 = vmatprep.subr.mxu0 0.0
      %455 = vmatpush1.xpose.msra.mxu0 0.0
      %456 = vmatprep.subr.mxu0 0.0
      %457 = vmatpush1.xpose.msra.mxu0 0.0
      %458 = vmatprep.subr.mxu0 0.0
      %459 = vmatpush1.xpose.msra.mxu0 %v426
      %460 = vmatprep.subr.mxu0 0.0
      %461 = vmatpush2.xpose.msra.mxu0 0.0
      %462 = vmatprep.subr.mxu0 0.0
      %463 = vmatpush2.xpose.msra.mxu0 0.0
      %464 = vmatprep.subr.mxu0 0.0
      %465 = vmatpush2.xpose.msra.mxu0 0.0
      %466 = vmatprep.subr.mxu0 0.0
      %467 = vmatpush2.xpose.msra.mxu0 0.0
      %468 = vmatprep.subr.mxu0 0.0
      %469 = vmatpush2.xpose.msra.mxu0 0.0
      %470 = vmatprep.subr.mxu0 0.0
      %471 = vmatpush2.xpose.msra.mxu0 0.0
      %472 = vmatprep.subr.mxu0 0.0
      %473 = vmatpush2.xpose.msra.mxu0 0.0
      %474 = vmatprep.subr.mxu0 0.0
      %475 = vmatpush2.xpose.msra.mxu0 0.0
      %476 = vmatprep.subr.mxu0 0.0
      %477 = vmatpush2.xpose.msra.mxu0 0.0
      %478 = vmatprep.subr.mxu0 0.0
      %479 = vmatpush2.xpose.msra.mxu0 0.0
      %480 = vmatprep.subr.mxu0 0.0
      %481 = vmatpush2.xpose.msra.mxu0 0.0
      %482 = vmatprep.subr.mxu0 0.0
      %483 = vmatpush2.xpose.msra.mxu0 0.0
      %484 = vmatprep.subr.mxu0 0.0
      %485 = vmatpush2.xpose.msra.mxu0 0.0
      %486 = vmatprep.subr.mxu0 0.0
      %487 = vmatpush2.xpose.msra.mxu0 0.0
      %488 = vmatprep.subr.mxu0 0.0
      %489 = vmatpush2.xpose.msra.mxu0 0.0
      %490 = vmatprep.subr.mxu0 0.0
      %491 = vmatpush2.xpose.msra.mxu0 0.0
      %492 = vmatprep.mubr.f32.mxu0 0.0
      %493 = vmatmul.mubr.f32.gmra.mxu0 %v350
      %v494 = vpop.f32.mrf.mxu0
      %v495 = vadd.f32 0.0, %v494
      %v496 = vpop.f32.mrf.mxu0
      %497 = vdwg.mxu0
      %v499 = vsel %vm348, %v339, 0
      %501 = vmatprep.subr.mxu0 0.0
      %502 = vmatpush1.xpose.msra.mxu0 0.0
      %503 = vmatprep.subr.mxu0 0.0
      %504 = vmatpush1.xpose.msra.mxu0 0.0
      %505 = vmatprep.subr.mxu0 0.0
      %506 = vmatpush1.xpose.msra.mxu0 0.0
      %507 = vmatprep.subr.mxu0 0.0
      %508 = vmatpush1.xpose.msra.mxu0 0.0
      %509 = vmatprep.subr.mxu0 0.0
      %510 = vmatpush1.xpose.msra.mxu0 0.0
      %511 = vmatprep.subr.mxu0 0.0
      %512 = vmatpush1.xpose.msra.mxu0 0.0
      %513 = vmatprep.subr.mxu0 0.0
      %514 = vmatpush1.xpose.msra.mxu0 0.0
      %515 = vmatprep.subr.mxu0 0.0
      %516 = vmatpush1.xpose.msra.mxu0 0.0
      %517 = vmatprep.subr.mxu0 0.0
      %518 = vmatpush1.xpose.msra.mxu0 0.0
      %519 = vmatprep.subr.mxu0 0.0
      %520 = vmatpush1.xpose.msra.mxu0 0.0
      %521 = vmatprep.subr.mxu0 0.0
      %522 = vmatpush1.xpose.msra.mxu0 0.0
      %523 = vmatprep.subr.mxu0 0.0
      %524 = vmatpush1.xpose.msra.mxu0 0.0
      %525 = vmatprep.subr.mxu0 0.0
      %526 = vmatpush1.xpose.msra.mxu0 0.0
      %527 = vmatprep.subr.mxu0 0.0
      %528 = vmatpush1.xpose.msra.mxu0 0.0
      %529 = vmatprep.subr.mxu0 0.0
      %530 = vmatpush1.xpose.msra.mxu0 0.0
      %531 = vmatprep.subr.mxu0 0.0
      %532 = vmatpush1.xpose.msra.mxu0 %v499
      %533 = vmatprep.subr.mxu0 0.0
      %534 = vmatpush2.xpose.msra.mxu0 0.0
      %535 = vmatprep.subr.mxu0 0.0
      %536 = vmatpush2.xpose.msra.mxu0 0.0
      %537 = vmatprep.subr.mxu0 0.0
      %538 = vmatpush2.xpose.msra.mxu0 0.0
      %539 = vmatprep.subr.mxu0 0.0
      %540 = vmatpush2.xpose.msra.mxu0 0.0
      %541 = vmatprep.subr.mxu0 0.0
      %542 = vmatpush2.xpose.msra.mxu0 0.0
      %543 = vmatprep.subr.mxu0 0.0
      %544 = vmatpush2.xpose.msra.mxu0 0.0
      %545 = vmatprep.subr.mxu0 0.0
      %546 = vmatpush2.xpose.msra.mxu0 0.0
      %547 = vmatprep.subr.mxu0 0.0
      %548 = vmatpush2.xpose.msra.mxu0 0.0
      %549 = vmatprep.subr.mxu0 0.0
      %550 = vmatpush2.xpose.msra.mxu0 0.0
      %551 = vmatprep.subr.mxu0 0.0
      %552 = vmatpush2.xpose.msra.mxu0 0.0
      %553 = vmatprep.subr.mxu0 0.0
      %554 = vmatpush2.xpose.msra.mxu0 0.0
      %555 = vmatprep.subr.mxu0 0.0
      %556 = vmatpush2.xpose.msra.mxu0 0.0
      %557 = vmatprep.subr.mxu0 0.0
      %558 = vmatpush2.xpose.msra.mxu0 0.0
      %559 = vmatprep.subr.mxu0 0.0
      %560 = vmatpush2.xpose.msra.mxu0 0.0
      %561 = vmatprep.subr.mxu0 0.0
      %562 = vmatpush2.xpose.msra.mxu0 0.0
      %563 = vmatprep.subr.mxu0 0.0
      %564 = vmatpush2.xpose.msra.mxu0 0.0
      %565 = vmatprep.mubr.f32.mxu0 0.0
      %566 = vmatmul.mubr.f32.gmra.mxu0 %v350
      %v567 = vpop.f32.mrf.mxu0
      %v568 = vadd.f32 0.0, %v567
      %v569 = vpop.f32.mrf.mxu0
      %570 = vdwg.mxu0
      %vm571 = vcmask 64512
      %v573 = vsel %vm571, %v422, 0
      %v576 = vsel %vm571, %v495, 0
      %578 = vmatprep.subr.mxu0 0.0
      %579 = vmatpush1.xpose.msra.mxu0 0.0
      %580 = vmatprep.subr.mxu0 0.0
      %581 = vmatpush1.xpose.msra.mxu0 0.0
      %582 = vmatprep.subr.mxu0 0.0
      %583 = vmatpush1.xpose.msra.mxu0 0.0
      %584 = vmatprep.subr.mxu0 0.0
      %585 = vmatpush1.xpose.msra.mxu0 0.0
      %586 = vmatprep.subr.mxu0 0.0
      %587 = vmatpush1.xpose.msra.mxu0 0.0
      %588 = vmatprep.subr.mxu0 0.0
      %589 = vmatpush1.xpose.msra.mxu0 0.0
      %590 = vmatprep.subr.mxu0 0.0
      %591 = vmatpush1.xpose.msra.mxu0 0.0
      %592 = vmatprep.subr.mxu0 0.0
      %593 = vmatpush1.xpose.msra.mxu0 0.0
      %594 = vmatprep.subr.mxu0 0.0
      %595 = vmatpush1.xpose.msra.mxu0 0.0
      %596 = vmatprep.subr.mxu0 0.0
      %597 = vmatpush1.xpose.msra.mxu0 0.0
      %598 = vmatprep.subr.mxu0 0.0
      %599 = vmatpush1.xpose.msra.mxu0 0.0
      %600 = vmatprep.subr.mxu0 0.0
      %601 = vmatpush1.xpose.msra.mxu0 0.0
      %602 = vmatprep.subr.mxu0 0.0
      %603 = vmatpush1.xpose.msra.mxu0 0.0
      %604 = vmatprep.subr.mxu0 0.0
      %605 = vmatpush1.xpose.msra.mxu0 0.0
      %606 = vmatprep.subr.mxu0 0.0
      %607 = vmatpush1.xpose.msra.mxu0 0.0
      %608 = vmatprep.subr.mxu0 0.0
      %609 = vmatpush1.xpose.msra.mxu0 %v576
      %610 = vmatprep.subr.mxu0 0.0
      %611 = vmatpush2.xpose.msra.mxu0 0.0
      %612 = vmatprep.subr.mxu0 0.0
      %613 = vmatpush2.xpose.msra.mxu0 0.0
      %614 = vmatprep.subr.mxu0 0.0
      %615 = vmatpush2.xpose.msra.mxu0 0.0
      %616 = vmatprep.subr.mxu0 0.0
      %617 = vmatpush2.xpose.msra.mxu0 0.0
      %618 = vmatprep.subr.mxu0 0.0
      %619 = vmatpush2.xpose.msra.mxu0 0.0
      %620 = vmatprep.subr.mxu0 0.0
      %621 = vmatpush2.xpose.msra.mxu0 0.0
      %622 = vmatprep.subr.mxu0 0.0
      %623 = vmatpush2.xpose.msra.mxu0 0.0
      %624 = vmatprep.subr.mxu0 0.0
      %625 = vmatpush2.xpose.msra.mxu0 0.0
      %626 = vmatprep.subr.mxu0 0.0
      %627 = vmatpush2.xpose.msra.mxu0 0.0
      %628 = vmatprep.subr.mxu0 0.0
      %629 = vmatpush2.xpose.msra.mxu0 0.0
      %630 = vmatprep.subr.mxu0 0.0
      %631 = vmatpush2.xpose.msra.mxu0 0.0
      %632 = vmatprep.subr.mxu0 0.0
      %633 = vmatpush2.xpose.msra.mxu0 0.0
      %634 = vmatprep.subr.mxu0 0.0
      %635 = vmatpush2.xpose.msra.mxu0 0.0
      %636 = vmatprep.subr.mxu0 0.0
      %637 = vmatpush2.xpose.msra.mxu0 0.0
      %638 = vmatprep.subr.mxu0 0.0
      %639 = vmatpush2.xpose.msra.mxu0 0.0
      %640 = vmatprep.subr.mxu0 0.0
      %641 = vmatpush2.xpose.msra.mxu0 0.0
      %642 = vmatprep.mubr.f32.mxu0 0.0
      %643 = vmatmul.mubr.f32.gmra.mxu0 %v573
      %v644 = vpop.f32.mrf.mxu0
      %v645 = vadd.f32 0.0, %v644
      %v646 = vpop.f32.mrf.mxu0
      %647 = vdwg.mxu0
      %v648 = vsel %vm571, %v645, -inf
      %649 = vmax.xlane.f32.xlu0 %v648
      %v650 = vpop.xlane.xlu0 %649
      %v651 = vsub.f32 %v645, %v650
      %v652 = vmul.f32 %v651, 1.442695
      %v653 = vpow.pop %v652
      %v654 = vsel %vm571, %v653, 0.0
      %655 = vadd.xlane.f32.xlu0 %v654
      %v656 = vpop.xlane.xlu0 %655
      %v657 = vrcp.pop %v656
      %v658 = vmul.f32 %v653, %v657
      %v660 = vsel %vm571, %v658, 0
      %662 = vmatprep.subr.mxu0 0.0
      %663 = vmatpush1.msra.mxu0 0.0
      %664 = vmatprep.subr.mxu0 0.0
      %665 = vmatpush1.msra.mxu0 0.0
      %666 = vmatprep.subr.mxu0 0.0
      %667 = vmatpush1.msra.mxu0 0.0
      %668 = vmatprep.subr.mxu0 0.0
      %669 = vmatpush1.msra.mxu0 0.0
      %670 = vmatprep.subr.mxu0 0.0
      %671 = vmatpush1.msra.mxu0 0.0
      %672 = vmatprep.subr.mxu0 0.0
      %673 = vmatpush1.msra.mxu0 0.0
      %674 = vmatprep.subr.mxu0 0.0
      %675 = vmatpush1.msra.mxu0 0.0
      %676 = vmatprep.subr.mxu0 0.0
      %677 = vmatpush1.msra.mxu0 0.0
      %678 = vmatprep.subr.mxu0 0.0
      %679 = vmatpush1.msra.mxu0 0.0
      %680 = vmatprep.subr.mxu0 0.0
      %681 = vmatpush1.msra.mxu0 0.0
      %682 = vmatprep.subr.mxu0 0.0
      %683 = vmatpush1.msra.mxu0 0.0
      %684 = vmatprep.subr.mxu0 0.0
      %685 = vmatpush1.msra.mxu0 0.0
      %686 = vmatprep.subr.mxu0 0.0
      %687 = vmatpush1.msra.mxu0 0.0
      %688 = vmatprep.subr.mxu0 0.0
      %689 = vmatpush1.msra.mxu0 0.0
      %690 = vmatprep.subr.mxu0 0.0
      %691 = vmatpush1.msra.mxu0 0.0
      %692 = vmatprep.subr.mxu0 0.0
      %693 = vmatpush1.msra.mxu0 %v568
      %694 = vmatprep.subr.mxu0 0.0
      %695 = vmatpush2.msra.mxu0 0.0
      %696 = vmatprep.subr.mxu0 0.0
      %697 = vmatpush2.msra.mxu0 0.0
      %698 = vmatprep.subr.mxu0 0.0
      %699 = vmatpush2.msra.mxu0 0.0
      %700 = vmatprep.subr.mxu0 0.0
      %701 = vmatpush2.msra.mxu0 0.0
      %702 = vmatprep.subr.mxu0 0.0
      %703 = vmatpush2.msra.mxu0 0.0
      %704 = vmatprep.subr.mxu0 0.0
      %705 = vmatpush2.msra.mxu0 0.0
      %706 = vmatprep.subr.mxu0 0.0
      %707 = vmatpush2.msra.mxu0 0.0
      %708 = vmatprep.subr.mxu0 0.0
      %709 = vmatpush2.msra.mxu0 0.0
      %710 = vmatprep.subr.mxu0 0.0
      %711 = vmatpush2.msra.mxu0 0.0
      %712 = vmatprep.subr.mxu0 0.0
      %713 = vmatpush2.msra.mxu0 0.0
      %714 = vmatprep.subr.mxu0 0.0
      %715 = vmatpush2.msra.mxu0 0.0
      %716 = vmatprep.subr.mxu0 0.0
      %717 = vmatpush2.msra.mxu0 0.0
      %718 = vmatprep.subr.mxu0 0.0
      %719 = vmatpush2.msra.mxu0 0.0
      %720 = vmatprep.subr.mxu0 0.0
      %721 = vmatpush2.msra.mxu0 0.0
      %722 = vmatprep.subr.mxu0 0.0
      %723 = vmatpush2.msra.mxu0 0.0
      %724 = vmatprep.subr.mxu0 0.0
      %725 = vmatpush2.msra.mxu0 0.0
      %726 = vmatprep.mubr.f32.mxu0 0.0
      %727 = vmatmul.mubr.f32.gmra.mxu0 %v660
      %v728 = vpop.f32.mrf.mxu0
      %v729 = vadd.f32 0.0, %v728
      %v730 = vpop.f32.mrf.mxu0
      %731 = vdwg.mxu0
      %s732 = scalar_lea.vmem %s2, 8
      %v733 = vld [vmem:[%s732] sm:$0xff]
      %s734 = sadd.s32 8, 32
      %s735 = scalar_lea.vmem %s2, %s734
      %v736 = vld [vmem:[%s735] sm:$0xff]
      %s737 = sadd.s32 8, 64
      %s738 = scalar_lea.vmem %s2, %s737
      %v739 = vld [vmem:[%s738] sm:$0xff]
      %s740 = sadd.s32 8, 96
      %s741 = scalar_lea.vmem %s2, %s740
      %v742 = vld [vmem:[%s741] sm:$0xff]
      %v743 = vld [vmem:[%s3 + $0x1] sm:$0x1]
      %v744 = vlaneseq
      %v745 = vshrl.u32 %v744, 7
      %v746 = vsub.s32 0, %v745
      %v747 = vrot.slane %v743, %v746
      %v749 = vsel %vm348, %v733, 0
      %751 = vmatprep.subr.mxu0 0.0
      %752 = vmatpush1.xpose.msra.mxu0 0.0
      %753 = vmatprep.subr.mxu0 0.0
      %754 = vmatpush1.xpose.msra.mxu0 0.0
      %755 = vmatprep.subr.mxu0 0.0
      %756 = vmatpush1.xpose.msra.mxu0 0.0
      %757 = vmatprep.subr.mxu0 0.0
      %758 = vmatpush1.xpose.msra.mxu0 0.0
      %759 = vmatprep.subr.mxu0 0.0
      %760 = vmatpush1.xpose.msra.mxu0 0.0
      %761 = vmatprep.subr.mxu0 0.0
      %762 = vmatpush1.xpose.msra.mxu0 0.0
      %763 = vmatprep.subr.mxu0 0.0
      %764 = vmatpush1.xpose.msra.mxu0 0.0
      %765 = vmatprep.subr.mxu0 0.0
      %766 = vmatpush1.xpose.msra.mxu0 0.0
      %767 = vmatprep.subr.mxu0 0.0
      %768 = vmatpush1.xpose.msra.mxu0 0.0
      %769 = vmatprep.subr.mxu0 0.0
      %770 = vmatpush1.xpose.msra.mxu0 0.0
      %771 = vmatprep.subr.mxu0 0.0
      %772 = vmatpush1.xpose.msra.mxu0 0.0
      %773 = vmatprep.subr.mxu0 0.0
      %774 = vmatpush1.xpose.msra.mxu0 0.0
      %775 = vmatprep.subr.mxu0 0.0
      %776 = vmatpush1.xpose.msra.mxu0 0.0
      %777 = vmatprep.subr.mxu0 0.0
      %778 = vmatpush1.xpose.msra.mxu0 0.0
      %779 = vmatprep.subr.mxu0 0.0
      %780 = vmatpush1.xpose.msra.mxu0 0.0
      %781 = vmatprep.subr.mxu0 0.0
      %782 = vmatpush1.xpose.msra.mxu0 %v749
      %783 = vmatprep.subr.mxu0 0.0
      %784 = vmatpush2.xpose.msra.mxu0 0.0
      %785 = vmatprep.subr.mxu0 0.0
      %786 = vmatpush2.xpose.msra.mxu0 0.0
      %787 = vmatprep.subr.mxu0 0.0
      %788 = vmatpush2.xpose.msra.mxu0 0.0
      %789 = vmatprep.subr.mxu0 0.0
      %790 = vmatpush2.xpose.msra.mxu0 0.0
      %791 = vmatprep.subr.mxu0 0.0
      %792 = vmatpush2.xpose.msra.mxu0 0.0
      %793 = vmatprep.subr.mxu0 0.0
      %794 = vmatpush2.xpose.msra.mxu0 0.0
      %795 = vmatprep.subr.mxu0 0.0
      %796 = vmatpush2.xpose.msra.mxu0 0.0
      %797 = vmatprep.subr.mxu0 0.0
      %798 = vmatpush2.xpose.msra.mxu0 0.0
      %799 = vmatprep.subr.mxu0 0.0
      %800 = vmatpush2.xpose.msra.mxu0 0.0
      %801 = vmatprep.subr.mxu0 0.0
      %802 = vmatpush2.xpose.msra.mxu0 0.0
      %803 = vmatprep.subr.mxu0 0.0
      %804 = vmatpush2.xpose.msra.mxu0 0.0
      %805 = vmatprep.subr.mxu0 0.0
      %806 = vmatpush2.xpose.msra.mxu0 0.0
      %807 = vmatprep.subr.mxu0 0.0
      %808 = vmatpush2.xpose.msra.mxu0 0.0
      %809 = vmatprep.subr.mxu0 0.0
      %810 = vmatpush2.xpose.msra.mxu0 0.0
      %811 = vmatprep.subr.mxu0 0.0
      %812 = vmatpush2.xpose.msra.mxu0 0.0
      %813 = vmatprep.subr.mxu0 0.0
      %814 = vmatpush2.xpose.msra.mxu0 0.0
      %815 = vmatprep.mubr.f32.mxu0 0.0
      %816 = vmatmul.mubr.f32.gmra.mxu0 %v350
      %v817 = vpop.f32.mrf.mxu0
      %v818 = vadd.f32 %v747, %v817
      %v819 = vpop.f32.mrf.mxu0
      %820 = vdwg.mxu0
      %v822 = vsel %vm348, %v736, 0
      %824 = vmatprep.subr.mxu0 0.0
      %825 = vmatpush1.xpose.msra.mxu0 0.0
      %826 = vmatprep.subr.mxu0 0.0
      %827 = vmatpush1.xpose.msra.mxu0 0.0
      %828 = vmatprep.subr.mxu0 0.0
      %829 = vmatpush1.xpose.msra.mxu0 0.0
      %830 = vmatprep.subr.mxu0 0.0
      %831 = vmatpush1.xpose.msra.mxu0 0.0
      %832 = vmatprep.subr.mxu0 0.0
      %833 = vmatpush1.xpose.msra.mxu0 0.0
      %834 = vmatprep.subr.mxu0 0.0
      %835 = vmatpush1.xpose.msra.mxu0 0.0
      %836 = vmatprep.subr.mxu0 0.0
      %837 = vmatpush1.xpose.msra.mxu0 0.0
      %838 = vmatprep.subr.mxu0 0.0
      %839 = vmatpush1.xpose.msra.mxu0 0.0
      %840 = vmatprep.subr.mxu0 0.0
      %841 = vmatpush1.xpose.msra.mxu0 0.0
      %842 = vmatprep.subr.mxu0 0.0
      %843 = vmatpush1.xpose.msra.mxu0 0.0
      %844 = vmatprep.subr.mxu0 0.0
      %845 = vmatpush1.xpose.msra.mxu0 0.0
      %846 = vmatprep.subr.mxu0 0.0
      %847 = vmatpush1.xpose.msra.mxu0 0.0
      %848 = vmatprep.subr.mxu0 0.0
      %849 = vmatpush1.xpose.msra.mxu0 0.0
      %850 = vmatprep.subr.mxu0 0.0
      %851 = vmatpush1.xpose.msra.mxu0 0.0
      %852 = vmatprep.subr.mxu0 0.0
      %853 = vmatpush1.xpose.msra.mxu0 0.0
      %854 = vmatprep.subr.mxu0 0.0
      %855 = vmatpush1.xpose.msra.mxu0 %v822
      %856 = vmatprep.subr.mxu0 0.0
      %857 = vmatpush2.xpose.msra.mxu0 0.0
      %858 = vmatprep.subr.mxu0 0.0
      %859 = vmatpush2.xpose.msra.mxu0 0.0
      %860 = vmatprep.subr.mxu0 0.0
      %861 = vmatpush2.xpose.msra.mxu0 0.0
      %862 = vmatprep.subr.mxu0 0.0
      %863 = vmatpush2.xpose.msra.mxu0 0.0
      %864 = vmatprep.subr.mxu0 0.0
      %865 = vmatpush2.xpose.msra.mxu0 0.0
      %866 = vmatprep.subr.mxu0 0.0
      %867 = vmatpush2.xpose.msra.mxu0 0.0
      %868 = vmatprep.subr.mxu0 0.0
      %869 = vmatpush2.xpose.msra.mxu0 0.0
      %870 = vmatprep.subr.mxu0 0.0
      %871 = vmatpush2.xpose.msra.mxu0 0.0
      %872 = vmatprep.subr.mxu0 0.0
      %873 = vmatpush2.xpose.msra.mxu0 0.0
      %874 = vmatprep.subr.mxu0 0.0
      %875 = vmatpush2.xpose.msra.mxu0 0.0
      %876 = vmatprep.subr.mxu0 0.0
      %877 = vmatpush2.xpose.msra.mxu0 0.0
      %878 = vmatprep.subr.mxu0 0.0
      %879 = vmatpush2.xpose.msra.mxu0 0.0
      %880 = vmatprep.subr.mxu0 0.0
      %881 = vmatpush2.xpose.msra.mxu0 0.0
      %882 = vmatprep.subr.mxu0 0.0
      %883 = vmatpush2.xpose.msra.mxu0 0.0
      %884 = vmatprep.subr.mxu0 0.0
      %885 = vmatpush2.xpose.msra.mxu0 0.0
      %886 = vmatprep.subr.mxu0 0.0
      %887 = vmatpush2.xpose.msra.mxu0 0.0
      %888 = vmatprep.mubr.f32.mxu0 0.0
      %889 = vmatmul.mubr.f32.gmra.mxu0 %v350
      %v890 = vpop.f32.mrf.mxu0
      %v891 = vadd.f32 0.0, %v890
      %v892 = vpop.f32.mrf.mxu0
      %893 = vdwg.mxu0
      %v895 = vsel %vm348, %v739, 0
      %897 = vmatprep.subr.mxu0 0.0
      %898 = vmatpush1.xpose.msra.mxu0 0.0
      %899 = vmatprep.subr.mxu0 0.0
      %900 = vmatpush1.xpose.msra.mxu0 0.0
      %901 = vmatprep.subr.mxu0 0.0
      %902 = vmatpush1.xpose.msra.mxu0 0.0
      %903 = vmatprep.subr.mxu0 0.0
      %904 = vmatpush1.xpose.msra.mxu0 0.0
      %905 = vmatprep.subr.mxu0 0.0
      %906 = vmatpush1.xpose.msra.mxu0 0.0
      %907 = vmatprep.subr.mxu0 0.0
      %908 = vmatpush1.xpose.msra.mxu0 0.0
      %909 = vmatprep.subr.mxu0 0.0
      %910 = vmatpush1.xpose.msra.mxu0 0.0
      %911 = vmatprep.subr.mxu0 0.0
      %912 = vmatpush1.xpose.msra.mxu0 0.0
      %913 = vmatprep.subr.mxu0 0.0
      %914 = vmatpush1.xpose.msra.mxu0 0.0
      %915 = vmatprep.subr.mxu0 0.0
      %916 = vmatpush1.xpose.msra.mxu0 0.0
      %917 = vmatprep.subr.mxu0 0.0
      %918 = vmatpush1.xpose.msra.mxu0 0.0
      %919 = vmatprep.subr.mxu0 0.0
      %920 = vmatpush1.xpose.msra.mxu0 0.0
      %921 = vmatprep.subr.mxu0 0.0
      %922 = vmatpush1.xpose.msra.mxu0 0.0
      %923 = vmatprep.subr.mxu0 0.0
      %924 = vmatpush1.xpose.msra.mxu0 0.0
      %925 = vmatprep.subr.mxu0 0.0
      %926 = vmatpush1.xpose.msra.mxu0 0.0
      %927 = vmatprep.subr.mxu0 0.0
      %928 = vmatpush1.xpose.msra.mxu0 %v895
      %929 = vmatprep.subr.mxu0 0.0
      %930 = vmatpush2.xpose.msra.mxu0 0.0
      %931 = vmatprep.subr.mxu0 0.0
      %932 = vmatpush2.xpose.msra.mxu0 0.0
      %933 = vmatprep.subr.mxu0 0.0
      %934 = vmatpush2.xpose.msra.mxu0 0.0
      %935 = vmatprep.subr.mxu0 0.0
      %936 = vmatpush2.xpose.msra.mxu0 0.0
      %937 = vmatprep.subr.mxu0 0.0
      %938 = vmatpush2.xpose.msra.mxu0 0.0
      %939 = vmatprep.subr.mxu0 0.0
      %940 = vmatpush2.xpose.msra.mxu0 0.0
      %941 = vmatprep.subr.mxu0 0.0
      %942 = vmatpush2.xpose.msra.mxu0 0.0
      %943 = vmatprep.subr.mxu0 0.0
      %944 = vmatpush2.xpose.msra.mxu0 0.0
      %945 = vmatprep.subr.mxu0 0.0
      %946 = vmatpush2.xpose.msra.mxu0 0.0
      %947 = vmatprep.subr.mxu0 0.0
      %948 = vmatpush2.xpose.msra.mxu0 0.0
      %949 = vmatprep.subr.mxu0 0.0
      %950 = vmatpush2.xpose.msra.mxu0 0.0
      %951 = vmatprep.subr.mxu0 0.0
      %952 = vmatpush2.xpose.msra.mxu0 0.0
      %953 = vmatprep.subr.mxu0 0.0
      %954 = vmatpush2.xpose.msra.mxu0 0.0
      %955 = vmatprep.subr.mxu0 0.0
      %956 = vmatpush2.xpose.msra.mxu0 0.0
      %957 = vmatprep.subr.mxu0 0.0
      %958 = vmatpush2.xpose.msra.mxu0 0.0
      %959 = vmatprep.subr.mxu0 0.0
      %960 = vmatpush2.xpose.msra.mxu0 0.0
      %961 = vmatprep.mubr.f32.mxu0 0.0
      %962 = vmatmul.mubr.f32.gmra.mxu0 %v350
      %v963 = vpop.f32.mrf.mxu0
      %v964 = vadd.f32 0.0, %v963
      %v965 = vpop.f32.mrf.mxu0
      %966 = vdwg.mxu0
      %v968 = vsel %vm571, %v818, 0
      %v971 = vsel %vm571, %v891, 0
      %973 = vmatprep.subr.mxu0 0.0
      %974 = vmatpush1.xpose.msra.mxu0 0.0
      %975 = vmatprep.subr.mxu0 0.0
      %976 = vmatpush1.xpose.msra.mxu0 0.0
      %977 = vmatprep.subr.mxu0 0.0
      %978 = vmatpush1.xpose.msra.mxu0 0.0
      %979 = vmatprep.subr.mxu0 0.0
      %980 = vmatpush1.xpose.msra.mxu0 0.0
      %981 = vmatprep.subr.mxu0 0.0
      %982 = vmatpush1.xpose.msra.mxu0 0.0
      %983 = vmatprep.subr.mxu0 0.0
      %984 = vmatpush1.xpose.msra.mxu0 0.0
      %985 = vmatprep.subr.mxu0 0.0
      %986 = vmatpush1.xpose.msra.mxu0 0.0
      %987 = vmatprep.subr.mxu0 0.0
      %988 = vmatpush1.xpose.msra.mxu0 0.0
      %989 = vmatprep.subr.mxu0 0.0
      %990 = vmatpush1.xpose.msra.mxu0 0.0
      %991 = vmatprep.subr.mxu0 0.0
      %992 = vmatpush1.xpose.msra.mxu0 0.0
      %993 = vmatprep.subr.mxu0 0.0
      %994 = vmatpush1.xpose.msra.mxu0 0.0
      %995 = vmatprep.subr.mxu0 0.0
      %996 = vmatpush1.xpose.msra.mxu0 0.0
      %997 = vmatprep.subr.mxu0 0.0
      %998 = vmatpush1.xpose.msra.mxu0 0.0
      %999 = vmatprep.subr.mxu0 0.0
      %1000 = vmatpush1.xpose.msra.mxu0 0.0
      %1001 = vmatprep.subr.mxu0 0.0
      %1002 = vmatpush1.xpose.msra.mxu0 0.0
      %1003 = vmatprep.subr.mxu0 0.0
      %1004 = vmatpush1.xpose.msra.mxu0 %v971
      %1005 = vmatprep.subr.mxu0 0.0
      %1006 = vmatpush2.xpose.msra.mxu0 0.0
      %1007 = vmatprep.subr.mxu0 0.0
      %1008 = vmatpush2.xpose.msra.mxu0 0.0
      %1009 = vmatprep.subr.mxu0 0.0
      %1010 = vmatpush2.xpose.msra.mxu0 0.0
      %1011 = vmatprep.subr.mxu0 0.0
      %1012 = vmatpush2.xpose.msra.mxu0 0.0
      %1013 = vmatprep.subr.mxu0 0.0
      %1014 = vmatpush2.xpose.msra.mxu0 0.0
      %1015 = vmatprep.subr.mxu0 0.0
      %1016 = vmatpush2.xpose.msra.mxu0 0.0
      %1017 = vmatprep.subr.mxu0 0.0
      %1018 = vmatpush2.xpose.msra.mxu0 0.0
      %1019 = vmatprep.subr.mxu0 0.0
      %1020 = vmatpush2.xpose.msra.mxu0 0.0
      %1021 = vmatprep.subr.mxu0 0.0
      %1022 = vmatpush2.xpose.msra.mxu0 0.0
      %1023 = vmatprep.subr.mxu0 0.0
      %1024 = vmatpush2.xpose.msra.mxu0 0.0
      %1025 = vmatprep.subr.mxu0 0.0
      %1026 = vmatpush2.xpose.msra.mxu0 0.0
      %1027 = vmatprep.subr.mxu0 0.0
      %1028 = vmatpush2.xpose.msra.mxu0 0.0
      %1029 = vmatprep.subr.mxu0 0.0
      %1030 = vmatpush2.xpose.msra.mxu0 0.0
      %1031 = vmatprep.subr.mxu0 0.0
      %1032 = vmatpush2.xpose.msra.mxu0 0.0
      %1033 = vmatprep.subr.mxu0 0.0
      %1034 = vmatpush2.xpose.msra.mxu0 0.0
      %1035 = vmatprep.subr.mxu0 0.0
      %1036 = vmatpush2.xpose.msra.mxu0 0.0
      %1037 = vmatprep.mubr.f32.mxu0 0.0
      %1038 = vmatmul.mubr.f32.gmra.mxu0 %v968
      %v1039 = vpop.f32.mrf.mxu0
      %v1040 = vadd.f32 0.0, %v1039
      %v1041 = vpop.f32.mrf.mxu0
      %1042 = vdwg.mxu0
      %v1043 = vsel %vm571, %v1040, -inf
      %1044 = vmax.xlane.f32.xlu0 %v1043
      %v1045 = vpop.xlane.xlu0 %1044
      %v1046 = vsub.f32 %v1040, %v1045
      %v1047 = vmul.f32 %v1046, 1.442695
      %v1048 = vpow.pop %v1047
      %v1049 = vsel %vm571, %v1048, 0.0
      %1050 = vadd.xlane.f32.xlu0 %v1049
      %v1051 = vpop.xlane.xlu0 %1050
      %v1052 = vrcp.pop %v1051
      %v1053 = vmul.f32 %v1048, %v1052
      %v1055 = vsel %vm571, %v1053, 0
      %1057 = vmatprep.subr.mxu0 0.0
      %1058 = vmatpush1.msra.mxu0 0.0
      %1059 = vmatprep.subr.mxu0 0.0
      %1060 = vmatpush1.msra.mxu0 0.0
      %1061 = vmatprep.subr.mxu0 0.0
      %1062 = vmatpush1.msra.mxu0 0.0
      %1063 = vmatprep.subr.mxu0 0.0
      %1064 = vmatpush1.msra.mxu0 0.0
      %1065 = vmatprep.subr.mxu0 0.0
      %1066 = vmatpush1.msra.mxu0 0.0
      %1067 = vmatprep.subr.mxu0 0.0
      %1068 = vmatpush1.msra.mxu0 0.0
      %1069 = vmatprep.subr.mxu0 0.0
      %1070 = vmatpush1.msra.mxu0 0.0
      %1071 = vmatprep.subr.mxu0 0.0
      %1072 = vmatpush1.msra.mxu0 0.0
      %1073 = vmatprep.subr.mxu0 0.0
      %1074 = vmatpush1.msra.mxu0 0.0
      %1075 = vmatprep.subr.mxu0 0.0
      %1076 = vmatpush1.msra.mxu0 0.0
      %1077 = vmatprep.subr.mxu0 0.0
      %1078 = vmatpush1.msra.mxu0 0.0
      %1079 = vmatprep.subr.mxu0 0.0
      %1080 = vmatpush1.msra.mxu0 0.0
      %1081 = vmatprep.subr.mxu0 0.0
      %1082 = vmatpush1.msra.mxu0 0.0
      %1083 = vmatprep.subr.mxu0 0.0
      %1084 = vmatpush1.msra.mxu0 0.0
      %1085 = vmatprep.subr.mxu0 0.0
      %1086 = vmatpush1.msra.mxu0 0.0
      %1087 = vmatprep.subr.mxu0 0.0
      %1088 = vmatpush1.msra.mxu0 %v964
      %1089 = vmatprep.subr.mxu0 0.0
      %1090 = vmatpush2.msra.mxu0 0.0
      %1091 = vmatprep.subr.mxu0 0.0
      %1092 = vmatpush2.msra.mxu0 0.0
      %1093 = vmatprep.subr.mxu0 0.0
      %1094 = vmatpush2.msra.mxu0 0.0
      %1095 = vmatprep.subr.mxu0 0.0
      %1096 = vmatpush2.msra.mxu0 0.0
      %1097 = vmatprep.subr.mxu0 0.0
      %1098 = vmatpush2.msra.mxu0 0.0
      %1099 = vmatprep.subr.mxu0 0.0
      %1100 = vmatpush2.msra.mxu0 0.0
      %1101 = vmatprep.subr.mxu0 0.0
      %1102 = vmatpush2.msra.mxu0 0.0
      %1103 = vmatprep.subr.mxu0 0.0
      %1104 = vmatpush2.msra.mxu0 0.0
      %1105 = vmatprep.subr.mxu0 0.0
      %1106 = vmatpush2.msra.mxu0 0.0
      %1107 = vmatprep.subr.mxu0 0.0
      %1108 = vmatpush2.msra.mxu0 0.0
      %1109 = vmatprep.subr.mxu0 0.0
      %1110 = vmatpush2.msra.mxu0 0.0
      %1111 = vmatprep.subr.mxu0 0.0
      %1112 = vmatpush2.msra.mxu0 0.0
      %1113 = vmatprep.subr.mxu0 0.0
      %1114 = vmatpush2.msra.mxu0 0.0
      %1115 = vmatprep.subr.mxu0 0.0
      %1116 = vmatpush2.msra.mxu0 0.0
      %1117 = vmatprep.subr.mxu0 0.0
      %1118 = vmatpush2.msra.mxu0 0.0
      %1119 = vmatprep.subr.mxu0 0.0
      %1120 = vmatpush2.msra.mxu0 0.0
      %1121 = vmatprep.mubr.f32.mxu0 0.0
      %1122 = vmatmul.mubr.f32.gmra.mxu0 %v1055
      %v1123 = vpop.f32.mrf.mxu0
      %v1124 = vadd.f32 0.0, %v1123
      %v1125 = vpop.f32.mrf.mxu0
      %1126 = vdwg.mxu0
      %v1128 = vsel %vm571, %v1124, 0
      %1130 = vmatprep.subr.mxu0 0.0
      %1131 = vmatpush1.msra.mxu0 0.0
      %1132 = vmatprep.subr.mxu0 0.0
      %1133 = vmatpush1.msra.mxu0 0.0
      %1134 = vmatprep.subr.mxu0 0.0
      %1135 = vmatpush1.msra.mxu0 0.0
      %1136 = vmatprep.subr.mxu0 0.0
      %1137 = vmatpush1.msra.mxu0 0.0
      %1138 = vmatprep.subr.mxu0 0.0
      %1139 = vmatpush1.msra.mxu0 0.0
      %1140 = vmatprep.subr.mxu0 0.0
      %1141 = vmatpush1.msra.mxu0 0.0
      %1142 = vmatprep.subr.mxu0 0.0
      %1143 = vmatpush1.msra.mxu0 0.0
      %1144 = vmatprep.subr.mxu0 0.0
      %1145 = vmatpush1.msra.mxu0 0.0
      %1146 = vmatprep.subr.mxu0 0.0
      %1147 = vmatpush1.msra.mxu0 0.0
      %1148 = vmatprep.subr.mxu0 0.0
      %1149 = vmatpush1.msra.mxu0 0.0
      %1150 = vmatprep.subr.mxu0 0.0
      %1151 = vmatpush1.msra.mxu0 0.0
      %1152 = vmatprep.subr.mxu0 0.0
      %1153 = vmatpush1.msra.mxu0 0.0
      %1154 = vmatprep.subr.mxu0 0.0
      %1155 = vmatpush1.msra.mxu0 0.0
      %1156 = vmatprep.subr.mxu0 0.0
      %1157 = vmatpush1.msra.mxu0 0.0
      %1158 = vmatprep.subr.mxu0 0.0
      %1159 = vmatpush1.msra.mxu0 0.0
      %1160 = vmatprep.subr.mxu0 0.0
      %1161 = vmatpush1.msra.mxu0 %v742
      %1162 = vmatprep.subr.mxu0 0.0
      %1163 = vmatpush2.msra.mxu0 0.0
      %1164 = vmatprep.subr.mxu0 0.0
      %1165 = vmatpush2.msra.mxu0 0.0
      %1166 = vmatprep.subr.mxu0 0.0
      %1167 = vmatpush2.msra.mxu0 0.0
      %1168 = vmatprep.subr.mxu0 0.0
      %1169 = vmatpush2.msra.mxu0 0.0
      %1170 = vmatprep.subr.mxu0 0.0
      %1171 = vmatpush2.msra.mxu0 0.0
      %1172 = vmatprep.subr.mxu0 0.0
      %1173 = vmatpush2.msra.mxu0 0.0
      %1174 = vmatprep.subr.mxu0 0.0
      %1175 = vmatpush2.msra.mxu0 0.0
      %1176 = vmatprep.subr.mxu0 0.0
      %1177 = vmatpush2.msra.mxu0 0.0
      %1178 = vmatprep.subr.mxu0 0.0
      %1179 = vmatpush2.msra.mxu0 0.0
      %1180 = vmatprep.subr.mxu0 0.0
      %1181 = vmatpush2.msra.mxu0 0.0
      %1182 = vmatprep.subr.mxu0 0.0
      %1183 = vmatpush2.msra.mxu0 0.0
      %1184 = vmatprep.subr.mxu0 0.0
      %1185 = vmatpush2.msra.mxu0 0.0
      %1186 = vmatprep.subr.mxu0 0.0
      %1187 = vmatpush2.msra.mxu0 0.0
      %1188 = vmatprep.subr.mxu0 0.0
      %1189 = vmatpush2.msra.mxu0 0.0
      %1190 = vmatprep.subr.mxu0 0.0
      %1191 = vmatpush2.msra.mxu0 0.0
      %1192 = vmatprep.subr.mxu0 0.0
      %1193 = vmatpush2.msra.mxu0 0.0
      %1194 = vmatprep.mubr.f32.mxu0 0.0
      %1195 = vmatmul.mubr.f32.gmra.mxu0 %v1128
      %v1196 = vpop.f32.mrf.mxu0
      %v1197 = vadd.f32 0.0, %v1196
      %v1198 = vpop.f32.mrf.mxu0
      %1199 = vdwg.mxu0
      %v1201 = vsel %vm571, %v729, 0
      %1203 = vmatprep.subr.mxu0 0.0
      %1204 = vmatpush1.msra.mxu0 0.0
      %1205 = vmatprep.subr.mxu0 0.0
      %1206 = vmatpush1.msra.mxu0 0.0
      %1207 = vmatprep.subr.mxu0 0.0
      %1208 = vmatpush1.msra.mxu0 0.0
      %1209 = vmatprep.subr.mxu0 0.0
      %1210 = vmatpush1.msra.mxu0 0.0
      %1211 = vmatprep.subr.mxu0 0.0
      %1212 = vmatpush1.msra.mxu0 0.0
      %1213 = vmatprep.subr.mxu0 0.0
      %1214 = vmatpush1.msra.mxu0 0.0
      %1215 = vmatprep.subr.mxu0 0.0
      %1216 = vmatpush1.msra.mxu0 0.0
      %1217 = vmatprep.subr.mxu0 0.0
      %1218 = vmatpush1.msra.mxu0 0.0
      %1219 = vmatprep.subr.mxu0 0.0
      %1220 = vmatpush1.msra.mxu0 0.0
      %1221 = vmatprep.subr.mxu0 0.0
      %1222 = vmatpush1.msra.mxu0 0.0
      %1223 = vmatprep.subr.mxu0 0.0
      %1224 = vmatpush1.msra.mxu0 0.0
      %1225 = vmatprep.subr.mxu0 0.0
      %1226 = vmatpush1.msra.mxu0 0.0
      %1227 = vmatprep.subr.mxu0 0.0
      %1228 = vmatpush1.msra.mxu0 0.0
      %1229 = vmatprep.subr.mxu0 0.0
      %1230 = vmatpush1.msra.mxu0 0.0
      %1231 = vmatprep.subr.mxu0 0.0
      %1232 = vmatpush1.msra.mxu0 0.0
      %1233 = vmatprep.subr.mxu0 0.0
      %1234 = vmatpush1.msra.mxu0 %v342
      %1235 = vmatprep.subr.mxu0 0.0
      %1236 = vmatpush2.msra.mxu0 0.0
      %1237 = vmatprep.subr.mxu0 0.0
      %1238 = vmatpush2.msra.mxu0 0.0
      %1239 = vmatprep.subr.mxu0 0.0
      %1240 = vmatpush2.msra.mxu0 0.0
      %1241 = vmatprep.subr.mxu0 0.0
      %1242 = vmatpush2.msra.mxu0 0.0
      %1243 = vmatprep.subr.mxu0 0.0
      %1244 = vmatpush2.msra.mxu0 0.0
      %1245 = vmatprep.subr.mxu0 0.0
      %1246 = vmatpush2.msra.mxu0 0.0
      %1247 = vmatprep.subr.mxu0 0.0
      %1248 = vmatpush2.msra.mxu0 0.0
      %1249 = vmatprep.subr.mxu0 0.0
      %1250 = vmatpush2.msra.mxu0 0.0
      %1251 = vmatprep.subr.mxu0 0.0
      %1252 = vmatpush2.msra.mxu0 0.0
      %1253 = vmatprep.subr.mxu0 0.0
      %1254 = vmatpush2.msra.mxu0 0.0
      %1255 = vmatprep.subr.mxu0 0.0
      %1256 = vmatpush2.msra.mxu0 0.0
      %1257 = vmatprep.subr.mxu0 0.0
      %1258 = vmatpush2.msra.mxu0 0.0
      %1259 = vmatprep.subr.mxu0 0.0
      %1260 = vmatpush2.msra.mxu0 0.0
      %1261 = vmatprep.subr.mxu0 0.0
      %1262 = vmatpush2.msra.mxu0 0.0
      %1263 = vmatprep.subr.mxu0 0.0
      %1264 = vmatpush2.msra.mxu0 0.0
      %1265 = vmatprep.subr.mxu0 0.0
      %1266 = vmatpush2.msra.mxu0 0.0
      %1267 = vmatprep.mubr.f32.mxu0 0.0
      %1268 = vmatmul.mubr.f32.gmra.mxu0 %v1201
      %v1269 = vpop.f32.mrf.mxu0
      %v1270 = vadd.f32 %v1197, %v1269
      %v1271 = vpop.f32.mrf.mxu0
      %1272 = vdwg.mxu0
      %s1273 = scalar_lea.vmem %s2, 16
      %v1274 = vld [vmem:[%s1273] sm:$0xff]
      %s1275 = sadd.s32 16, 32
      %s1276 = scalar_lea.vmem %s2, %s1275
      %v1277 = vld [vmem:[%s1276] sm:$0xff]
      %s1278 = sadd.s32 16, 64
      %s1279 = scalar_lea.vmem %s2, %s1278
      %v1280 = vld [vmem:[%s1279] sm:$0xff]
      %s1281 = sadd.s32 16, 96
      %s1282 = scalar_lea.vmem %s2, %s1281
      %v1283 = vld [vmem:[%s1282] sm:$0xff]
      %v1284 = vld [vmem:[%s3 + $0x2] sm:$0x1]
      %v1285 = vlaneseq
      %v1286 = vshrl.u32 %v1285, 7
      %v1287 = vsub.s32 0, %v1286
      %v1288 = vrot.slane %v1284, %v1287
      %v1290 = vsel %vm348, %v1274, 0
      %1292 = vmatprep.subr.mxu0 0.0
      %1293 = vmatpush1.xpose.msra.mxu0 0.0
      %1294 = vmatprep.subr.mxu0 0.0
      %1295 = vmatpush1.xpose.msra.mxu0 0.0
      %1296 = vmatprep.subr.mxu0 0.0
      %1297 = vmatpush1.xpose.msra.mxu0 0.0
      %1298 = vmatprep.subr.mxu0 0.0
      %1299 = vmatpush1.xpose.msra.mxu0 0.0
      %1300 = vmatprep.subr.mxu0 0.0
      %1301 = vmatpush1.xpose.msra.mxu0 0.0
      %1302 = vmatprep.subr.mxu0 0.0
      %1303 = vmatpush1.xpose.msra.mxu0 0.0
      %1304 = vmatprep.subr.mxu0 0.0
      %1305 = vmatpush1.xpose.msra.mxu0 0.0
      %1306 = vmatprep.subr.mxu0 0.0
      %1307 = vmatpush1.xpose.msra.mxu0 0.0
      %1308 = vmatprep.subr.mxu0 0.0
      %1309 = vmatpush1.xpose.msra.mxu0 0.0
      %1310 = vmatprep.subr.mxu0 0.0
      %1311 = vmatpush1.xpose.msra.mxu0 0.0
      %1312 = vmatprep.subr.mxu0 0.0
      %1313 = vmatpush1.xpose.msra.mxu0 0.0
      %1314 = vmatprep.subr.mxu0 0.0
      %1315 = vmatpush1.xpose.msra.mxu0 0.0
      %1316 = vmatprep.subr.mxu0 0.0
      %1317 = vmatpush1.xpose.msra.mxu0 0.0
      %1318 = vmatprep.subr.mxu0 0.0
      %1319 = vmatpush1.xpose.msra.mxu0 0.0
      %1320 = vmatprep.subr.mxu0 0.0
      %1321 = vmatpush1.xpose.msra.mxu0 0.0
      %1322 = vmatprep.subr.mxu0 0.0
      %1323 = vmatpush1.xpose.msra.mxu0 %v1290
      %1324 = vmatprep.subr.mxu0 0.0
      %1325 = vmatpush2.xpose.msra.mxu0 0.0
      %1326 = vmatprep.subr.mxu0 0.0
      %1327 = vmatpush2.xpose.msra.mxu0 0.0
      %1328 = vmatprep.subr.mxu0 0.0
      %1329 = vmatpush2.xpose.msra.mxu0 0.0
      %1330 = vmatprep.subr.mxu0 0.0
      %1331 = vmatpush2.xpose.msra.mxu0 0.0
      %1332 = vmatprep.subr.mxu0 0.0
      %1333 = vmatpush2.xpose.msra.mxu0 0.0
      %1334 = vmatprep.subr.mxu0 0.0
      %1335 = vmatpush2.xpose.msra.mxu0 0.0
      %1336 = vmatprep.subr.mxu0 0.0
      %1337 = vmatpush2.xpose.msra.mxu0 0.0
      %1338 = vmatprep.subr.mxu0 0.0
      %1339 = vmatpush2.xpose.msra.mxu0 0.0
      %1340 = vmatprep.subr.mxu0 0.0
      %1341 = vmatpush2.xpose.msra.mxu0 0.0
      %1342 = vmatprep.subr.mxu0 0.0
      %1343 = vmatpush2.xpose.msra.mxu0 0.0
      %1344 = vmatprep.subr.mxu0 0.0
      %1345 = vmatpush2.xpose.msra.mxu0 0.0
      %1346 = vmatprep.subr.mxu0 0.0
      %1347 = vmatpush2.xpose.msra.mxu0 0.0
      %1348 = vmatprep.subr.mxu0 0.0
      %1349 = vmatpush2.xpose.msra.mxu0 0.0
      %1350 = vmatprep.subr.mxu0 0.0
      %1351 = vmatpush2.xpose.msra.mxu0 0.0
      %1352 = vmatprep.subr.mxu0 0.0
      %1353 = vmatpush2.xpose.msra.mxu0 0.0
      %1354 = vmatprep.subr.mxu0 0.0
      %1355 = vmatpush2.xpose.msra.mxu0 0.0
      %1356 = vmatprep.mubr.f32.mxu0 0.0
      %1357 = vmatmul.mubr.f32.gmra.mxu0 %v350
      %v1358 = vpop.f32.mrf.mxu0
      %v1359 = vadd.f32 %v1288, %v1358
      %v1360 = vpop.f32.mrf.mxu0
      %1361 = vdwg.mxu0
      %v1363 = vsel %vm348, %v1277, 0
      %1365 = vmatprep.subr.mxu0 0.0
      %1366 = vmatpush1.xpose.msra.mxu0 0.0
      %1367 = vmatprep.subr.mxu0 0.0
      %1368 = vmatpush1.xpose.msra.mxu0 0.0
      %1369 = vmatprep.subr.mxu0 0.0
      %1370 = vmatpush1.xpose.msra.mxu0 0.0
      %1371 = vmatprep.subr.mxu0 0.0
      %1372 = vmatpush1.xpose.msra.mxu0 0.0
      %1373 = vmatprep.subr.mxu0 0.0
      %1374 = vmatpush1.xpose.msra.mxu0 0.0
      %1375 = vmatprep.subr.mxu0 0.0
      %1376 = vmatpush1.xpose.msra.mxu0 0.0
      %1377 = vmatprep.subr.mxu0 0.0
      %1378 = vmatpush1.xpose.msra.mxu0 0.0
      %1379 = vmatprep.subr.mxu0 0.0
      %1380 = vmatpush1.xpose.msra.mxu0 0.0
      %1381 = vmatprep.subr.mxu0 0.0
      %1382 = vmatpush1.xpose.msra.mxu0 0.0
      %1383 = vmatprep.subr.mxu0 0.0
      %1384 = vmatpush1.xpose.msra.mxu0 0.0
      %1385 = vmatprep.subr.mxu0 0.0
      %1386 = vmatpush1.xpose.msra.mxu0 0.0
      %1387 = vmatprep.subr.mxu0 0.0
      %1388 = vmatpush1.xpose.msra.mxu0 0.0
      %1389 = vmatprep.subr.mxu0 0.0
      %1390 = vmatpush1.xpose.msra.mxu0 0.0
      %1391 = vmatprep.subr.mxu0 0.0
      %1392 = vmatpush1.xpose.msra.mxu0 0.0
      %1393 = vmatprep.subr.mxu0 0.0
      %1394 = vmatpush1.xpose.msra.mxu0 0.0
      %1395 = vmatprep.subr.mxu0 0.0
      %1396 = vmatpush1.xpose.msra.mxu0 %v1363
      %1397 = vmatprep.subr.mxu0 0.0
      %1398 = vmatpush2.xpose.msra.mxu0 0.0
      %1399 = vmatprep.subr.mxu0 0.0
      %1400 = vmatpush2.xpose.msra.mxu0 0.0
      %1401 = vmatprep.subr.mxu0 0.0
      %1402 = vmatpush2.xpose.msra.mxu0 0.0
      %1403 = vmatprep.subr.mxu0 0.0
      %1404 = vmatpush2.xpose.msra.mxu0 0.0
      %1405 = vmatprep.subr.mxu0 0.0
      %1406 = vmatpush2.xpose.msra.mxu0 0.0
      %1407 = vmatprep.subr.mxu0 0.0
      %1408 = vmatpush2.xpose.msra.mxu0 0.0
      %1409 = vmatprep.subr.mxu0 0.0
      %1410 = vmatpush2.xpose.msra.mxu0 0.0
      %1411 = vmatprep.subr.mxu0 0.0
      %1412 = vmatpush2.xpose.msra.mxu0 0.0
      %1413 = vmatprep.subr.mxu0 0.0
      %1414 = vmatpush2.xpose.msra.mxu0 0.0
      %1415 = vmatprep.subr.mxu0 0.0
      %1416 = vmatpush2.xpose.msra.mxu0 0.0
      %1417 = vmatprep.subr.mxu0 0.0
      %1418 = vmatpush2.xpose.msra.mxu0 0.0
      %1419 = vmatprep.subr.mxu0 0.0
      %1420 = vmatpush2.xpose.msra.mxu0 0.0
      %1421 = vmatprep.subr.mxu0 0.0
      %1422 = vmatpush2.xpose.msra.mxu0 0.0
      %1423 = vmatprep.subr.mxu0 0.0
      %1424 = vmatpush2.xpose.msra.mxu0 0.0
      %1425 = vmatprep.subr.mxu0 0.0
      %1426 = vmatpush2.xpose.msra.mxu0 0.0
      %1427 = vmatprep.subr.mxu0 0.0
      %1428 = vmatpush2.xpose.msra.mxu0 0.0
      %1429 = vmatprep.mubr.f32.mxu0 0.0
      %1430 = vmatmul.mubr.f32.gmra.mxu0 %v350
      %v1431 = vpop.f32.mrf.mxu0
      %v1432 = vadd.f32 0.0, %v1431
      %v1433 = vpop.f32.mrf.mxu0
      %1434 = vdwg.mxu0
      %v1436 = vsel %vm348, %v1280, 0
      %1438 = vmatprep.subr.mxu0 0.0
      %1439 = vmatpush1.xpose.msra.mxu0 0.0
      %1440 = vmatprep.subr.mxu0 0.0
      %1441 = vmatpush1.xpose.msra.mxu0 0.0
      %1442 = vmatprep.subr.mxu0 0.0
      %1443 = vmatpush1.xpose.msra.mxu0 0.0
      %1444 = vmatprep.subr.mxu0 0.0
      %1445 = vmatpush1.xpose.msra.mxu0 0.0
      %1446 = vmatprep.subr.mxu0 0.0
      %1447 = vmatpush1.xpose.msra.mxu0 0.0
      %1448 = vmatprep.subr.mxu0 0.0
      %1449 = vmatpush1.xpose.msra.mxu0 0.0
      %1450 = vmatprep.subr.mxu0 0.0
      %1451 = vmatpush1.xpose.msra.mxu0 0.0
      %1452 = vmatprep.subr.mxu0 0.0
      %1453 = vmatpush1.xpose.msra.mxu0 0.0
      %1454 = vmatprep.subr.mxu0 0.0
      %1455 = vmatpush1.xpose.msra.mxu0 0.0
      %1456 = vmatprep.subr.mxu0 0.0
      %1457 = vmatpush1.xpose.msra.mxu0 0.0
      %1458 = vmatprep.subr.mxu0 0.0
      %1459 = vmatpush1.xpose.msra.mxu0 0.0
      %1460 = vmatprep.subr.mxu0 0.0
      %1461 = vmatpush1.xpose.msra.mxu0 0.0
      %1462 = vmatprep.subr.mxu0 0.0
      %1463 = vmatpush1.xpose.msra.mxu0 0.0
      %1464 = vmatprep.subr.mxu0 0.0
      %1465 = vmatpush1.xpose.msra.mxu0 0.0
      %1466 = vmatprep.subr.mxu0 0.0
      %1467 = vmatpush1.xpose.msra.mxu0 0.0
      %1468 = vmatprep.subr.mxu0 0.0
      %1469 = vmatpush1.xpose.msra.mxu0 %v1436
      %1470 = vmatprep.subr.mxu0 0.0
      %1471 = vmatpush2.xpose.msra.mxu0 0.0
      %1472 = vmatprep.subr.mxu0 0.0
      %1473 = vmatpush2.xpose.msra.mxu0 0.0
      %1474 = vmatprep.subr.mxu0 0.0
      %1475 = vmatpush2.xpose.msra.mxu0 0.0
      %1476 = vmatprep.subr.mxu0 0.0
      %1477 = vmatpush2.xpose.msra.mxu0 0.0
      %1478 = vmatprep.subr.mxu0 0.0
      %1479 = vmatpush2.xpose.msra.mxu0 0.0
      %1480 = vmatprep.subr.mxu0 0.0
      %1481 = vmatpush2.xpose.msra.mxu0 0.0
      %1482 = vmatprep.subr.mxu0 0.0
      %1483 = vmatpush2.xpose.msra.mxu0 0.0
      %1484 = vmatprep.subr.mxu0 0.0
      %1485 = vmatpush2.xpose.msra.mxu0 0.0
      %1486 = vmatprep.subr.mxu0 0.0
      %1487 = vmatpush2.xpose.msra.mxu0 0.0
      %1488 = vmatprep.subr.mxu0 0.0
      %1489 = vmatpush2.xpose.msra.mxu0 0.0
      %1490 = vmatprep.subr.mxu0 0.0
      %1491 = vmatpush2.xpose.msra.mxu0 0.0
      %1492 = vmatprep.subr.mxu0 0.0
      %1493 = vmatpush2.xpose.msra.mxu0 0.0
      %1494 = vmatprep.subr.mxu0 0.0
      %1495 = vmatpush2.xpose.msra.mxu0 0.0
      %1496 = vmatprep.subr.mxu0 0.0
      %1497 = vmatpush2.xpose.msra.mxu0 0.0
      %1498 = vmatprep.subr.mxu0 0.0
      %1499 = vmatpush2.xpose.msra.mxu0 0.0
      %1500 = vmatprep.subr.mxu0 0.0
      %1501 = vmatpush2.xpose.msra.mxu0 0.0
      %1502 = vmatprep.mubr.f32.mxu0 0.0
      %1503 = vmatmul.mubr.f32.gmra.mxu0 %v350
      %v1504 = vpop.f32.mrf.mxu0
      %v1505 = vadd.f32 0.0, %v1504
      %v1506 = vpop.f32.mrf.mxu0
      %1507 = vdwg.mxu0
      %v1509 = vsel %vm571, %v1359, 0
      %v1512 = vsel %vm571, %v1432, 0
      %1514 = vmatprep.subr.mxu0 0.0
      %1515 = vmatpush1.xpose.msra.mxu0 0.0
      %1516 = vmatprep.subr.mxu0 0.0
      %1517 = vmatpush1.xpose.msra.mxu0 0.0
      %1518 = vmatprep.subr.mxu0 0.0
      %1519 = vmatpush1.xpose.msra.mxu0 0.0
      %1520 = vmatprep.subr.mxu0 0.0
      %1521 = vmatpush1.xpose.msra.mxu0 0.0
      %1522 = vmatprep.subr.mxu0 0.0
      %1523 = vmatpush1.xpose.msra.mxu0 0.0
      %1524 = vmatprep.subr.mxu0 0.0
      %1525 = vmatpush1.xpose.msra.mxu0 0.0
      %1526 = vmatprep.subr.mxu0 0.0
      %1527 = vmatpush1.xpose.msra.mxu0 0.0
      %1528 = vmatprep.subr.mxu0 0.0
      %1529 = vmatpush1.xpose.msra.mxu0 0.0
      %1530 = vmatprep.subr.mxu0 0.0
      %1531 = vmatpush1.xpose.msra.mxu0 0.0
      %1532 = vmatprep.subr.mxu0 0.0
      %1533 = vmatpush1.xpose.msra.mxu0 0.0
      %1534 = vmatprep.subr.mxu0 0.0
      %1535 = vmatpush1.xpose.msra.mxu0 0.0
      %1536 = vmatprep.subr.mxu0 0.0
      %1537 = vmatpush1.xpose.msra.mxu0 0.0
      %1538 = vmatprep.subr.mxu0 0.0
      %1539 = vmatpush1.xpose.msra.mxu0 0.0
      %1540 = vmatprep.subr.mxu0 0.0
      %1541 = vmatpush1.xpose.msra.mxu0 0.0
      %1542 = vmatprep.subr.mxu0 0.0
      %1543 = vmatpush1.xpose.msra.mxu0 0.0
      %1544 = vmatprep.subr.mxu0 0.0
      %1545 = vmatpush1.xpose.msra.mxu0 %v1512
      %1546 = vmatprep.subr.mxu0 0.0
      %1547 = vmatpush2.xpose.msra.mxu0 0.0
      %1548 = vmatprep.subr.mxu0 0.0
      %1549 = vmatpush2.xpose.msra.mxu0 0.0
      %1550 = vmatprep.subr.mxu0 0.0
      %1551 = vmatpush2.xpose.msra.mxu0 0.0
      %1552 = vmatprep.subr.mxu0 0.0
      %1553 = vmatpush2.xpose.msra.mxu0 0.0
      %1554 = vmatprep.subr.mxu0 0.0
      %1555 = vmatpush2.xpose.msra.mxu0 0.0
      %1556 = vmatprep.subr.mxu0 0.0
      %1557 = vmatpush2.xpose.msra.mxu0 0.0
      %1558 = vmatprep.subr.mxu0 0.0
      %1559 = vmatpush2.xpose.msra.mxu0 0.0
      %1560 = vmatprep.subr.mxu0 0.0
      %1561 = vmatpush2.xpose.msra.mxu0 0.0
      %1562 = vmatprep.subr.mxu0 0.0
      %1563 = vmatpush2.xpose.msra.mxu0 0.0
      %1564 = vmatprep.subr.mxu0 0.0
      %1565 = vmatpush2.xpose.msra.mxu0 0.0
      %1566 = vmatprep.subr.mxu0 0.0
      %1567 = vmatpush2.xpose.msra.mxu0 0.0
      %1568 = vmatprep.subr.mxu0 0.0
      %1569 = vmatpush2.xpose.msra.mxu0 0.0
      %1570 = vmatprep.subr.mxu0 0.0
      %1571 = vmatpush2.xpose.msra.mxu0 0.0
      %1572 = vmatprep.subr.mxu0 0.0
      %1573 = vmatpush2.xpose.msra.mxu0 0.0
      %1574 = vmatprep.subr.mxu0 0.0
      %1575 = vmatpush2.xpose.msra.mxu0 0.0
      %1576 = vmatprep.subr.mxu0 0.0
      %1577 = vmatpush2.xpose.msra.mxu0 0.0
      %1578 = vmatprep.mubr.f32.mxu0 0.0
      %1579 = vmatmul.mubr.f32.gmra.mxu0 %v1509
      %v1580 = vpop.f32.mrf.mxu0
      %v1581 = vadd.f32 0.0, %v1580
      %v1582 = vpop.f32.mrf.mxu0
      %1583 = vdwg.mxu0
      %v1584 = vsel %vm571, %v1581, -inf
      %1585 = vmax.xlane.f32.xlu0 %v1584
      %v1586 = vpop.xlane.xlu0 %1585
      %v1587 = vsub.f32 %v1581, %v1586
      %v1588 = vmul.f32 %v1587, 1.442695
      %v1589 = vpow.pop %v1588
      %v1590 = vsel %vm571, %v1589, 0.0
      %1591 = vadd.xlane.f32.xlu0 %v1590
      %v1592 = vpop.xlane.xlu0 %1591
      %v1593 = vrcp.pop %v1592
      %v1594 = vmul.f32 %v1589, %v1593
      %v1596 = vsel %vm571, %v1594, 0
      %1598 = vmatprep.subr.mxu0 0.0
      %1599 = vmatpush1.msra.mxu0 0.0
      %1600 = vmatprep.subr.mxu0 0.0
      %1601 = vmatpush1.msra.mxu0 0.0
      %1602 = vmatprep.subr.mxu0 0.0
      %1603 = vmatpush1.msra.mxu0 0.0
      %1604 = vmatprep.subr.mxu0 0.0
      %1605 = vmatpush1.msra.mxu0 0.0
      %1606 = vmatprep.subr.mxu0 0.0
      %1607 = vmatpush1.msra.mxu0 0.0
      %1608 = vmatprep.subr.mxu0 0.0
      %1609 = vmatpush1.msra.mxu0 0.0
      %1610 = vmatprep.subr.mxu0 0.0
      %1611 = vmatpush1.msra.mxu0 0.0
      %1612 = vmatprep.subr.mxu0 0.0
      %1613 = vmatpush1.msra.mxu0 0.0
      %1614 = vmatprep.subr.mxu0 0.0
      %1615 = vmatpush1.msra.mxu0 0.0
      %1616 = vmatprep.subr.mxu0 0.0
      %1617 = vmatpush1.msra.mxu0 0.0
      %1618 = vmatprep.subr.mxu0 0.0
      %1619 = vmatpush1.msra.mxu0 0.0
      %1620 = vmatprep.subr.mxu0 0.0
      %1621 = vmatpush1.msra.mxu0 0.0
      %1622 = vmatprep.subr.mxu0 0.0
      %1623 = vmatpush1.msra.mxu0 0.0
      %1624 = vmatprep.subr.mxu0 0.0
      %1625 = vmatpush1.msra.mxu0 0.0
      %1626 = vmatprep.subr.mxu0 0.0
      %1627 = vmatpush1.msra.mxu0 0.0
      %1628 = vmatprep.subr.mxu0 0.0
      %1629 = vmatpush1.msra.mxu0 %v1505
      %1630 = vmatprep.subr.mxu0 0.0
      %1631 = vmatpush2.msra.mxu0 0.0
      %1632 = vmatprep.subr.mxu0 0.0
      %1633 = vmatpush2.msra.mxu0 0.0
      %1634 = vmatprep.subr.mxu0 0.0
      %1635 = vmatpush2.msra.mxu0 0.0
      %1636 = vmatprep.subr.mxu0 0.0
      %1637 = vmatpush2.msra.mxu0 0.0
      %1638 = vmatprep.subr.mxu0 0.0
      %1639 = vmatpush2.msra.mxu0 0.0
      %1640 = vmatprep.subr.mxu0 0.0
      %1641 = vmatpush2.msra.mxu0 0.0
      %1642 = vmatprep.subr.mxu0 0.0
      %1643 = vmatpush2.msra.mxu0 0.0
      %1644 = vmatprep.subr.mxu0 0.0
      %1645 = vmatpush2.msra.mxu0 0.0
      %1646 = vmatprep.subr.mxu0 0.0
      %1647 = vmatpush2.msra.mxu0 0.0
      %1648 = vmatprep.subr.mxu0 0.0
      %1649 = vmatpush2.msra.mxu0 0.0
      %1650 = vmatprep.subr.mxu0 0.0
      %1651 = vmatpush2.msra.mxu0 0.0
      %1652 = vmatprep.subr.mxu0 0.0
      %1653 = vmatpush2.msra.mxu0 0.0
      %1654 = vmatprep.subr.mxu0 0.0
      %1655 = vmatpush2.msra.mxu0 0.0
      %1656 = vmatprep.subr.mxu0 0.0
      %1657 = vmatpush2.msra.mxu0 0.0
      %1658 = vmatprep.subr.mxu0 0.0
      %1659 = vmatpush2.msra.mxu0 0.0
      %1660 = vmatprep.subr.mxu0 0.0
      %1661 = vmatpush2.msra.mxu0 0.0
      %1662 = vmatprep.mubr.f32.mxu0 0.0
      %1663 = vmatmul.mubr.f32.gmra.mxu0 %v1596
      %v1664 = vpop.f32.mrf.mxu0
      %v1665 = vadd.f32 0.0, %v1664
      %v1666 = vpop.f32.mrf.mxu0
      %1667 = vdwg.mxu0
      %v1669 = vsel %vm571, %v1665, 0
      %1671 = vmatprep.subr.mxu0 0.0
      %1672 = vmatpush1.msra.mxu0 0.0
      %1673 = vmatprep.subr.mxu0 0.0
      %1674 = vmatpush1.msra.mxu0 0.0
      %1675 = vmatprep.subr.mxu0 0.0
      %1676 = vmatpush1.msra.mxu0 0.0
      %1677 = vmatprep.subr.mxu0 0.0
      %1678 = vmatpush1.msra.mxu0 0.0
      %1679 = vmatprep.subr.mxu0 0.0
      %1680 = vmatpush1.msra.mxu0 0.0
      %1681 = vmatprep.subr.mxu0 0.0
      %1682 = vmatpush1.msra.mxu0 0.0
      %1683 = vmatprep.subr.mxu0 0.0
      %1684 = vmatpush1.msra.mxu0 0.0
      %1685 = vmatprep.subr.mxu0 0.0
      %1686 = vmatpush1.msra.mxu0 0.0
      %1687 = vmatprep.subr.mxu0 0.0
      %1688 = vmatpush1.msra.mxu0 0.0
      %1689 = vmatprep.subr.mxu0 0.0
      %1690 = vmatpush1.msra.mxu0 0.0
      %1691 = vmatprep.subr.mxu0 0.0
      %1692 = vmatpush1.msra.mxu0 0.0
      %1693 = vmatprep.subr.mxu0 0.0
      %1694 = vmatpush1.msra.mxu0 0.0
      %1695 = vmatprep.subr.mxu0 0.0
      %1696 = vmatpush1.msra.mxu0 0.0
      %1697 = vmatprep.subr.mxu0 0.0
      %1698 = vmatpush1.msra.mxu0 0.0
      %1699 = vmatprep.subr.mxu0 0.0
      %1700 = vmatpush1.msra.mxu0 0.0
      %1701 = vmatprep.subr.mxu0 0.0
      %1702 = vmatpush1.msra.mxu0 %v1283
      %1703 = vmatprep.subr.mxu0 0.0
      %1704 = vmatpush2.msra.mxu0 0.0
      %1705 = vmatprep.subr.mxu0 0.0
      %1706 = vmatpush2.msra.mxu0 0.0
      %1707 = vmatprep.subr.mxu0 0.0
      %1708 = vmatpush2.msra.mxu0 0.0
      %1709 = vmatprep.subr.mxu0 0.0
      %1710 = vmatpush2.msra.mxu0 0.0
      %1711 = vmatprep.subr.mxu0 0.0
      %1712 = vmatpush2.msra.mxu0 0.0
      %1713 = vmatprep.subr.mxu0 0.0
      %1714 = vmatpush2.msra.mxu0 0.0
      %1715 = vmatprep.subr.mxu0 0.0
      %1716 = vmatpush2.msra.mxu0 0.0
      %1717 = vmatprep.subr.mxu0 0.0
      %1718 = vmatpush2.msra.mxu0 0.0
      %1719 = vmatprep.subr.mxu0 0.0
      %1720 = vmatpush2.msra.mxu0 0.0
      %1721 = vmatprep.subr.mxu0 0.0
      %1722 = vmatpush2.msra.mxu0 0.0
      %1723 = vmatprep.subr.mxu0 0.0
      %1724 = vmatpush2.msra.mxu0 0.0
      %1725 = vmatprep.subr.mxu0 0.0
      %1726 = vmatpush2.msra.mxu0 0.0
      %1727 = vmatprep.subr.mxu0 0.0
      %1728 = vmatpush2.msra.mxu0 0.0
      %1729 = vmatprep.subr.mxu0 0.0
      %1730 = vmatpush2.msra.mxu0 0.0
      %1731 = vmatprep.subr.mxu0 0.0
      %1732 = vmatpush2.msra.mxu0 0.0
      %1733 = vmatprep.subr.mxu0 0.0
      %1734 = vmatpush2.msra.mxu0 0.0
      %1735 = vmatprep.mubr.f32.mxu0 0.0
      %1736 = vmatmul.mubr.f32.gmra.mxu0 %v1669
      %v1737 = vpop.f32.mrf.mxu0
      %v1738 = vadd.f32 0.0, %v1737
      %v1739 = vpop.f32.mrf.mxu0
      %1740 = vdwg.mxu0
      %v1741 = vadd.f32 %v1270, %v1738
      %s1742 = scalar_lea.vmem %s2, 24
      %v1743 = vld [vmem:[%s1742] sm:$0xff]
      %s1744 = sadd.s32 24, 32
      %s1745 = scalar_lea.vmem %s2, %s1744
      %v1746 = vld [vmem:[%s1745] sm:$0xff]
      %s1747 = sadd.s32 24, 64
      %s1748 = scalar_lea.vmem %s2, %s1747
      %v1749 = vld [vmem:[%s1748] sm:$0xff]
      %s1750 = sadd.s32 24, 96
      %s1751 = scalar_lea.vmem %s2, %s1750
      %v1752 = vld [vmem:[%s1751] sm:$0xff]
      %v1753 = vld [vmem:[%s3 + $0x3] sm:$0x1]
      %v1754 = vlaneseq
      %v1755 = vshrl.u32 %v1754, 7
      %v1756 = vsub.s32 0, %v1755
      %v1757 = vrot.slane %v1753, %v1756
      %v1759 = vsel %vm348, %v1743, 0
      %1761 = vmatprep.subr.mxu0 0.0
      %1762 = vmatpush1.xpose.msra.mxu0 0.0
      %1763 = vmatprep.subr.mxu0 0.0
      %1764 = vmatpush1.xpose.msra.mxu0 0.0
      %1765 = vmatprep.subr.mxu0 0.0
      %1766 = vmatpush1.xpose.msra.mxu0 0.0
      %1767 = vmatprep.subr.mxu0 0.0
      %1768 = vmatpush1.xpose.msra.mxu0 0.0
      %1769 = vmatprep.subr.mxu0 0.0
      %1770 = vmatpush1.xpose.msra.mxu0 0.0
      %1771 = vmatprep.subr.mxu0 0.0
      %1772 = vmatpush1.xpose.msra.mxu0 0.0
      %1773 = vmatprep.subr.mxu0 0.0
      %1774 = vmatpush1.xpose.msra.mxu0 0.0
      %1775 = vmatprep.subr.mxu0 0.0
      %1776 = vmatpush1.xpose.msra.mxu0 0.0
      %1777 = vmatprep.subr.mxu0 0.0
      %1778 = vmatpush1.xpose.msra.mxu0 0.0
      %1779 = vmatprep.subr.mxu0 0.0
      %1780 = vmatpush1.xpose.msra.mxu0 0.0
      %1781 = vmatprep.subr.mxu0 0.0
      %1782 = vmatpush1.xpose.msra.mxu0 0.0
      %1783 = vmatprep.subr.mxu0 0.0
      %1784 = vmatpush1.xpose.msra.mxu0 0.0
      %1785 = vmatprep.subr.mxu0 0.0
      %1786 = vmatpush1.xpose.msra.mxu0 0.0
      %1787 = vmatprep.subr.mxu0 0.0
      %1788 = vmatpush1.xpose.msra.mxu0 0.0
      %1789 = vmatprep.subr.mxu0 0.0
      %1790 = vmatpush1.xpose.msra.mxu0 0.0
      %1791 = vmatprep.subr.mxu0 0.0
      %1792 = vmatpush1.xpose.msra.mxu0 %v1759
      %1793 = vmatprep.subr.mxu0 0.0
      %1794 = vmatpush2.xpose.msra.mxu0 0.0
      %1795 = vmatprep.subr.mxu0 0.0
      %1796 = vmatpush2.xpose.msra.mxu0 0.0
      %1797 = vmatprep.subr.mxu0 0.0
      %1798 = vmatpush2.xpose.msra.mxu0 0.0
      %1799 = vmatprep.subr.mxu0 0.0
      %1800 = vmatpush2.xpose.msra.mxu0 0.0
      %1801 = vmatprep.subr.mxu0 0.0
      %1802 = vmatpush2.xpose.msra.mxu0 0.0
      %1803 = vmatprep.subr.mxu0 0.0
      %1804 = vmatpush2.xpose.msra.mxu0 0.0
      %1805 = vmatprep.subr.mxu0 0.0
      %1806 = vmatpush2.xpose.msra.mxu0 0.0
      %1807 = vmatprep.subr.mxu0 0.0
      %1808 = vmatpush2.xpose.msra.mxu0 0.0
      %1809 = vmatprep.subr.mxu0 0.0
      %1810 = vmatpush2.xpose.msra.mxu0 0.0
      %1811 = vmatprep.subr.mxu0 0.0
      %1812 = vmatpush2.xpose.msra.mxu0 0.0
      %1813 = vmatprep.subr.mxu0 0.0
      %1814 = vmatpush2.xpose.msra.mxu0 0.0
      %1815 = vmatprep.subr.mxu0 0.0
      %1816 = vmatpush2.xpose.msra.mxu0 0.0
      %1817 = vmatprep.subr.mxu0 0.0
      %1818 = vmatpush2.xpose.msra.mxu0 0.0
      %1819 = vmatprep.subr.mxu0 0.0
      %1820 = vmatpush2.xpose.msra.mxu0 0.0
      %1821 = vmatprep.subr.mxu0 0.0
      %1822 = vmatpush2.xpose.msra.mxu0 0.0
      %1823 = vmatprep.subr.mxu0 0.0
      %1824 = vmatpush2.xpose.msra.mxu0 0.0
      %1825 = vmatprep.mubr.f32.mxu0 0.0
      %1826 = vmatmul.mubr.f32.gmra.mxu0 %v350
      %v1827 = vpop.f32.mrf.mxu0
      %v1828 = vadd.f32 %v1757, %v1827
      %v1829 = vpop.f32.mrf.mxu0
      %1830 = vdwg.mxu0
      %v1832 = vsel %vm348, %v1746, 0
      %1834 = vmatprep.subr.mxu0 0.0
      %1835 = vmatpush1.xpose.msra.mxu0 0.0
      %1836 = vmatprep.subr.mxu0 0.0
      %1837 = vmatpush1.xpose.msra.mxu0 0.0
      %1838 = vmatprep.subr.mxu0 0.0
      %1839 = vmatpush1.xpose.msra.mxu0 0.0
      %1840 = vmatprep.subr.mxu0 0.0
      %1841 = vmatpush1.xpose.msra.mxu0 0.0
      %1842 = vmatprep.subr.mxu0 0.0
      %1843 = vmatpush1.xpose.msra.mxu0 0.0
      %1844 = vmatprep.subr.mxu0 0.0
      %1845 = vmatpush1.xpose.msra.mxu0 0.0
      %1846 = vmatprep.subr.mxu0 0.0
      %1847 = vmatpush1.xpose.msra.mxu0 0.0
      %1848 = vmatprep.subr.mxu0 0.0
      %1849 = vmatpush1.xpose.msra.mxu0 0.0
      %1850 = vmatprep.subr.mxu0 0.0
      %1851 = vmatpush1.xpose.msra.mxu0 0.0
      %1852 = vmatprep.subr.mxu0 0.0
      %1853 = vmatpush1.xpose.msra.mxu0 0.0
      %1854 = vmatprep.subr.mxu0 0.0
      %1855 = vmatpush1.xpose.msra.mxu0 0.0
      %1856 = vmatprep.subr.mxu0 0.0
      %1857 = vmatpush1.xpose.msra.mxu0 0.0
      %1858 = vmatprep.subr.mxu0 0.0
      %1859 = vmatpush1.xpose.msra.mxu0 0.0
      %1860 = vmatprep.subr.mxu0 0.0
      %1861 = vmatpush1.xpose.msra.mxu0 0.0
      %1862 = vmatprep.subr.mxu0 0.0
      %1863 = vmatpush1.xpose.msra.mxu0 0.0
      %1864 = vmatprep.subr.mxu0 0.0
      %1865 = vmatpush1.xpose.msra.mxu0 %v1832
      %1866 = vmatprep.subr.mxu0 0.0
      %1867 = vmatpush2.xpose.msra.mxu0 0.0
      %1868 = vmatprep.subr.mxu0 0.0
      %1869 = vmatpush2.xpose.msra.mxu0 0.0
      %1870 = vmatprep.subr.mxu0 0.0
      %1871 = vmatpush2.xpose.msra.mxu0 0.0
      %1872 = vmatprep.subr.mxu0 0.0
      %1873 = vmatpush2.xpose.msra.mxu0 0.0
      %1874 = vmatprep.subr.mxu0 0.0
      %1875 = vmatpush2.xpose.msra.mxu0 0.0
      %1876 = vmatprep.subr.mxu0 0.0
      %1877 = vmatpush2.xpose.msra.mxu0 0.0
      %1878 = vmatprep.subr.mxu0 0.0
      %1879 = vmatpush2.xpose.msra.mxu0 0.0
      %1880 = vmatprep.subr.mxu0 0.0
      %1881 = vmatpush2.xpose.msra.mxu0 0.0
      %1882 = vmatprep.subr.mxu0 0.0
      %1883 = vmatpush2.xpose.msra.mxu0 0.0
      %1884 = vmatprep.subr.mxu0 0.0
      %1885 = vmatpush2.xpose.msra.mxu0 0.0
      %1886 = vmatprep.subr.mxu0 0.0
      %1887 = vmatpush2.xpose.msra.mxu0 0.0
      %1888 = vmatprep.subr.mxu0 0.0
      %1889 = vmatpush2.xpose.msra.mxu0 0.0
      %1890 = vmatprep.subr.mxu0 0.0
      %1891 = vmatpush2.xpose.msra.mxu0 0.0
      %1892 = vmatprep.subr.mxu0 0.0
      %1893 = vmatpush2.xpose.msra.mxu0 0.0
      %1894 = vmatprep.subr.mxu0 0.0
      %1895 = vmatpush2.xpose.msra.mxu0 0.0
      %1896 = vmatprep.subr.mxu0 0.0
      %1897 = vmatpush2.xpose.msra.mxu0 0.0
      %1898 = vmatprep.mubr.f32.mxu0 0.0
      %1899 = vmatmul.mubr.f32.gmra.mxu0 %v350
      %v1900 = vpop.f32.mrf.mxu0
      %v1901 = vadd.f32 0.0, %v1900
      %v1902 = vpop.f32.mrf.mxu0
      %1903 = vdwg.mxu0
      %v1905 = vsel %vm348, %v1749, 0
      %1907 = vmatprep.subr.mxu0 0.0
      %1908 = vmatpush1.xpose.msra.mxu0 0.0
      %1909 = vmatprep.subr.mxu0 0.0
      %1910 = vmatpush1.xpose.msra.mxu0 0.0
      %1911 = vmatprep.subr.mxu0 0.0
      %1912 = vmatpush1.xpose.msra.mxu0 0.0
      %1913 = vmatprep.subr.mxu0 0.0
      %1914 = vmatpush1.xpose.msra.mxu0 0.0
      %1915 = vmatprep.subr.mxu0 0.0
      %1916 = vmatpush1.xpose.msra.mxu0 0.0
      %1917 = vmatprep.subr.mxu0 0.0
      %1918 = vmatpush1.xpose.msra.mxu0 0.0
      %1919 = vmatprep.subr.mxu0 0.0
      %1920 = vmatpush1.xpose.msra.mxu0 0.0
      %1921 = vmatprep.subr.mxu0 0.0
      %1922 = vmatpush1.xpose.msra.mxu0 0.0
      %1923 = vmatprep.subr.mxu0 0.0
      %1924 = vmatpush1.xpose.msra.mxu0 0.0
      %1925 = vmatprep.subr.mxu0 0.0
      %1926 = vmatpush1.xpose.msra.mxu0 0.0
      %1927 = vmatprep.subr.mxu0 0.0
      %1928 = vmatpush1.xpose.msra.mxu0 0.0
      %1929 = vmatprep.subr.mxu0 0.0
      %1930 = vmatpush1.xpose.msra.mxu0 0.0
      %1931 = vmatprep.subr.mxu0 0.0
      %1932 = vmatpush1.xpose.msra.mxu0 0.0
      %1933 = vmatprep.subr.mxu0 0.0
      %1934 = vmatpush1.xpose.msra.mxu0 0.0
      %1935 = vmatprep.subr.mxu0 0.0
      %1936 = vmatpush1.xpose.msra.mxu0 0.0
      %1937 = vmatprep.subr.mxu0 0.0
      %1938 = vmatpush1.xpose.msra.mxu0 %v1905
      %1939 = vmatprep.subr.mxu0 0.0
      %1940 = vmatpush2.xpose.msra.mxu0 0.0
      %1941 = vmatprep.subr.mxu0 0.0
      %1942 = vmatpush2.xpose.msra.mxu0 0.0
      %1943 = vmatprep.subr.mxu0 0.0
      %1944 = vmatpush2.xpose.msra.mxu0 0.0
      %1945 = vmatprep.subr.mxu0 0.0
      %1946 = vmatpush2.xpose.msra.mxu0 0.0
      %1947 = vmatprep.subr.mxu0 0.0
      %1948 = vmatpush2.xpose.msra.mxu0 0.0
      %1949 = vmatprep.subr.mxu0 0.0
      %1950 = vmatpush2.xpose.msra.mxu0 0.0
      %1951 = vmatprep.subr.mxu0 0.0
      %1952 = vmatpush2.xpose.msra.mxu0 0.0
      %1953 = vmatprep.subr.mxu0 0.0
      %1954 = vmatpush2.xpose.msra.mxu0 0.0
      %1955 = vmatprep.subr.mxu0 0.0
      %1956 = vmatpush2.xpose.msra.mxu0 0.0
      %1957 = vmatprep.subr.mxu0 0.0
      %1958 = vmatpush2.xpose.msra.mxu0 0.0
      %1959 = vmatprep.subr.mxu0 0.0
      %1960 = vmatpush2.xpose.msra.mxu0 0.0
      %1961 = vmatprep.subr.mxu0 0.0
      %1962 = vmatpush2.xpose.msra.mxu0 0.0
      %1963 = vmatprep.subr.mxu0 0.0
      %1964 = vmatpush2.xpose.msra.mxu0 0.0
      %1965 = vmatprep.subr.mxu0 0.0
      %1966 = vmatpush2.xpose.msra.mxu0 0.0
      %1967 = vmatprep.subr.mxu0 0.0
      %1968 = vmatpush2.xpose.msra.mxu0 0.0
      %1969 = vmatprep.subr.mxu0 0.0
      %1970 = vmatpush2.xpose.msra.mxu0 0.0
      %1971 = vmatprep.mubr.f32.mxu0 0.0
      %1972 = vmatmul.mubr.f32.gmra.mxu0 %v350
      %v1973 = vpop.f32.mrf.mxu0
      %v1974 = vadd.f32 0.0, %v1973
      %v1975 = vpop.f32.mrf.mxu0
      %1976 = vdwg.mxu0
      %v1978 = vsel %vm571, %v1828, 0
      %v1981 = vsel %vm571, %v1901, 0
      %1983 = vmatprep.subr.mxu0 0.0
      %1984 = vmatpush1.xpose.msra.mxu0 0.0
      %1985 = vmatprep.subr.mxu0 0.0
      %1986 = vmatpush1.xpose.msra.mxu0 0.0
      %1987 = vmatprep.subr.mxu0 0.0
      %1988 = vmatpush1.xpose.msra.mxu0 0.0
      %1989 = vmatprep.subr.mxu0 0.0
      %1990 = vmatpush1.xpose.msra.mxu0 0.0
      %1991 = vmatprep.subr.mxu0 0.0
      %1992 = vmatpush1.xpose.msra.mxu0 0.0
      %1993 = vmatprep.subr.mxu0 0.0
      %1994 = vmatpush1.xpose.msra.mxu0 0.0
      %1995 = vmatprep.subr.mxu0 0.0
      %1996 = vmatpush1.xpose.msra.mxu0 0.0
      %1997 = vmatprep.subr.mxu0 0.0
      %1998 = vmatpush1.xpose.msra.mxu0 0.0
      %1999 = vmatprep.subr.mxu0 0.0
      %2000 = vmatpush1.xpose.msra.mxu0 0.0
      %2001 = vmatprep.subr.mxu0 0.0
      %2002 = vmatpush1.xpose.msra.mxu0 0.0
      %2003 = vmatprep.subr.mxu0 0.0
      %2004 = vmatpush1.xpose.msra.mxu0 0.0
      %2005 = vmatprep.subr.mxu0 0.0
      %2006 = vmatpush1.xpose.msra.mxu0 0.0
      %2007 = vmatprep.subr.mxu0 0.0
      %2008 = vmatpush1.xpose.msra.mxu0 0.0
      %2009 = vmatprep.subr.mxu0 0.0
      %2010 = vmatpush1.xpose.msra.mxu0 0.0
      %2011 = vmatprep.subr.mxu0 0.0
      %2012 = vmatpush1.xpose.msra.mxu0 0.0
      %2013 = vmatprep.subr.mxu0 0.0
      %2014 = vmatpush1.xpose.msra.mxu0 %v1981
      %2015 = vmatprep.subr.mxu0 0.0
      %2016 = vmatpush2.xpose.msra.mxu0 0.0
      %2017 = vmatprep.subr.mxu0 0.0
      %2018 = vmatpush2.xpose.msra.mxu0 0.0
      %2019 = vmatprep.subr.mxu0 0.0
      %2020 = vmatpush2.xpose.msra.mxu0 0.0
      %2021 = vmatprep.subr.mxu0 0.0
      %2022 = vmatpush2.xpose.msra.mxu0 0.0
      %2023 = vmatprep.subr.mxu0 0.0
      %2024 = vmatpush2.xpose.msra.mxu0 0.0
      %2025 = vmatprep.subr.mxu0 0.0
      %2026 = vmatpush2.xpose.msra.mxu0 0.0
      %2027 = vmatprep.subr.mxu0 0.0
      %2028 = vmatpush2.xpose.msra.mxu0 0.0
      %2029 = vmatprep.subr.mxu0 0.0
      %2030 = vmatpush2.xpose.msra.mxu0 0.0
      %2031 = vmatprep.subr.mxu0 0.0
      %2032 = vmatpush2.xpose.msra.mxu0 0.0
      %2033 = vmatprep.subr.mxu0 0.0
      %2034 = vmatpush2.xpose.msra.mxu0 0.0
      %2035 = vmatprep.subr.mxu0 0.0
      %2036 = vmatpush2.xpose.msra.mxu0 0.0
      %2037 = vmatprep.subr.mxu0 0.0
      %2038 = vmatpush2.xpose.msra.mxu0 0.0
      %2039 = vmatprep.subr.mxu0 0.0
      %2040 = vmatpush2.xpose.msra.mxu0 0.0
      %2041 = vmatprep.subr.mxu0 0.0
      %2042 = vmatpush2.xpose.msra.mxu0 0.0
      %2043 = vmatprep.subr.mxu0 0.0
      %2044 = vmatpush2.xpose.msra.mxu0 0.0
      %2045 = vmatprep.subr.mxu0 0.0
      %2046 = vmatpush2.xpose.msra.mxu0 0.0
      %2047 = vmatprep.mubr.f32.mxu0 0.0
      %2048 = vmatmul.mubr.f32.gmra.mxu0 %v1978
      %v2049 = vpop.f32.mrf.mxu0
      %v2050 = vadd.f32 0.0, %v2049
      %v2051 = vpop.f32.mrf.mxu0
      %2052 = vdwg.mxu0
      %v2053 = vsel %vm571, %v2050, -inf
      %2054 = vmax.xlane.f32.xlu0 %v2053
      %v2055 = vpop.xlane.xlu0 %2054
      %v2056 = vsub.f32 %v2050, %v2055
      %v2057 = vmul.f32 %v2056, 1.442695
      %v2058 = vpow.pop %v2057
      %v2059 = vsel %vm571, %v2058, 0.0
      %2060 = vadd.xlane.f32.xlu0 %v2059
      %v2061 = vpop.xlane.xlu0 %2060
      %v2062 = vrcp.pop %v2061
      %v2063 = vmul.f32 %v2058, %v2062
      %v2065 = vsel %vm571, %v2063, 0
      %2067 = vmatprep.subr.mxu0 0.0
      %2068 = vmatpush1.msra.mxu0 0.0
      %2069 = vmatprep.subr.mxu0 0.0
      %2070 = vmatpush1.msra.mxu0 0.0
      %2071 = vmatprep.subr.mxu0 0.0
      %2072 = vmatpush1.msra.mxu0 0.0
      %2073 = vmatprep.subr.mxu0 0.0
      %2074 = vmatpush1.msra.mxu0 0.0
      %2075 = vmatprep.subr.mxu0 0.0
      %2076 = vmatpush1.msra.mxu0 0.0
      %2077 = vmatprep.subr.mxu0 0.0
      %2078 = vmatpush1.msra.mxu0 0.0
      %2079 = vmatprep.subr.mxu0 0.0
      %2080 = vmatpush1.msra.mxu0 0.0
      %2081 = vmatprep.subr.mxu0 0.0
      %2082 = vmatpush1.msra.mxu0 0.0
      %2083 = vmatprep.subr.mxu0 0.0
      %2084 = vmatpush1.msra.mxu0 0.0
      %2085 = vmatprep.subr.mxu0 0.0
      %2086 = vmatpush1.msra.mxu0 0.0
      %2087 = vmatprep.subr.mxu0 0.0
      %2088 = vmatpush1.msra.mxu0 0.0
      %2089 = vmatprep.subr.mxu0 0.0
      %2090 = vmatpush1.msra.mxu0 0.0
      %2091 = vmatprep.subr.mxu0 0.0
      %2092 = vmatpush1.msra.mxu0 0.0
      %2093 = vmatprep.subr.mxu0 0.0
      %2094 = vmatpush1.msra.mxu0 0.0
      %2095 = vmatprep.subr.mxu0 0.0
      %2096 = vmatpush1.msra.mxu0 0.0
      %2097 = vmatprep.subr.mxu0 0.0
      %2098 = vmatpush1.msra.mxu0 %v1974
      %2099 = vmatprep.subr.mxu0 0.0
      %2100 = vmatpush2.msra.mxu0 0.0
      %2101 = vmatprep.subr.mxu0 0.0
      %2102 = vmatpush2.msra.mxu0 0.0
      %2103 = vmatprep.subr.mxu0 0.0
      %2104 = vmatpush2.msra.mxu0 0.0
      %2105 = vmatprep.subr.mxu0 0.0
      %2106 = vmatpush2.msra.mxu0 0.0
      %2107 = vmatprep.subr.mxu0 0.0
      %2108 = vmatpush2.msra.mxu0 0.0
      %2109 = vmatprep.subr.mxu0 0.0
      %2110 = vmatpush2.msra.mxu0 0.0
      %2111 = vmatprep.subr.mxu0 0.0
      %2112 = vmatpush2.msra.mxu0 0.0
      %2113 = vmatprep.subr.mxu0 0.0
      %2114 = vmatpush2.msra.mxu0 0.0
      %2115 = vmatprep.subr.mxu0 0.0
      %2116 = vmatpush2.msra.mxu0 0.0
      %2117 = vmatprep.subr.mxu0 0.0
      %2118 = vmatpush2.msra.mxu0 0.0
      %2119 = vmatprep.subr.mxu0 0.0
      %2120 = vmatpush2.msra.mxu0 0.0
      %2121 = vmatprep.subr.mxu0 0.0
      %2122 = vmatpush2.msra.mxu0 0.0
      %2123 = vmatprep.subr.mxu0 0.0
      %2124 = vmatpush2.msra.mxu0 0.0
      %2125 = vmatprep.subr.mxu0 0.0
      %2126 = vmatpush2.msra.mxu0 0.0
      %2127 = vmatprep.subr.mxu0 0.0
      %2128 = vmatpush2.msra.mxu0 0.0
      %2129 = vmatprep.subr.mxu0 0.0
      %2130 = vmatpush2.msra.mxu0 0.0
      %2131 = vmatprep.mubr.f32.mxu0 0.0
      %2132 = vmatmul.mubr.f32.gmra.mxu0 %v2065
      %v2133 = vpop.f32.mrf.mxu0
      %v2134 = vadd.f32 0.0, %v2133
      %v2135 = vpop.f32.mrf.mxu0
      %2136 = vdwg.mxu0
      %v2138 = vsel %vm571, %v2134, 0
      %2140 = vmatprep.subr.mxu0 0.0
      %2141 = vmatpush1.msra.mxu0 0.0
      %2142 = vmatprep.subr.mxu0 0.0
      %2143 = vmatpush1.msra.mxu0 0.0
      %2144 = vmatprep.subr.mxu0 0.0
      %2145 = vmatpush1.msra.mxu0 0.0
      %2146 = vmatprep.subr.mxu0 0.0
      %2147 = vmatpush1.msra.mxu0 0.0
      %2148 = vmatprep.subr.mxu0 0.0
      %2149 = vmatpush1.msra.mxu0 0.0
      %2150 = vmatprep.subr.mxu0 0.0
      %2151 = vmatpush1.msra.mxu0 0.0
      %2152 = vmatprep.subr.mxu0 0.0
      %2153 = vmatpush1.msra.mxu0 0.0
      %2154 = vmatprep.subr.mxu0 0.0
      %2155 = vmatpush1.msra.mxu0 0.0
      %2156 = vmatprep.subr.mxu0 0.0
      %2157 = vmatpush1.msra.mxu0 0.0
      %2158 = vmatprep.subr.mxu0 0.0
      %2159 = vmatpush1.msra.mxu0 0.0
      %2160 = vmatprep.subr.mxu0 0.0
      %2161 = vmatpush1.msra.mxu0 0.0
      %2162 = vmatprep.subr.mxu0 0.0
      %2163 = vmatpush1.msra.mxu0 0.0
      %2164 = vmatprep.subr.mxu0 0.0
      %2165 = vmatpush1.msra.mxu0 0.0
      %2166 = vmatprep.subr.mxu0 0.0
      %2167 = vmatpush1.msra.mxu0 0.0
      %2168 = vmatprep.subr.mxu0 0.0
      %2169 = vmatpush1.msra.mxu0 0.0
      %2170 = vmatprep.subr.mxu0 0.0
      %2171 = vmatpush1.msra.mxu0 %v1752
      %2172 = vmatprep.subr.mxu0 0.0
      %2173 = vmatpush2.msra.mxu0 0.0
      %2174 = vmatprep.subr.mxu0 0.0
      %2175 = vmatpush2.msra.mxu0 0.0
      %2176 = vmatprep.subr.mxu0 0.0
      %2177 = vmatpush2.msra.mxu0 0.0
      %2178 = vmatprep.subr.mxu0 0.0
      %2179 = vmatpush2.msra.mxu0 0.0
      %2180 = vmatprep.subr.mxu0 0.0
      %2181 = vmatpush2.msra.mxu0 0.0
      %2182 = vmatprep.subr.mxu0 0.0
      %2183 = vmatpush2.msra.mxu0 0.0
      %2184 = vmatprep.subr.mxu0 0.0
      %2185 = vmatpush2.msra.mxu0 0.0
      %2186 = vmatprep.subr.mxu0 0.0
      %2187 = vmatpush2.msra.mxu0 0.0
      %2188 = vmatprep.subr.mxu0 0.0
      %2189 = vmatpush2.msra.mxu0 0.0
      %2190 = vmatprep.subr.mxu0 0.0
      %2191 = vmatpush2.msra.mxu0 0.0
      %2192 = vmatprep.subr.mxu0 0.0
      %2193 = vmatpush2.msra.mxu0 0.0
      %2194 = vmatprep.subr.mxu0 0.0
      %2195 = vmatpush2.msra.mxu0 0.0
      %2196 = vmatprep.subr.mxu0 0.0
      %2197 = vmatpush2.msra.mxu0 0.0
      %2198 = vmatprep.subr.mxu0 0.0
      %2199 = vmatpush2.msra.mxu0 0.0
      %2200 = vmatprep.subr.mxu0 0.0
      %2201 = vmatpush2.msra.mxu0 0.0
      %2202 = vmatprep.subr.mxu0 0.0
      %2203 = vmatpush2.msra.mxu0 0.0
      %2204 = vmatprep.mubr.f32.mxu0 0.0
      %2205 = vmatmul.mubr.f32.gmra.mxu0 %v2138
      %v2206 = vpop.f32.mrf.mxu0
      %v2207 = vadd.f32 0.0, %v2206
      %v2208 = vpop.f32.mrf.mxu0
      %2209 = vdwg.mxu0
      %v2210 = vadd.f32 %v1741, %v2207
      %v2211 = vadd.f32 %v258, %v2210
      %v2212 = vld [vmem:[%s2 + $0x140] sm:$0x1]
      %v2213 = vlaneseq
      %v2214 = vshrl.u32 %v2213, 7
      %v2215 = vsub.s32 0, %v2214
      %v2216 = vrot.slane %v2212, %v2215
      %v2217 = vadd.f32 %v2211, %v2216
      %s2218 = sadd.s32 0, 128
      %s2219 = scalar_lea.vmem %s2, %s2218
      %v2220 = vld [vmem:[%s2219] sm:$0xff]
      %s2221 = sadd.s32 0, 160
      %s2222 = scalar_lea.vmem %s2, %s2221
      %v2223 = vld [vmem:[%s2222] sm:$0xff]
      %s2224 = sadd.s32 0, 192
      %s2225 = scalar_lea.vmem %s2, %s2224
      %v2226 = vld [vmem:[%s2225] sm:$0xff]
      %s2227 = sadd.s32 0, 224
      %s2228 = scalar_lea.vmem %s2, %s2227
      %v2229 = vld [vmem:[%s2228] sm:$0xff]
      %v2230 = vld [vmem:[%s3 + $0x4] sm:$0x1]
      %v2231 = vlaneseq
      %v2232 = vshrl.u32 %v2231, 7
      %v2233 = vsub.s32 0, %v2232
      %v2234 = vrot.slane %v2230, %v2233
      %v2236 = vsel %vm348, %v2217, 0
      %v2239 = vsel %vm348, %v2220, 0
      %2241 = vmatprep.subr.mxu0 0.0
      %2242 = vmatpush1.xpose.msra.mxu0 0.0
      %2243 = vmatprep.subr.mxu0 0.0
      %2244 = vmatpush1.xpose.msra.mxu0 0.0
      %2245 = vmatprep.subr.mxu0 0.0
      %2246 = vmatpush1.xpose.msra.mxu0 0.0
      %2247 = vmatprep.subr.mxu0 0.0
      %2248 = vmatpush1.xpose.msra.mxu0 0.0
      %2249 = vmatprep.subr.mxu0 0.0
      %2250 = vmatpush1.xpose.msra.mxu0 0.0
      %2251 = vmatprep.subr.mxu0 0.0
      %2252 = vmatpush1.xpose.msra.mxu0 0.0
      %2253 = vmatprep.subr.mxu0 0.0
      %2254 = vmatpush1.xpose.msra.mxu0 0.0
      %2255 = vmatprep.subr.mxu0 0.0
      %2256 = vmatpush1.xpose.msra.mxu0 0.0
      %2257 = vmatprep.subr.mxu0 0.0
      %2258 = vmatpush1.xpose.msra.mxu0 0.0
      %2259 = vmatprep.subr.mxu0 0.0
      %2260 = vmatpush1.xpose.msra.mxu0 0.0
      %2261 = vmatprep.subr.mxu0 0.0
      %2262 = vmatpush1.xpose.msra.mxu0 0.0
      %2263 = vmatprep.subr.mxu0 0.0
      %2264 = vmatpush1.xpose.msra.mxu0 0.0
      %2265 = vmatprep.subr.mxu0 0.0
      %2266 = vmatpush1.xpose.msra.mxu0 0.0
      %2267 = vmatprep.subr.mxu0 0.0
      %2268 = vmatpush1.xpose.msra.mxu0 0.0
      %2269 = vmatprep.subr.mxu0 0.0
      %2270 = vmatpush1.xpose.msra.mxu0 0.0
      %2271 = vmatprep.subr.mxu0 0.0
      %2272 = vmatpush1.xpose.msra.mxu0 %v2239
      %2273 = vmatprep.subr.mxu0 0.0
      %2274 = vmatpush2.xpose.msra.mxu0 0.0
      %2275 = vmatprep.subr.mxu0 0.0
      %2276 = vmatpush2.xpose.msra.mxu0 0.0
      %2277 = vmatprep.subr.mxu0 0.0
      %2278 = vmatpush2.xpose.msra.mxu0 0.0
      %2279 = vmatprep.subr.mxu0 0.0
      %2280 = vmatpush2.xpose.msra.mxu0 0.0
      %2281 = vmatprep.subr.mxu0 0.0
      %2282 = vmatpush2.xpose.msra.mxu0 0.0
      %2283 = vmatprep.subr.mxu0 0.0
      %2284 = vmatpush2.xpose.msra.mxu0 0.0
      %2285 = vmatprep.subr.mxu0 0.0
      %2286 = vmatpush2.xpose.msra.mxu0 0.0
      %2287 = vmatprep.subr.mxu0 0.0
      %2288 = vmatpush2.xpose.msra.mxu0 0.0
      %2289 = vmatprep.subr.mxu0 0.0
      %2290 = vmatpush2.xpose.msra.mxu0 0.0
      %2291 = vmatprep.subr.mxu0 0.0
      %2292 = vmatpush2.xpose.msra.mxu0 0.0
      %2293 = vmatprep.subr.mxu0 0.0
      %2294 = vmatpush2.xpose.msra.mxu0 0.0
      %2295 = vmatprep.subr.mxu0 0.0
      %2296 = vmatpush2.xpose.msra.mxu0 0.0
      %2297 = vmatprep.subr.mxu0 0.0
      %2298 = vmatpush2.xpose.msra.mxu0 0.0
      %2299 = vmatprep.subr.mxu0 0.0
      %2300 = vmatpush2.xpose.msra.mxu0 0.0
      %2301 = vmatprep.subr.mxu0 0.0
      %2302 = vmatpush2.xpose.msra.mxu0 0.0
      %2303 = vmatprep.subr.mxu0 0.0
      %2304 = vmatpush2.xpose.msra.mxu0 0.0
      %2305 = vmatprep.mubr.f32.mxu0 0.0
      %2306 = vmatmul.mubr.f32.gmra.mxu0 %v2236
      %v2307 = vpop.f32.mrf.mxu0
      %v2308 = vadd.f32 %v2234, %v2307
      %v2309 = vpop.f32.mrf.mxu0
      %2310 = vdwg.mxu0
      %v2312 = vsel %vm348, %v330, 0
      %v2315 = vsel %vm348, %v2223, 0
      %2317 = vmatprep.subr.mxu0 0.0
      %2318 = vmatpush1.xpose.msra.mxu0 0.0
      %2319 = vmatprep.subr.mxu0 0.0
      %2320 = vmatpush1.xpose.msra.mxu0 0.0
      %2321 = vmatprep.subr.mxu0 0.0
      %2322 = vmatpush1.xpose.msra.mxu0 0.0
      %2323 = vmatprep.subr.mxu0 0.0
      %2324 = vmatpush1.xpose.msra.mxu0 0.0
      %2325 = vmatprep.subr.mxu0 0.0
      %2326 = vmatpush1.xpose.msra.mxu0 0.0
      %2327 = vmatprep.subr.mxu0 0.0
      %2328 = vmatpush1.xpose.msra.mxu0 0.0
      %2329 = vmatprep.subr.mxu0 0.0
      %2330 = vmatpush1.xpose.msra.mxu0 0.0
      %2331 = vmatprep.subr.mxu0 0.0
      %2332 = vmatpush1.xpose.msra.mxu0 0.0
      %2333 = vmatprep.subr.mxu0 0.0
      %2334 = vmatpush1.xpose.msra.mxu0 0.0
      %2335 = vmatprep.subr.mxu0 0.0
      %2336 = vmatpush1.xpose.msra.mxu0 0.0
      %2337 = vmatprep.subr.mxu0 0.0
      %2338 = vmatpush1.xpose.msra.mxu0 0.0
      %2339 = vmatprep.subr.mxu0 0.0
      %2340 = vmatpush1.xpose.msra.mxu0 0.0
      %2341 = vmatprep.subr.mxu0 0.0
      %2342 = vmatpush1.xpose.msra.mxu0 0.0
      %2343 = vmatprep.subr.mxu0 0.0
      %2344 = vmatpush1.xpose.msra.mxu0 0.0
      %2345 = vmatprep.subr.mxu0 0.0
      %2346 = vmatpush1.xpose.msra.mxu0 0.0
      %2347 = vmatprep.subr.mxu0 0.0
      %2348 = vmatpush1.xpose.msra.mxu0 %v2315
      %2349 = vmatprep.subr.mxu0 0.0
      %2350 = vmatpush2.xpose.msra.mxu0 0.0
      %2351 = vmatprep.subr.mxu0 0.0
      %2352 = vmatpush2.xpose.msra.mxu0 0.0
      %2353 = vmatprep.subr.mxu0 0.0
      %2354 = vmatpush2.xpose.msra.mxu0 0.0
      %2355 = vmatprep.subr.mxu0 0.0
      %2356 = vmatpush2.xpose.msra.mxu0 0.0
      %2357 = vmatprep.subr.mxu0 0.0
      %2358 = vmatpush2.xpose.msra.mxu0 0.0
      %2359 = vmatprep.subr.mxu0 0.0
      %2360 = vmatpush2.xpose.msra.mxu0 0.0
      %2361 = vmatprep.subr.mxu0 0.0
      %2362 = vmatpush2.xpose.msra.mxu0 0.0
      %2363 = vmatprep.subr.mxu0 0.0
      %2364 = vmatpush2.xpose.msra.mxu0 0.0
      %2365 = vmatprep.subr.mxu0 0.0
      %2366 = vmatpush2.xpose.msra.mxu0 0.0
      %2367 = vmatprep.subr.mxu0 0.0
      %2368 = vmatpush2.xpose.msra.mxu0 0.0
      %2369 = vmatprep.subr.mxu0 0.0
      %2370 = vmatpush2.xpose.msra.mxu0 0.0
      %2371 = vmatprep.subr.mxu0 0.0
      %2372 = vmatpush2.xpose.msra.mxu0 0.0
      %2373 = vmatprep.subr.mxu0 0.0
      %2374 = vmatpush2.xpose.msra.mxu0 0.0
      %2375 = vmatprep.subr.mxu0 0.0
      %2376 = vmatpush2.xpose.msra.mxu0 0.0
      %2377 = vmatprep.subr.mxu0 0.0
      %2378 = vmatpush2.xpose.msra.mxu0 0.0
      %2379 = vmatprep.subr.mxu0 0.0
      %2380 = vmatpush2.xpose.msra.mxu0 0.0
      %2381 = vmatprep.mubr.f32.mxu0 0.0
      %2382 = vmatmul.mubr.f32.gmra.mxu0 %v2312
      %v2383 = vpop.f32.mrf.mxu0
      %v2384 = vadd.f32 0.0, %v2383
      %v2385 = vpop.f32.mrf.mxu0
      %2386 = vdwg.mxu0
      %v2388 = vsel %vm348, %v2226, 0
      %2390 = vmatprep.subr.mxu0 0.0
      %2391 = vmatpush1.xpose.msra.mxu0 0.0
      %2392 = vmatprep.subr.mxu0 0.0
      %2393 = vmatpush1.xpose.msra.mxu0 0.0
      %2394 = vmatprep.subr.mxu0 0.0
      %2395 = vmatpush1.xpose.msra.mxu0 0.0
      %2396 = vmatprep.subr.mxu0 0.0
      %2397 = vmatpush1.xpose.msra.mxu0 0.0
      %2398 = vmatprep.subr.mxu0 0.0
      %2399 = vmatpush1.xpose.msra.mxu0 0.0
      %2400 = vmatprep.subr.mxu0 0.0
      %2401 = vmatpush1.xpose.msra.mxu0 0.0
      %2402 = vmatprep.subr.mxu0 0.0
      %2403 = vmatpush1.xpose.msra.mxu0 0.0
      %2404 = vmatprep.subr.mxu0 0.0
      %2405 = vmatpush1.xpose.msra.mxu0 0.0
      %2406 = vmatprep.subr.mxu0 0.0
      %2407 = vmatpush1.xpose.msra.mxu0 0.0
      %2408 = vmatprep.subr.mxu0 0.0
      %2409 = vmatpush1.xpose.msra.mxu0 0.0
      %2410 = vmatprep.subr.mxu0 0.0
      %2411 = vmatpush1.xpose.msra.mxu0 0.0
      %2412 = vmatprep.subr.mxu0 0.0
      %2413 = vmatpush1.xpose.msra.mxu0 0.0
      %2414 = vmatprep.subr.mxu0 0.0
      %2415 = vmatpush1.xpose.msra.mxu0 0.0
      %2416 = vmatprep.subr.mxu0 0.0
      %2417 = vmatpush1.xpose.msra.mxu0 0.0
      %2418 = vmatprep.subr.mxu0 0.0
      %2419 = vmatpush1.xpose.msra.mxu0 0.0
      %2420 = vmatprep.subr.mxu0 0.0
      %2421 = vmatpush1.xpose.msra.mxu0 %v2388
      %2422 = vmatprep.subr.mxu0 0.0
      %2423 = vmatpush2.xpose.msra.mxu0 0.0
      %2424 = vmatprep.subr.mxu0 0.0
      %2425 = vmatpush2.xpose.msra.mxu0 0.0
      %2426 = vmatprep.subr.mxu0 0.0
      %2427 = vmatpush2.xpose.msra.mxu0 0.0
      %2428 = vmatprep.subr.mxu0 0.0
      %2429 = vmatpush2.xpose.msra.mxu0 0.0
      %2430 = vmatprep.subr.mxu0 0.0
      %2431 = vmatpush2.xpose.msra.mxu0 0.0
      %2432 = vmatprep.subr.mxu0 0.0
      %2433 = vmatpush2.xpose.msra.mxu0 0.0
      %2434 = vmatprep.subr.mxu0 0.0
      %2435 = vmatpush2.xpose.msra.mxu0 0.0
      %2436 = vmatprep.subr.mxu0 0.0
      %2437 = vmatpush2.xpose.msra.mxu0 0.0
      %2438 = vmatprep.subr.mxu0 0.0
      %2439 = vmatpush2.xpose.msra.mxu0 0.0
      %2440 = vmatprep.subr.mxu0 0.0
      %2441 = vmatpush2.xpose.msra.mxu0 0.0
      %2442 = vmatprep.subr.mxu0 0.0
      %2443 = vmatpush2.xpose.msra.mxu0 0.0
      %2444 = vmatprep.subr.mxu0 0.0
      %2445 = vmatpush2.xpose.msra.mxu0 0.0
      %2446 = vmatprep.subr.mxu0 0.0
      %2447 = vmatpush2.xpose.msra.mxu0 0.0
      %2448 = vmatprep.subr.mxu0 0.0
      %2449 = vmatpush2.xpose.msra.mxu0 0.0
      %2450 = vmatprep.subr.mxu0 0.0
      %2451 = vmatpush2.xpose.msra.mxu0 0.0
      %2452 = vmatprep.subr.mxu0 0.0
      %2453 = vmatpush2.xpose.msra.mxu0 0.0
      %2454 = vmatprep.mubr.f32.mxu0 0.0
      %2455 = vmatmul.mubr.f32.gmra.mxu0 %v2312
      %v2456 = vpop.f32.mrf.mxu0
      %v2457 = vadd.f32 0.0, %v2456
      %v2458 = vpop.f32.mrf.mxu0
      %2459 = vdwg.mxu0
      %v2461 = vsel %vm571, %v2308, 0
      %v2464 = vsel %vm571, %v2384, 0
      %2466 = vmatprep.subr.mxu0 0.0
      %2467 = vmatpush1.xpose.msra.mxu0 0.0
      %2468 = vmatprep.subr.mxu0 0.0
      %2469 = vmatpush1.xpose.msra.mxu0 0.0
      %2470 = vmatprep.subr.mxu0 0.0
      %2471 = vmatpush1.xpose.msra.mxu0 0.0
      %2472 = vmatprep.subr.mxu0 0.0
      %2473 = vmatpush1.xpose.msra.mxu0 0.0
      %2474 = vmatprep.subr.mxu0 0.0
      %2475 = vmatpush1.xpose.msra.mxu0 0.0
      %2476 = vmatprep.subr.mxu0 0.0
      %2477 = vmatpush1.xpose.msra.mxu0 0.0
      %2478 = vmatprep.subr.mxu0 0.0
      %2479 = vmatpush1.xpose.msra.mxu0 0.0
      %2480 = vmatprep.subr.mxu0 0.0
      %2481 = vmatpush1.xpose.msra.mxu0 0.0
      %2482 = vmatprep.subr.mxu0 0.0
      %2483 = vmatpush1.xpose.msra.mxu0 0.0
      %2484 = vmatprep.subr.mxu0 0.0
      %2485 = vmatpush1.xpose.msra.mxu0 0.0
      %2486 = vmatprep.subr.mxu0 0.0
      %2487 = vmatpush1.xpose.msra.mxu0 0.0
      %2488 = vmatprep.subr.mxu0 0.0
      %2489 = vmatpush1.xpose.msra.mxu0 0.0
      %2490 = vmatprep.subr.mxu0 0.0
      %2491 = vmatpush1.xpose.msra.mxu0 0.0
      %2492 = vmatprep.subr.mxu0 0.0
      %2493 = vmatpush1.xpose.msra.mxu0 0.0
      %2494 = vmatprep.subr.mxu0 0.0
      %2495 = vmatpush1.xpose.msra.mxu0 0.0
      %2496 = vmatprep.subr.mxu0 0.0
      %2497 = vmatpush1.xpose.msra.mxu0 %v2464
      %2498 = vmatprep.subr.mxu0 0.0
      %2499 = vmatpush2.xpose.msra.mxu0 0.0
      %2500 = vmatprep.subr.mxu0 0.0
      %2501 = vmatpush2.xpose.msra.mxu0 0.0
      %2502 = vmatprep.subr.mxu0 0.0
      %2503 = vmatpush2.xpose.msra.mxu0 0.0
      %2504 = vmatprep.subr.mxu0 0.0
      %2505 = vmatpush2.xpose.msra.mxu0 0.0
      %2506 = vmatprep.subr.mxu0 0.0
      %2507 = vmatpush2.xpose.msra.mxu0 0.0
      %2508 = vmatprep.subr.mxu0 0.0
      %2509 = vmatpush2.xpose.msra.mxu0 0.0
      %2510 = vmatprep.subr.mxu0 0.0
      %2511 = vmatpush2.xpose.msra.mxu0 0.0
      %2512 = vmatprep.subr.mxu0 0.0
      %2513 = vmatpush2.xpose.msra.mxu0 0.0
      %2514 = vmatprep.subr.mxu0 0.0
      %2515 = vmatpush2.xpose.msra.mxu0 0.0
      %2516 = vmatprep.subr.mxu0 0.0
      %2517 = vmatpush2.xpose.msra.mxu0 0.0
      %2518 = vmatprep.subr.mxu0 0.0
      %2519 = vmatpush2.xpose.msra.mxu0 0.0
      %2520 = vmatprep.subr.mxu0 0.0
      %2521 = vmatpush2.xpose.msra.mxu0 0.0
      %2522 = vmatprep.subr.mxu0 0.0
      %2523 = vmatpush2.xpose.msra.mxu0 0.0
      %2524 = vmatprep.subr.mxu0 0.0
      %2525 = vmatpush2.xpose.msra.mxu0 0.0
      %2526 = vmatprep.subr.mxu0 0.0
      %2527 = vmatpush2.xpose.msra.mxu0 0.0
      %2528 = vmatprep.subr.mxu0 0.0
      %2529 = vmatpush2.xpose.msra.mxu0 0.0
      %2530 = vmatprep.mubr.f32.mxu0 0.0
      %2531 = vmatmul.mubr.f32.gmra.mxu0 %v2461
      %v2532 = vpop.f32.mrf.mxu0
      %v2533 = vadd.f32 0.0, %v2532
      %v2534 = vpop.f32.mrf.mxu0
      %2535 = vdwg.mxu0
      %v2536 = vsel %vm571, %v2533, -inf
      %2537 = vmax.xlane.f32.xlu0 %v2536
      %v2538 = vpop.xlane.xlu0 %2537
      %v2539 = vsub.f32 %v2533, %v2538
      %v2540 = vmul.f32 %v2539, 1.442695
      %v2541 = vpow.pop %v2540
      %v2542 = vsel %vm571, %v2541, 0.0
      %2543 = vadd.xlane.f32.xlu0 %v2542
      %v2544 = vpop.xlane.xlu0 %2543
      %v2545 = vrcp.pop %v2544
      %v2546 = vmul.f32 %v2541, %v2545
      %v2548 = vsel %vm571, %v2546, 0
      %2550 = vmatprep.subr.mxu0 0.0
      %2551 = vmatpush1.msra.mxu0 0.0
      %2552 = vmatprep.subr.mxu0 0.0
      %2553 = vmatpush1.msra.mxu0 0.0
      %2554 = vmatprep.subr.mxu0 0.0
      %2555 = vmatpush1.msra.mxu0 0.0
      %2556 = vmatprep.subr.mxu0 0.0
      %2557 = vmatpush1.msra.mxu0 0.0
      %2558 = vmatprep.subr.mxu0 0.0
      %2559 = vmatpush1.msra.mxu0 0.0
      %2560 = vmatprep.subr.mxu0 0.0
      %2561 = vmatpush1.msra.mxu0 0.0
      %2562 = vmatprep.subr.mxu0 0.0
      %2563 = vmatpush1.msra.mxu0 0.0
      %2564 = vmatprep.subr.mxu0 0.0
      %2565 = vmatpush1.msra.mxu0 0.0
      %2566 = vmatprep.subr.mxu0 0.0
      %2567 = vmatpush1.msra.mxu0 0.0
      %2568 = vmatprep.subr.mxu0 0.0
      %2569 = vmatpush1.msra.mxu0 0.0
      %2570 = vmatprep.subr.mxu0 0.0
      %2571 = vmatpush1.msra.mxu0 0.0
      %2572 = vmatprep.subr.mxu0 0.0
      %2573 = vmatpush1.msra.mxu0 0.0
      %2574 = vmatprep.subr.mxu0 0.0
      %2575 = vmatpush1.msra.mxu0 0.0
      %2576 = vmatprep.subr.mxu0 0.0
      %2577 = vmatpush1.msra.mxu0 0.0
      %2578 = vmatprep.subr.mxu0 0.0
      %2579 = vmatpush1.msra.mxu0 0.0
      %2580 = vmatprep.subr.mxu0 0.0
      %2581 = vmatpush1.msra.mxu0 %v2457
      %2582 = vmatprep.subr.mxu0 0.0
      %2583 = vmatpush2.msra.mxu0 0.0
      %2584 = vmatprep.subr.mxu0 0.0
      %2585 = vmatpush2.msra.mxu0 0.0
      %2586 = vmatprep.subr.mxu0 0.0
      %2587 = vmatpush2.msra.mxu0 0.0
      %2588 = vmatprep.subr.mxu0 0.0
      %2589 = vmatpush2.msra.mxu0 0.0
      %2590 = vmatprep.subr.mxu0 0.0
      %2591 = vmatpush2.msra.mxu0 0.0
      %2592 = vmatprep.subr.mxu0 0.0
      %2593 = vmatpush2.msra.mxu0 0.0
      %2594 = vmatprep.subr.mxu0 0.0
      %2595 = vmatpush2.msra.mxu0 0.0
      %2596 = vmatprep.subr.mxu0 0.0
      %2597 = vmatpush2.msra.mxu0 0.0
      %2598 = vmatprep.subr.mxu0 0.0
      %2599 = vmatpush2.msra.mxu0 0.0
      %2600 = vmatprep.subr.mxu0 0.0
      %2601 = vmatpush2.msra.mxu0 0.0
      %2602 = vmatprep.subr.mxu0 0.0
      %2603 = vmatpush2.msra.mxu0 0.0
      %2604 = vmatprep.subr.mxu0 0.0
      %2605 = vmatpush2.msra.mxu0 0.0
      %2606 = vmatprep.subr.mxu0 0.0
      %2607 = vmatpush2.msra.mxu0 0.0
      %2608 = vmatprep.subr.mxu0 0.0
      %2609 = vmatpush2.msra.mxu0 0.0
      %2610 = vmatprep.subr.mxu0 0.0
      %2611 = vmatpush2.msra.mxu0 0.0
      %2612 = vmatprep.subr.mxu0 0.0
      %2613 = vmatpush2.msra.mxu0 0.0
      %2614 = vmatprep.mubr.f32.mxu0 0.0
      %2615 = vmatmul.mubr.f32.gmra.mxu0 %v2548
      %v2616 = vpop.f32.mrf.mxu0
      %v2617 = vadd.f32 0.0, %v2616
      %v2618 = vpop.f32.mrf.mxu0
      %2619 = vdwg.mxu0
      %s2620 = sadd.s32 8, 128
      %s2621 = scalar_lea.vmem %s2, %s2620
      %v2622 = vld [vmem:[%s2621] sm:$0xff]
      %s2623 = sadd.s32 8, 160
      %s2624 = scalar_lea.vmem %s2, %s2623
      %v2625 = vld [vmem:[%s2624] sm:$0xff]
      %s2626 = sadd.s32 8, 192
      %s2627 = scalar_lea.vmem %s2, %s2626
      %v2628 = vld [vmem:[%s2627] sm:$0xff]
      %s2629 = sadd.s32 8, 224
      %s2630 = scalar_lea.vmem %s2, %s2629
      %v2631 = vld [vmem:[%s2630] sm:$0xff]
      %v2632 = vld [vmem:[%s3 + $0x5] sm:$0x1]
      %v2633 = vlaneseq
      %v2634 = vshrl.u32 %v2633, 7
      %v2635 = vsub.s32 0, %v2634
      %v2636 = vrot.slane %v2632, %v2635
      %v2638 = vsel %vm348, %v2622, 0
      %2640 = vmatprep.subr.mxu0 0.0
      %2641 = vmatpush1.xpose.msra.mxu0 0.0
      %2642 = vmatprep.subr.mxu0 0.0
      %2643 = vmatpush1.xpose.msra.mxu0 0.0
      %2644 = vmatprep.subr.mxu0 0.0
      %2645 = vmatpush1.xpose.msra.mxu0 0.0
      %2646 = vmatprep.subr.mxu0 0.0
      %2647 = vmatpush1.xpose.msra.mxu0 0.0
      %2648 = vmatprep.subr.mxu0 0.0
      %2649 = vmatpush1.xpose.msra.mxu0 0.0
      %2650 = vmatprep.subr.mxu0 0.0
      %2651 = vmatpush1.xpose.msra.mxu0 0.0
      %2652 = vmatprep.subr.mxu0 0.0
      %2653 = vmatpush1.xpose.msra.mxu0 0.0
      %2654 = vmatprep.subr.mxu0 0.0
      %2655 = vmatpush1.xpose.msra.mxu0 0.0
      %2656 = vmatprep.subr.mxu0 0.0
      %2657 = vmatpush1.xpose.msra.mxu0 0.0
      %2658 = vmatprep.subr.mxu0 0.0
      %2659 = vmatpush1.xpose.msra.mxu0 0.0
      %2660 = vmatprep.subr.mxu0 0.0
      %2661 = vmatpush1.xpose.msra.mxu0 0.0
      %2662 = vmatprep.subr.mxu0 0.0
      %2663 = vmatpush1.xpose.msra.mxu0 0.0
      %2664 = vmatprep.subr.mxu0 0.0
      %2665 = vmatpush1.xpose.msra.mxu0 0.0
      %2666 = vmatprep.subr.mxu0 0.0
      %2667 = vmatpush1.xpose.msra.mxu0 0.0
      %2668 = vmatprep.subr.mxu0 0.0
      %2669 = vmatpush1.xpose.msra.mxu0 0.0
      %2670 = vmatprep.subr.mxu0 0.0
      %2671 = vmatpush1.xpose.msra.mxu0 %v2638
      %2672 = vmatprep.subr.mxu0 0.0
      %2673 = vmatpush2.xpose.msra.mxu0 0.0
      %2674 = vmatprep.subr.mxu0 0.0
      %2675 = vmatpush2.xpose.msra.mxu0 0.0
      %2676 = vmatprep.subr.mxu0 0.0
      %2677 = vmatpush2.xpose.msra.mxu0 0.0
      %2678 = vmatprep.subr.mxu0 0.0
      %2679 = vmatpush2.xpose.msra.mxu0 0.0
      %2680 = vmatprep.subr.mxu0 0.0
      %2681 = vmatpush2.xpose.msra.mxu0 0.0
      %2682 = vmatprep.subr.mxu0 0.0
      %2683 = vmatpush2.xpose.msra.mxu0 0.0
      %2684 = vmatprep.subr.mxu0 0.0
      %2685 = vmatpush2.xpose.msra.mxu0 0.0
      %2686 = vmatprep.subr.mxu0 0.0
      %2687 = vmatpush2.xpose.msra.mxu0 0.0
      %2688 = vmatprep.subr.mxu0 0.0
      %2689 = vmatpush2.xpose.msra.mxu0 0.0
      %2690 = vmatprep.subr.mxu0 0.0
      %2691 = vmatpush2.xpose.msra.mxu0 0.0
      %2692 = vmatprep.subr.mxu0 0.0
      %2693 = vmatpush2.xpose.msra.mxu0 0.0
      %2694 = vmatprep.subr.mxu0 0.0
      %2695 = vmatpush2.xpose.msra.mxu0 0.0
      %2696 = vmatprep.subr.mxu0 0.0
      %2697 = vmatpush2.xpose.msra.mxu0 0.0
      %2698 = vmatprep.subr.mxu0 0.0
      %2699 = vmatpush2.xpose.msra.mxu0 0.0
      %2700 = vmatprep.subr.mxu0 0.0
      %2701 = vmatpush2.xpose.msra.mxu0 0.0
      %2702 = vmatprep.subr.mxu0 0.0
      %2703 = vmatpush2.xpose.msra.mxu0 0.0
      %2704 = vmatprep.mubr.f32.mxu0 0.0
      %2705 = vmatmul.mubr.f32.gmra.mxu0 %v2236
      %v2706 = vpop.f32.mrf.mxu0
      %v2707 = vadd.f32 %v2636, %v2706
      %v2708 = vpop.f32.mrf.mxu0
      %2709 = vdwg.mxu0
      %v2711 = vsel %vm348, %v2625, 0
      %2713 = vmatprep.subr.mxu0 0.0
      %2714 = vmatpush1.xpose.msra.mxu0 0.0
      %2715 = vmatprep.subr.mxu0 0.0
      %2716 = vmatpush1.xpose.msra.mxu0 0.0
      %2717 = vmatprep.subr.mxu0 0.0
      %2718 = vmatpush1.xpose.msra.mxu0 0.0
      %2719 = vmatprep.subr.mxu0 0.0
      %2720 = vmatpush1.xpose.msra.mxu0 0.0
      %2721 = vmatprep.subr.mxu0 0.0
      %2722 = vmatpush1.xpose.msra.mxu0 0.0
      %2723 = vmatprep.subr.mxu0 0.0
      %2724 = vmatpush1.xpose.msra.mxu0 0.0
      %2725 = vmatprep.subr.mxu0 0.0
      %2726 = vmatpush1.xpose.msra.mxu0 0.0
      %2727 = vmatprep.subr.mxu0 0.0
      %2728 = vmatpush1.xpose.msra.mxu0 0.0
      %2729 = vmatprep.subr.mxu0 0.0
      %2730 = vmatpush1.xpose.msra.mxu0 0.0
      %2731 = vmatprep.subr.mxu0 0.0
      %2732 = vmatpush1.xpose.msra.mxu0 0.0
      %2733 = vmatprep.subr.mxu0 0.0
      %2734 = vmatpush1.xpose.msra.mxu0 0.0
      %2735 = vmatprep.subr.mxu0 0.0
      %2736 = vmatpush1.xpose.msra.mxu0 0.0
      %2737 = vmatprep.subr.mxu0 0.0
      %2738 = vmatpush1.xpose.msra.mxu0 0.0
      %2739 = vmatprep.subr.mxu0 0.0
      %2740 = vmatpush1.xpose.msra.mxu0 0.0
      %2741 = vmatprep.subr.mxu0 0.0
      %2742 = vmatpush1.xpose.msra.mxu0 0.0
      %2743 = vmatprep.subr.mxu0 0.0
      %2744 = vmatpush1.xpose.msra.mxu0 %v2711
      %2745 = vmatprep.subr.mxu0 0.0
      %2746 = vmatpush2.xpose.msra.mxu0 0.0
      %2747 = vmatprep.subr.mxu0 0.0
      %2748 = vmatpush2.xpose.msra.mxu0 0.0
      %2749 = vmatprep.subr.mxu0 0.0
      %2750 = vmatpush2.xpose.msra.mxu0 0.0
      %2751 = vmatprep.subr.mxu0 0.0
      %2752 = vmatpush2.xpose.msra.mxu0 0.0
      %2753 = vmatprep.subr.mxu0 0.0
      %2754 = vmatpush2.xpose.msra.mxu0 0.0
      %2755 = vmatprep.subr.mxu0 0.0
      %2756 = vmatpush2.xpose.msra.mxu0 0.0
      %2757 = vmatprep.subr.mxu0 0.0
      %2758 = vmatpush2.xpose.msra.mxu0 0.0
      %2759 = vmatprep.subr.mxu0 0.0
      %2760 = vmatpush2.xpose.msra.mxu0 0.0
      %2761 = vmatprep.subr.mxu0 0.0
      %2762 = vmatpush2.xpose.msra.mxu0 0.0
      %2763 = vmatprep.subr.mxu0 0.0
      %2764 = vmatpush2.xpose.msra.mxu0 0.0
      %2765 = vmatprep.subr.mxu0 0.0
      %2766 = vmatpush2.xpose.msra.mxu0 0.0
      %2767 = vmatprep.subr.mxu0 0.0
      %2768 = vmatpush2.xpose.msra.mxu0 0.0
      %2769 = vmatprep.subr.mxu0 0.0
      %2770 = vmatpush2.xpose.msra.mxu0 0.0
      %2771 = vmatprep.subr.mxu0 0.0
      %2772 = vmatpush2.xpose.msra.mxu0 0.0
      %2773 = vmatprep.subr.mxu0 0.0
      %2774 = vmatpush2.xpose.msra.mxu0 0.0
      %2775 = vmatprep.subr.mxu0 0.0
      %2776 = vmatpush2.xpose.msra.mxu0 0.0
      %2777 = vmatprep.mubr.f32.mxu0 0.0
      %2778 = vmatmul.mubr.f32.gmra.mxu0 %v2312
      %v2779 = vpop.f32.mrf.mxu0
      %v2780 = vadd.f32 0.0, %v2779
      %v2781 = vpop.f32.mrf.mxu0
      %2782 = vdwg.mxu0
      %v2784 = vsel %vm348, %v2628, 0
      %2786 = vmatprep.subr.mxu0 0.0
      %2787 = vmatpush1.xpose.msra.mxu0 0.0
      %2788 = vmatprep.subr.mxu0 0.0
      %2789 = vmatpush1.xpose.msra.mxu0 0.0
      %2790 = vmatprep.subr.mxu0 0.0
      %2791 = vmatpush1.xpose.msra.mxu0 0.0
      %2792 = vmatprep.subr.mxu0 0.0
      %2793 = vmatpush1.xpose.msra.mxu0 0.0
      %2794 = vmatprep.subr.mxu0 0.0
      %2795 = vmatpush1.xpose.msra.mxu0 0.0
      %2796 = vmatprep.subr.mxu0 0.0
      %2797 = vmatpush1.xpose.msra.mxu0 0.0
      %2798 = vmatprep.subr.mxu0 0.0
      %2799 = vmatpush1.xpose.msra.mxu0 0.0
      %2800 = vmatprep.subr.mxu0 0.0
      %2801 = vmatpush1.xpose.msra.mxu0 0.0
      %2802 = vmatprep.subr.mxu0 0.0
      %2803 = vmatpush1.xpose.msra.mxu0 0.0
      %2804 = vmatprep.subr.mxu0 0.0
      %2805 = vmatpush1.xpose.msra.mxu0 0.0
      %2806 = vmatprep.subr.mxu0 0.0
      %2807 = vmatpush1.xpose.msra.mxu0 0.0
      %2808 = vmatprep.subr.mxu0 0.0
      %2809 = vmatpush1.xpose.msra.mxu0 0.0
      %2810 = vmatprep.subr.mxu0 0.0
      %2811 = vmatpush1.xpose.msra.mxu0 0.0
      %2812 = vmatprep.subr.mxu0 0.0
      %2813 = vmatpush1.xpose.msra.mxu0 0.0
      %2814 = vmatprep.subr.mxu0 0.0
      %2815 = vmatpush1.xpose.msra.mxu0 0.0
      %2816 = vmatprep.subr.mxu0 0.0
      %2817 = vmatpush1.xpose.msra.mxu0 %v2784
      %2818 = vmatprep.subr.mxu0 0.0
      %2819 = vmatpush2.xpose.msra.mxu0 0.0
      %2820 = vmatprep.subr.mxu0 0.0
      %2821 = vmatpush2.xpose.msra.mxu0 0.0
      %2822 = vmatprep.subr.mxu0 0.0
      %2823 = vmatpush2.xpose.msra.mxu0 0.0
      %2824 = vmatprep.subr.mxu0 0.0
      %2825 = vmatpush2.xpose.msra.mxu0 0.0
      %2826 = vmatprep.subr.mxu0 0.0
      %2827 = vmatpush2.xpose.msra.mxu0 0.0
      %2828 = vmatprep.subr.mxu0 0.0
      %2829 = vmatpush2.xpose.msra.mxu0 0.0
      %2830 = vmatprep.subr.mxu0 0.0
      %2831 = vmatpush2.xpose.msra.mxu0 0.0
      %2832 = vmatprep.subr.mxu0 0.0
      %2833 = vmatpush2.xpose.msra.mxu0 0.0
      %2834 = vmatprep.subr.mxu0 0.0
      %2835 = vmatpush2.xpose.msra.mxu0 0.0
      %2836 = vmatprep.subr.mxu0 0.0
      %2837 = vmatpush2.xpose.msra.mxu0 0.0
      %2838 = vmatprep.subr.mxu0 0.0
      %2839 = vmatpush2.xpose.msra.mxu0 0.0
      %2840 = vmatprep.subr.mxu0 0.0
      %2841 = vmatpush2.xpose.msra.mxu0 0.0
      %2842 = vmatprep.subr.mxu0 0.0
      %2843 = vmatpush2.xpose.msra.mxu0 0.0
      %2844 = vmatprep.subr.mxu0 0.0
      %2845 = vmatpush2.xpose.msra.mxu0 0.0
      %2846 = vmatprep.subr.mxu0 0.0
      %2847 = vmatpush2.xpose.msra.mxu0 0.0
      %2848 = vmatprep.subr.mxu0 0.0
      %2849 = vmatpush2.xpose.msra.mxu0 0.0
      %2850 = vmatprep.mubr.f32.mxu0 0.0
      %2851 = vmatmul.mubr.f32.gmra.mxu0 %v2312
      %v2852 = vpop.f32.mrf.mxu0
      %v2853 = vadd.f32 0.0, %v2852
      %v2854 = vpop.f32.mrf.mxu0
      %2855 = vdwg.mxu0
      %v2857 = vsel %vm571, %v2707, 0
      %v2860 = vsel %vm571, %v2780, 0
      %2862 = vmatprep.subr.mxu0 0.0
      %2863 = vmatpush1.xpose.msra.mxu0 0.0
      %2864 = vmatprep.subr.mxu0 0.0
      %2865 = vmatpush1.xpose.msra.mxu0 0.0
      %2866 = vmatprep.subr.mxu0 0.0
      %2867 = vmatpush1.xpose.msra.mxu0 0.0
      %2868 = vmatprep.subr.mxu0 0.0
      %2869 = vmatpush1.xpose.msra.mxu0 0.0
      %2870 = vmatprep.subr.mxu0 0.0
      %2871 = vmatpush1.xpose.msra.mxu0 0.0
      %2872 = vmatprep.subr.mxu0 0.0
      %2873 = vmatpush1.xpose.msra.mxu0 0.0
      %2874 = vmatprep.subr.mxu0 0.0
      %2875 = vmatpush1.xpose.msra.mxu0 0.0
      %2876 = vmatprep.subr.mxu0 0.0
      %2877 = vmatpush1.xpose.msra.mxu0 0.0
      %2878 = vmatprep.subr.mxu0 0.0
      %2879 = vmatpush1.xpose.msra.mxu0 0.0
      %2880 = vmatprep.subr.mxu0 0.0
      %2881 = vmatpush1.xpose.msra.mxu0 0.0
      %2882 = vmatprep.subr.mxu0 0.0
      %2883 = vmatpush1.xpose.msra.mxu0 0.0
      %2884 = vmatprep.subr.mxu0 0.0
      %2885 = vmatpush1.xpose.msra.mxu0 0.0
      %2886 = vmatprep.subr.mxu0 0.0
      %2887 = vmatpush1.xpose.msra.mxu0 0.0
      %2888 = vmatprep.subr.mxu0 0.0
      %2889 = vmatpush1.xpose.msra.mxu0 0.0
      %2890 = vmatprep.subr.mxu0 0.0
      %2891 = vmatpush1.xpose.msra.mxu0 0.0
      %2892 = vmatprep.subr.mxu0 0.0
      %2893 = vmatpush1.xpose.msra.mxu0 %v2860
      %2894 = vmatprep.subr.mxu0 0.0
      %2895 = vmatpush2.xpose.msra.mxu0 0.0
      %2896 = vmatprep.subr.mxu0 0.0
      %2897 = vmatpush2.xpose.msra.mxu0 0.0
      %2898 = vmatprep.subr.mxu0 0.0
      %2899 = vmatpush2.xpose.msra.mxu0 0.0
      %2900 = vmatprep.subr.mxu0 0.0
      %2901 = vmatpush2.xpose.msra.mxu0 0.0
      %2902 = vmatprep.subr.mxu0 0.0
      %2903 = vmatpush2.xpose.msra.mxu0 0.0
      %2904 = vmatprep.subr.mxu0 0.0
      %2905 = vmatpush2.xpose.msra.mxu0 0.0
      %2906 = vmatprep.subr.mxu0 0.0
      %2907 = vmatpush2.xpose.msra.mxu0 0.0
      %2908 = vmatprep.subr.mxu0 0.0
      %2909 = vmatpush2.xpose.msra.mxu0 0.0
      %2910 = vmatprep.subr.mxu0 0.0
      %2911 = vmatpush2.xpose.msra.mxu0 0.0
      %2912 = vmatprep.subr.mxu0 0.0
      %2913 = vmatpush2.xpose.msra.mxu0 0.0
      %2914 = vmatprep.subr.mxu0 0.0
      %2915 = vmatpush2.xpose.msra.mxu0 0.0
      %2916 = vmatprep.subr.mxu0 0.0
      %2917 = vmatpush2.xpose.msra.mxu0 0.0
      %2918 = vmatprep.subr.mxu0 0.0
      %2919 = vmatpush2.xpose.msra.mxu0 0.0
      %2920 = vmatprep.subr.mxu0 0.0
      %2921 = vmatpush2.xpose.msra.mxu0 0.0
      %2922 = vmatprep.subr.mxu0 0.0
      %2923 = vmatpush2.xpose.msra.mxu0 0.0
      %2924 = vmatprep.subr.mxu0 0.0
      %2925 = vmatpush2.xpose.msra.mxu0 0.0
      %2926 = vmatprep.mubr.f32.mxu0 0.0
      %2927 = vmatmul.mubr.f32.gmra.mxu0 %v2857
      %v2928 = vpop.f32.mrf.mxu0
      %v2929 = vadd.f32 0.0, %v2928
      %v2930 = vpop.f32.mrf.mxu0
      %2931 = vdwg.mxu0
      %v2932 = vsel %vm571, %v2929, -inf
      %2933 = vmax.xlane.f32.xlu0 %v2932
      %v2934 = vpop.xlane.xlu0 %2933
      %v2935 = vsub.f32 %v2929, %v2934
      %v2936 = vmul.f32 %v2935, 1.442695
      %v2937 = vpow.pop %v2936
      %v2938 = vsel %vm571, %v2937, 0.0
      %2939 = vadd.xlane.f32.xlu0 %v2938
      %v2940 = vpop.xlane.xlu0 %2939
      %v2941 = vrcp.pop %v2940
      %v2942 = vmul.f32 %v2937, %v2941
      %v2944 = vsel %vm571, %v2942, 0
      %2946 = vmatprep.subr.mxu0 0.0
      %2947 = vmatpush1.msra.mxu0 0.0
      %2948 = vmatprep.subr.mxu0 0.0
      %2949 = vmatpush1.msra.mxu0 0.0
      %2950 = vmatprep.subr.mxu0 0.0
      %2951 = vmatpush1.msra.mxu0 0.0
      %2952 = vmatprep.subr.mxu0 0.0
      %2953 = vmatpush1.msra.mxu0 0.0
      %2954 = vmatprep.subr.mxu0 0.0
      %2955 = vmatpush1.msra.mxu0 0.0
      %2956 = vmatprep.subr.mxu0 0.0
      %2957 = vmatpush1.msra.mxu0 0.0
      %2958 = vmatprep.subr.mxu0 0.0
      %2959 = vmatpush1.msra.mxu0 0.0
      %2960 = vmatprep.subr.mxu0 0.0
      %2961 = vmatpush1.msra.mxu0 0.0
      %2962 = vmatprep.subr.mxu0 0.0
      %2963 = vmatpush1.msra.mxu0 0.0
      %2964 = vmatprep.subr.mxu0 0.0
      %2965 = vmatpush1.msra.mxu0 0.0
      %2966 = vmatprep.subr.mxu0 0.0
      %2967 = vmatpush1.msra.mxu0 0.0
      %2968 = vmatprep.subr.mxu0 0.0
      %2969 = vmatpush1.msra.mxu0 0.0
      %2970 = vmatprep.subr.mxu0 0.0
      %2971 = vmatpush1.msra.mxu0 0.0
      %2972 = vmatprep.subr.mxu0 0.0
      %2973 = vmatpush1.msra.mxu0 0.0
      %2974 = vmatprep.subr.mxu0 0.0
      %2975 = vmatpush1.msra.mxu0 0.0
      %2976 = vmatprep.subr.mxu0 0.0
      %2977 = vmatpush1.msra.mxu0 %v2853
      %2978 = vmatprep.subr.mxu0 0.0
      %2979 = vmatpush2.msra.mxu0 0.0
      %2980 = vmatprep.subr.mxu0 0.0
      %2981 = vmatpush2.msra.mxu0 0.0
      %2982 = vmatprep.subr.mxu0 0.0
      %2983 = vmatpush2.msra.mxu0 0.0
      %2984 = vmatprep.subr.mxu0 0.0
      %2985 = vmatpush2.msra.mxu0 0.0
      %2986 = vmatprep.subr.mxu0 0.0
      %2987 = vmatpush2.msra.mxu0 0.0
      %2988 = vmatprep.subr.mxu0 0.0
      %2989 = vmatpush2.msra.mxu0 0.0
      %2990 = vmatprep.subr.mxu0 0.0
      %2991 = vmatpush2.msra.mxu0 0.0
      %2992 = vmatprep.subr.mxu0 0.0
      %2993 = vmatpush2.msra.mxu0 0.0
      %2994 = vmatprep.subr.mxu0 0.0
      %2995 = vmatpush2.msra.mxu0 0.0
      %2996 = vmatprep.subr.mxu0 0.0
      %2997 = vmatpush2.msra.mxu0 0.0
      %2998 = vmatprep.subr.mxu0 0.0
      %2999 = vmatpush2.msra.mxu0 0.0
      %3000 = vmatprep.subr.mxu0 0.0
      %3001 = vmatpush2.msra.mxu0 0.0
      %3002 = vmatprep.subr.mxu0 0.0
      %3003 = vmatpush2.msra.mxu0 0.0
      %3004 = vmatprep.subr.mxu0 0.0
      %3005 = vmatpush2.msra.mxu0 0.0
      %3006 = vmatprep.subr.mxu0 0.0
      %3007 = vmatpush2.msra.mxu0 0.0
      %3008 = vmatprep.subr.mxu0 0.0
      %3009 = vmatpush2.msra.mxu0 0.0
      %3010 = vmatprep.mubr.f32.mxu0 0.0
      %3011 = vmatmul.mubr.f32.gmra.mxu0 %v2944
      %v3012 = vpop.f32.mrf.mxu0
      %v3013 = vadd.f32 0.0, %v3012
      %v3014 = vpop.f32.mrf.mxu0
      %3015 = vdwg.mxu0
      %v3017 = vsel %vm571, %v3013, 0
      %3019 = vmatprep.subr.mxu0 0.0
      %3020 = vmatpush1.msra.mxu0 0.0
      %3021 = vmatprep.subr.mxu0 0.0
      %3022 = vmatpush1.msra.mxu0 0.0
      %3023 = vmatprep.subr.mxu0 0.0
      %3024 = vmatpush1.msra.mxu0 0.0
      %3025 = vmatprep.subr.mxu0 0.0
      %3026 = vmatpush1.msra.mxu0 0.0
      %3027 = vmatprep.subr.mxu0 0.0
      %3028 = vmatpush1.msra.mxu0 0.0
      %3029 = vmatprep.subr.mxu0 0.0
      %3030 = vmatpush1.msra.mxu0 0.0
      %3031 = vmatprep.subr.mxu0 0.0
      %3032 = vmatpush1.msra.mxu0 0.0
      %3033 = vmatprep.subr.mxu0 0.0
      %3034 = vmatpush1.msra.mxu0 0.0
      %3035 = vmatprep.subr.mxu0 0.0
      %3036 = vmatpush1.msra.mxu0 0.0
      %3037 = vmatprep.subr.mxu0 0.0
      %3038 = vmatpush1.msra.mxu0 0.0
      %3039 = vmatprep.subr.mxu0 0.0
      %3040 = vmatpush1.msra.mxu0 0.0
      %3041 = vmatprep.subr.mxu0 0.0
      %3042 = vmatpush1.msra.mxu0 0.0
      %3043 = vmatprep.subr.mxu0 0.0
      %3044 = vmatpush1.msra.mxu0 0.0
      %3045 = vmatprep.subr.mxu0 0.0
      %3046 = vmatpush1.msra.mxu0 0.0
      %3047 = vmatprep.subr.mxu0 0.0
      %3048 = vmatpush1.msra.mxu0 0.0
      %3049 = vmatprep.subr.mxu0 0.0
      %3050 = vmatpush1.msra.mxu0 %v2631
      %3051 = vmatprep.subr.mxu0 0.0
      %3052 = vmatpush2.msra.mxu0 0.0
      %3053 = vmatprep.subr.mxu0 0.0
      %3054 = vmatpush2.msra.mxu0 0.0
      %3055 = vmatprep.subr.mxu0 0.0
      %3056 = vmatpush2.msra.mxu0 0.0
      %3057 = vmatprep.subr.mxu0 0.0
      %3058 = vmatpush2.msra.mxu0 0.0
      %3059 = vmatprep.subr.mxu0 0.0
      %3060 = vmatpush2.msra.mxu0 0.0
      %3061 = vmatprep.subr.mxu0 0.0
      %3062 = vmatpush2.msra.mxu0 0.0
      %3063 = vmatprep.subr.mxu0 0.0
      %3064 = vmatpush2.msra.mxu0 0.0
      %3065 = vmatprep.subr.mxu0 0.0
      %3066 = vmatpush2.msra.mxu0 0.0
      %3067 = vmatprep.subr.mxu0 0.0
      %3068 = vmatpush2.msra.mxu0 0.0
      %3069 = vmatprep.subr.mxu0 0.0
      %3070 = vmatpush2.msra.mxu0 0.0
      %3071 = vmatprep.subr.mxu0 0.0
      %3072 = vmatpush2.msra.mxu0 0.0
      %3073 = vmatprep.subr.mxu0 0.0
      %3074 = vmatpush2.msra.mxu0 0.0
      %3075 = vmatprep.subr.mxu0 0.0
      %3076 = vmatpush2.msra.mxu0 0.0
      %3077 = vmatprep.subr.mxu0 0.0
      %3078 = vmatpush2.msra.mxu0 0.0
      %3079 = vmatprep.subr.mxu0 0.0
      %3080 = vmatpush2.msra.mxu0 0.0
      %3081 = vmatprep.subr.mxu0 0.0
      %3082 = vmatpush2.msra.mxu0 0.0
      %3083 = vmatprep.mubr.f32.mxu0 0.0
      %3084 = vmatmul.mubr.f32.gmra.mxu0 %v3017
      %v3085 = vpop.f32.mrf.mxu0
      %v3086 = vadd.f32 0.0, %v3085
      %v3087 = vpop.f32.mrf.mxu0
      %3088 = vdwg.mxu0
      %v3090 = vsel %vm571, %v2617, 0
      %3092 = vmatprep.subr.mxu0 0.0
      %3093 = vmatpush1.msra.mxu0 0.0
      %3094 = vmatprep.subr.mxu0 0.0
      %3095 = vmatpush1.msra.mxu0 0.0
      %3096 = vmatprep.subr.mxu0 0.0
      %3097 = vmatpush1.msra.mxu0 0.0
      %3098 = vmatprep.subr.mxu0 0.0
      %3099 = vmatpush1.msra.mxu0 0.0
      %3100 = vmatprep.subr.mxu0 0.0
      %3101 = vmatpush1.msra.mxu0 0.0
      %3102 = vmatprep.subr.mxu0 0.0
      %3103 = vmatpush1.msra.mxu0 0.0
      %3104 = vmatprep.subr.mxu0 0.0
      %3105 = vmatpush1.msra.mxu0 0.0
      %3106 = vmatprep.subr.mxu0 0.0
      %3107 = vmatpush1.msra.mxu0 0.0
      %3108 = vmatprep.subr.mxu0 0.0
      %3109 = vmatpush1.msra.mxu0 0.0
      %3110 = vmatprep.subr.mxu0 0.0
      %3111 = vmatpush1.msra.mxu0 0.0
      %3112 = vmatprep.subr.mxu0 0.0
      %3113 = vmatpush1.msra.mxu0 0.0
      %3114 = vmatprep.subr.mxu0 0.0
      %3115 = vmatpush1.msra.mxu0 0.0
      %3116 = vmatprep.subr.mxu0 0.0
      %3117 = vmatpush1.msra.mxu0 0.0
      %3118 = vmatprep.subr.mxu0 0.0
      %3119 = vmatpush1.msra.mxu0 0.0
      %3120 = vmatprep.subr.mxu0 0.0
      %3121 = vmatpush1.msra.mxu0 0.0
      %3122 = vmatprep.subr.mxu0 0.0
      %3123 = vmatpush1.msra.mxu0 %v2229
      %3124 = vmatprep.subr.mxu0 0.0
      %3125 = vmatpush2.msra.mxu0 0.0
      %3126 = vmatprep.subr.mxu0 0.0
      %3127 = vmatpush2.msra.mxu0 0.0
      %3128 = vmatprep.subr.mxu0 0.0
      %3129 = vmatpush2.msra.mxu0 0.0
      %3130 = vmatprep.subr.mxu0 0.0
      %3131 = vmatpush2.msra.mxu0 0.0
      %3132 = vmatprep.subr.mxu0 0.0
      %3133 = vmatpush2.msra.mxu0 0.0
      %3134 = vmatprep.subr.mxu0 0.0
      %3135 = vmatpush2.msra.mxu0 0.0
      %3136 = vmatprep.subr.mxu0 0.0
      %3137 = vmatpush2.msra.mxu0 0.0
      %3138 = vmatprep.subr.mxu0 0.0
      %3139 = vmatpush2.msra.mxu0 0.0
      %3140 = vmatprep.subr.mxu0 0.0
      %3141 = vmatpush2.msra.mxu0 0.0
      %3142 = vmatprep.subr.mxu0 0.0
      %3143 = vmatpush2.msra.mxu0 0.0
      %3144 = vmatprep.subr.mxu0 0.0
      %3145 = vmatpush2.msra.mxu0 0.0
      %3146 = vmatprep.subr.mxu0 0.0
      %3147 = vmatpush2.msra.mxu0 0.0
      %3148 = vmatprep.subr.mxu0 0.0
      %3149 = vmatpush2.msra.mxu0 0.0
      %3150 = vmatprep.subr.mxu0 0.0
      %3151 = vmatpush2.msra.mxu0 0.0
      %3152 = vmatprep.subr.mxu0 0.0
      %3153 = vmatpush2.msra.mxu0 0.0
      %3154 = vmatprep.subr.mxu0 0.0
      %3155 = vmatpush2.msra.mxu0 0.0
      %3156 = vmatprep.mubr.f32.mxu0 0.0
      %3157 = vmatmul.mubr.f32.gmra.mxu0 %v3090
      %v3158 = vpop.f32.mrf.mxu0
      %v3159 = vadd.f32 %v3086, %v3158
      %v3160 = vpop.f32.mrf.mxu0
      %3161 = vdwg.mxu0
      %s3162 = sadd.s32 16, 128
      %s3163 = scalar_lea.vmem %s2, %s3162
      %v3164 = vld [vmem:[%s3163] sm:$0xff]
      %s3165 = sadd.s32 16, 160
      %s3166 = scalar_lea.vmem %s2, %s3165
      %v3167 = vld [vmem:[%s3166] sm:$0xff]
      %s3168 = sadd.s32 16, 192
      %s3169 = scalar_lea.vmem %s2, %s3168
      %v3170 = vld [vmem:[%s3169] sm:$0xff]
      %s3171 = sadd.s32 16, 224
      %s3172 = scalar_lea.vmem %s2, %s3171
      %v3173 = vld [vmem:[%s3172] sm:$0xff]
      %v3174 = vld [vmem:[%s3 + $0x6] sm:$0x1]
      %v3175 = vlaneseq
      %v3176 = vshrl.u32 %v3175, 7
      %v3177 = vsub.s32 0, %v3176
      %v3178 = vrot.slane %v3174, %v3177
      %v3180 = vsel %vm348, %v3164, 0
      %3182 = vmatprep.subr.mxu0 0.0
      %3183 = vmatpush1.xpose.msra.mxu0 0.0
      %3184 = vmatprep.subr.mxu0 0.0
      %3185 = vmatpush1.xpose.msra.mxu0 0.0
      %3186 = vmatprep.subr.mxu0 0.0
      %3187 = vmatpush1.xpose.msra.mxu0 0.0
      %3188 = vmatprep.subr.mxu0 0.0
      %3189 = vmatpush1.xpose.msra.mxu0 0.0
      %3190 = vmatprep.subr.mxu0 0.0
      %3191 = vmatpush1.xpose.msra.mxu0 0.0
      %3192 = vmatprep.subr.mxu0 0.0
      %3193 = vmatpush1.xpose.msra.mxu0 0.0
      %3194 = vmatprep.subr.mxu0 0.0
      %3195 = vmatpush1.xpose.msra.mxu0 0.0
      %3196 = vmatprep.subr.mxu0 0.0
      %3197 = vmatpush1.xpose.msra.mxu0 0.0
      %3198 = vmatprep.subr.mxu0 0.0
      %3199 = vmatpush1.xpose.msra.mxu0 0.0
      %3200 = vmatprep.subr.mxu0 0.0
      %3201 = vmatpush1.xpose.msra.mxu0 0.0
      %3202 = vmatprep.subr.mxu0 0.0
      %3203 = vmatpush1.xpose.msra.mxu0 0.0
      %3204 = vmatprep.subr.mxu0 0.0
      %3205 = vmatpush1.xpose.msra.mxu0 0.0
      %3206 = vmatprep.subr.mxu0 0.0
      %3207 = vmatpush1.xpose.msra.mxu0 0.0
      %3208 = vmatprep.subr.mxu0 0.0
      %3209 = vmatpush1.xpose.msra.mxu0 0.0
      %3210 = vmatprep.subr.mxu0 0.0
      %3211 = vmatpush1.xpose.msra.mxu0 0.0
      %3212 = vmatprep.subr.mxu0 0.0
      %3213 = vmatpush1.xpose.msra.mxu0 %v3180
      %3214 = vmatprep.subr.mxu0 0.0
      %3215 = vmatpush2.xpose.msra.mxu0 0.0
      %3216 = vmatprep.subr.mxu0 0.0
      %3217 = vmatpush2.xpose.msra.mxu0 0.0
      %3218 = vmatprep.subr.mxu0 0.0
      %3219 = vmatpush2.xpose.msra.mxu0 0.0
      %3220 = vmatprep.subr.mxu0 0.0
      %3221 = vmatpush2.xpose.msra.mxu0 0.0
      %3222 = vmatprep.subr.mxu0 0.0
      %3223 = vmatpush2.xpose.msra.mxu0 0.0
      %3224 = vmatprep.subr.mxu0 0.0
      %3225 = vmatpush2.xpose.msra.mxu0 0.0
      %3226 = vmatprep.subr.mxu0 0.0
      %3227 = vmatpush2.xpose.msra.mxu0 0.0
      %3228 = vmatprep.subr.mxu0 0.0
      %3229 = vmatpush2.xpose.msra.mxu0 0.0
      %3230 = vmatprep.subr.mxu0 0.0
      %3231 = vmatpush2.xpose.msra.mxu0 0.0
      %3232 = vmatprep.subr.mxu0 0.0
      %3233 = vmatpush2.xpose.msra.mxu0 0.0
      %3234 = vmatprep.subr.mxu0 0.0
      %3235 = vmatpush2.xpose.msra.mxu0 0.0
      %3236 = vmatprep.subr.mxu0 0.0
      %3237 = vmatpush2.xpose.msra.mxu0 0.0
      %3238 = vmatprep.subr.mxu0 0.0
      %3239 = vmatpush2.xpose.msra.mxu0 0.0
      %3240 = vmatprep.subr.mxu0 0.0
      %3241 = vmatpush2.xpose.msra.mxu0 0.0
      %3242 = vmatprep.subr.mxu0 0.0
      %3243 = vmatpush2.xpose.msra.mxu0 0.0
      %3244 = vmatprep.subr.mxu0 0.0
      %3245 = vmatpush2.xpose.msra.mxu0 0.0
      %3246 = vmatprep.mubr.f32.mxu0 0.0
      %3247 = vmatmul.mubr.f32.gmra.mxu0 %v2236
      %v3248 = vpop.f32.mrf.mxu0
      %v3249 = vadd.f32 %v3178, %v3248
      %v3250 = vpop.f32.mrf.mxu0
      %3251 = vdwg.mxu0
      %v3253 = vsel %vm348, %v3167, 0
      %3255 = vmatprep.subr.mxu0 0.0
      %3256 = vmatpush1.xpose.msra.mxu0 0.0
      %3257 = vmatprep.subr.mxu0 0.0
      %3258 = vmatpush1.xpose.msra.mxu0 0.0
      %3259 = vmatprep.subr.mxu0 0.0
      %3260 = vmatpush1.xpose.msra.mxu0 0.0
      %3261 = vmatprep.subr.mxu0 0.0
      %3262 = vmatpush1.xpose.msra.mxu0 0.0
      %3263 = vmatprep.subr.mxu0 0.0
      %3264 = vmatpush1.xpose.msra.mxu0 0.0
      %3265 = vmatprep.subr.mxu0 0.0
      %3266 = vmatpush1.xpose.msra.mxu0 0.0
      %3267 = vmatprep.subr.mxu0 0.0
      %3268 = vmatpush1.xpose.msra.mxu0 0.0
      %3269 = vmatprep.subr.mxu0 0.0
      %3270 = vmatpush1.xpose.msra.mxu0 0.0
      %3271 = vmatprep.subr.mxu0 0.0
      %3272 = vmatpush1.xpose.msra.mxu0 0.0
      %3273 = vmatprep.subr.mxu0 0.0
      %3274 = vmatpush1.xpose.msra.mxu0 0.0
      %3275 = vmatprep.subr.mxu0 0.0
      %3276 = vmatpush1.xpose.msra.mxu0 0.0
      %3277 = vmatprep.subr.mxu0 0.0
      %3278 = vmatpush1.xpose.msra.mxu0 0.0
      %3279 = vmatprep.subr.mxu0 0.0
      %3280 = vmatpush1.xpose.msra.mxu0 0.0
      %3281 = vmatprep.subr.mxu0 0.0
      %3282 = vmatpush1.xpose.msra.mxu0 0.0
      %3283 = vmatprep.subr.mxu0 0.0
      %3284 = vmatpush1.xpose.msra.mxu0 0.0
      %3285 = vmatprep.subr.mxu0 0.0
      %3286 = vmatpush1.xpose.msra.mxu0 %v3253
      %3287 = vmatprep.subr.mxu0 0.0
      %3288 = vmatpush2.xpose.msra.mxu0 0.0
      %3289 = vmatprep.subr.mxu0 0.0
      %3290 = vmatpush2.xpose.msra.mxu0 0.0
      %3291 = vmatprep.subr.mxu0 0.0
      %3292 = vmatpush2.xpose.msra.mxu0 0.0
      %3293 = vmatprep.subr.mxu0 0.0
      %3294 = vmatpush2.xpose.msra.mxu0 0.0
      %3295 = vmatprep.subr.mxu0 0.0
      %3296 = vmatpush2.xpose.msra.mxu0 0.0
      %3297 = vmatprep.subr.mxu0 0.0
      %3298 = vmatpush2.xpose.msra.mxu0 0.0
      %3299 = vmatprep.subr.mxu0 0.0
      %3300 = vmatpush2.xpose.msra.mxu0 0.0
      %3301 = vmatprep.subr.mxu0 0.0
      %3302 = vmatpush2.xpose.msra.mxu0 0.0
      %3303 = vmatprep.subr.mxu0 0.0
      %3304 = vmatpush2.xpose.msra.mxu0 0.0
      %3305 = vmatprep.subr.mxu0 0.0
      %3306 = vmatpush2.xpose.msra.mxu0 0.0
      %3307 = vmatprep.subr.mxu0 0.0
      %3308 = vmatpush2.xpose.msra.mxu0 0.0
      %3309 = vmatprep.subr.mxu0 0.0
      %3310 = vmatpush2.xpose.msra.mxu0 0.0
      %3311 = vmatprep.subr.mxu0 0.0
      %3312 = vmatpush2.xpose.msra.mxu0 0.0
      %3313 = vmatprep.subr.mxu0 0.0
      %3314 = vmatpush2.xpose.msra.mxu0 0.0
      %3315 = vmatprep.subr.mxu0 0.0
      %3316 = vmatpush2.xpose.msra.mxu0 0.0
      %3317 = vmatprep.subr.mxu0 0.0
      %3318 = vmatpush2.xpose.msra.mxu0 0.0
      %3319 = vmatprep.mubr.f32.mxu0 0.0
      %3320 = vmatmul.mubr.f32.gmra.mxu0 %v2312
      %v3321 = vpop.f32.mrf.mxu0
      %v3322 = vadd.f32 0.0, %v3321
      %v3323 = vpop.f32.mrf.mxu0
      %3324 = vdwg.mxu0
      %v3326 = vsel %vm348, %v3170, 0
      %3328 = vmatprep.subr.mxu0 0.0
      %3329 = vmatpush1.xpose.msra.mxu0 0.0
      %3330 = vmatprep.subr.mxu0 0.0
      %3331 = vmatpush1.xpose.msra.mxu0 0.0
      %3332 = vmatprep.subr.mxu0 0.0
      %3333 = vmatpush1.xpose.msra.mxu0 0.0
      %3334 = vmatprep.subr.mxu0 0.0
      %3335 = vmatpush1.xpose.msra.mxu0 0.0
      %3336 = vmatprep.subr.mxu0 0.0
      %3337 = vmatpush1.xpose.msra.mxu0 0.0
      %3338 = vmatprep.subr.mxu0 0.0
      %3339 = vmatpush1.xpose.msra.mxu0 0.0
      %3340 = vmatprep.subr.mxu0 0.0
      %3341 = vmatpush1.xpose.msra.mxu0 0.0
      %3342 = vmatprep.subr.mxu0 0.0
      %3343 = vmatpush1.xpose.msra.mxu0 0.0
      %3344 = vmatprep.subr.mxu0 0.0
      %3345 = vmatpush1.xpose.msra.mxu0 0.0
      %3346 = vmatprep.subr.mxu0 0.0
      %3347 = vmatpush1.xpose.msra.mxu0 0.0
      %3348 = vmatprep.subr.mxu0 0.0
      %3349 = vmatpush1.xpose.msra.mxu0 0.0
      %3350 = vmatprep.subr.mxu0 0.0
      %3351 = vmatpush1.xpose.msra.mxu0 0.0
      %3352 = vmatprep.subr.mxu0 0.0
      %3353 = vmatpush1.xpose.msra.mxu0 0.0
      %3354 = vmatprep.subr.mxu0 0.0
      %3355 = vmatpush1.xpose.msra.mxu0 0.0
      %3356 = vmatprep.subr.mxu0 0.0
      %3357 = vmatpush1.xpose.msra.mxu0 0.0
      %3358 = vmatprep.subr.mxu0 0.0
      %3359 = vmatpush1.xpose.msra.mxu0 %v3326
      %3360 = vmatprep.subr.mxu0 0.0
      %3361 = vmatpush2.xpose.msra.mxu0 0.0
      %3362 = vmatprep.subr.mxu0 0.0
      %3363 = vmatpush2.xpose.msra.mxu0 0.0
      %3364 = vmatprep.subr.mxu0 0.0
      %3365 = vmatpush2.xpose.msra.mxu0 0.0
      %3366 = vmatprep.subr.mxu0 0.0
      %3367 = vmatpush2.xpose.msra.mxu0 0.0
      %3368 = vmatprep.subr.mxu0 0.0
      %3369 = vmatpush2.xpose.msra.mxu0 0.0
      %3370 = vmatprep.subr.mxu0 0.0
      %3371 = vmatpush2.xpose.msra.mxu0 0.0
      %3372 = vmatprep.subr.mxu0 0.0
      %3373 = vmatpush2.xpose.msra.mxu0 0.0
      %3374 = vmatprep.subr.mxu0 0.0
      %3375 = vmatpush2.xpose.msra.mxu0 0.0
      %3376 = vmatprep.subr.mxu0 0.0
      %3377 = vmatpush2.xpose.msra.mxu0 0.0
      %3378 = vmatprep.subr.mxu0 0.0
      %3379 = vmatpush2.xpose.msra.mxu0 0.0
      %3380 = vmatprep.subr.mxu0 0.0
      %3381 = vmatpush2.xpose.msra.mxu0 0.0
      %3382 = vmatprep.subr.mxu0 0.0
      %3383 = vmatpush2.xpose.msra.mxu0 0.0
      %3384 = vmatprep.subr.mxu0 0.0
      %3385 = vmatpush2.xpose.msra.mxu0 0.0
      %3386 = vmatprep.subr.mxu0 0.0
      %3387 = vmatpush2.xpose.msra.mxu0 0.0
      %3388 = vmatprep.subr.mxu0 0.0
      %3389 = vmatpush2.xpose.msra.mxu0 0.0
      %3390 = vmatprep.subr.mxu0 0.0
      %3391 = vmatpush2.xpose.msra.mxu0 0.0
      %3392 = vmatprep.mubr.f32.mxu0 0.0
      %3393 = vmatmul.mubr.f32.gmra.mxu0 %v2312
      %v3394 = vpop.f32.mrf.mxu0
      %v3395 = vadd.f32 0.0, %v3394
      %v3396 = vpop.f32.mrf.mxu0
      %3397 = vdwg.mxu0
      %v3399 = vsel %vm571, %v3249, 0
      %v3402 = vsel %vm571, %v3322, 0
      %3404 = vmatprep.subr.mxu0 0.0
      %3405 = vmatpush1.xpose.msra.mxu0 0.0
      %3406 = vmatprep.subr.mxu0 0.0
      %3407 = vmatpush1.xpose.msra.mxu0 0.0
      %3408 = vmatprep.subr.mxu0 0.0
      %3409 = vmatpush1.xpose.msra.mxu0 0.0
      %3410 = vmatprep.subr.mxu0 0.0
      %3411 = vmatpush1.xpose.msra.mxu0 0.0
      %3412 = vmatprep.subr.mxu0 0.0
      %3413 = vmatpush1.xpose.msra.mxu0 0.0
      %3414 = vmatprep.subr.mxu0 0.0
      %3415 = vmatpush1.xpose.msra.mxu0 0.0
      %3416 = vmatprep.subr.mxu0 0.0
      %3417 = vmatpush1.xpose.msra.mxu0 0.0
      %3418 = vmatprep.subr.mxu0 0.0
      %3419 = vmatpush1.xpose.msra.mxu0 0.0
      %3420 = vmatprep.subr.mxu0 0.0
      %3421 = vmatpush1.xpose.msra.mxu0 0.0
      %3422 = vmatprep.subr.mxu0 0.0
      %3423 = vmatpush1.xpose.msra.mxu0 0.0
      %3424 = vmatprep.subr.mxu0 0.0
      %3425 = vmatpush1.xpose.msra.mxu0 0.0
      %3426 = vmatprep.subr.mxu0 0.0
      %3427 = vmatpush1.xpose.msra.mxu0 0.0
      %3428 = vmatprep.subr.mxu0 0.0
      %3429 = vmatpush1.xpose.msra.mxu0 0.0
      %3430 = vmatprep.subr.mxu0 0.0
      %3431 = vmatpush1.xpose.msra.mxu0 0.0
      %3432 = vmatprep.subr.mxu0 0.0
      %3433 = vmatpush1.xpose.msra.mxu0 0.0
      %3434 = vmatprep.subr.mxu0 0.0
      %3435 = vmatpush1.xpose.msra.mxu0 %v3402
      %3436 = vmatprep.subr.mxu0 0.0
      %3437 = vmatpush2.xpose.msra.mxu0 0.0
      %3438 = vmatprep.subr.mxu0 0.0
      %3439 = vmatpush2.xpose.msra.mxu0 0.0
      %3440 = vmatprep.subr.mxu0 0.0
      %3441 = vmatpush2.xpose.msra.mxu0 0.0
      %3442 = vmatprep.subr.mxu0 0.0
      %3443 = vmatpush2.xpose.msra.mxu0 0.0
      %3444 = vmatprep.subr.mxu0 0.0
      %3445 = vmatpush2.xpose.msra.mxu0 0.0
      %3446 = vmatprep.subr.mxu0 0.0
      %3447 = vmatpush2.xpose.msra.mxu0 0.0
      %3448 = vmatprep.subr.mxu0 0.0
      %3449 = vmatpush2.xpose.msra.mxu0 0.0
      %3450 = vmatprep.subr.mxu0 0.0
      %3451 = vmatpush2.xpose.msra.mxu0 0.0
      %3452 = vmatprep.subr.mxu0 0.0
      %3453 = vmatpush2.xpose.msra.mxu0 0.0
      %3454 = vmatprep.subr.mxu0 0.0
      %3455 = vmatpush2.xpose.msra.mxu0 0.0
      %3456 = vmatprep.subr.mxu0 0.0
      %3457 = vmatpush2.xpose.msra.mxu0 0.0
      %3458 = vmatprep.subr.mxu0 0.0
      %3459 = vmatpush2.xpose.msra.mxu0 0.0
      %3460 = vmatprep.subr.mxu0 0.0
      %3461 = vmatpush2.xpose.msra.mxu0 0.0
      %3462 = vmatprep.subr.mxu0 0.0
      %3463 = vmatpush2.xpose.msra.mxu0 0.0
      %3464 = vmatprep.subr.mxu0 0.0
      %3465 = vmatpush2.xpose.msra.mxu0 0.0
      %3466 = vmatprep.subr.mxu0 0.0
      %3467 = vmatpush2.xpose.msra.mxu0 0.0
      %3468 = vmatprep.mubr.f32.mxu0 0.0
      %3469 = vmatmul.mubr.f32.gmra.mxu0 %v3399
      %v3470 = vpop.f32.mrf.mxu0
      %v3471 = vadd.f32 0.0, %v3470
      %v3472 = vpop.f32.mrf.mxu0
      %3473 = vdwg.mxu0
      %v3474 = vsel %vm571, %v3471, -inf
      %3475 = vmax.xlane.f32.xlu0 %v3474
      %v3476 = vpop.xlane.xlu0 %3475
      %v3477 = vsub.f32 %v3471, %v3476
      %v3478 = vmul.f32 %v3477, 1.442695
      %v3479 = vpow.pop %v3478
      %v3480 = vsel %vm571, %v3479, 0.0
      %3481 = vadd.xlane.f32.xlu0 %v3480
      %v3482 = vpop.xlane.xlu0 %3481
      %v3483 = vrcp.pop %v3482
      %v3484 = vmul.f32 %v3479, %v3483
      %v3486 = vsel %vm571, %v3484, 0
      %3488 = vmatprep.subr.mxu0 0.0
      %3489 = vmatpush1.msra.mxu0 0.0
      %3490 = vmatprep.subr.mxu0 0.0
      %3491 = vmatpush1.msra.mxu0 0.0
      %3492 = vmatprep.subr.mxu0 0.0
      %3493 = vmatpush1.msra.mxu0 0.0
      %3494 = vmatprep.subr.mxu0 0.0
      %3495 = vmatpush1.msra.mxu0 0.0
      %3496 = vmatprep.subr.mxu0 0.0
      %3497 = vmatpush1.msra.mxu0 0.0
      %3498 = vmatprep.subr.mxu0 0.0
      %3499 = vmatpush1.msra.mxu0 0.0
      %3500 = vmatprep.subr.mxu0 0.0
      %3501 = vmatpush1.msra.mxu0 0.0
      %3502 = vmatprep.subr.mxu0 0.0
      %3503 = vmatpush1.msra.mxu0 0.0
      %3504 = vmatprep.subr.mxu0 0.0
      %3505 = vmatpush1.msra.mxu0 0.0
      %3506 = vmatprep.subr.mxu0 0.0
      %3507 = vmatpush1.msra.mxu0 0.0
      %3508 = vmatprep.subr.mxu0 0.0
      %3509 = vmatpush1.msra.mxu0 0.0
      %3510 = vmatprep.subr.mxu0 0.0
      %3511 = vmatpush1.msra.mxu0 0.0
      %3512 = vmatprep.subr.mxu0 0.0
      %3513 = vmatpush1.msra.mxu0 0.0
      %3514 = vmatprep.subr.mxu0 0.0
      %3515 = vmatpush1.msra.mxu0 0.0
      %3516 = vmatprep.subr.mxu0 0.0
      %3517 = vmatpush1.msra.mxu0 0.0
      %3518 = vmatprep.subr.mxu0 0.0
      %3519 = vmatpush1.msra.mxu0 %v3395
      %3520 = vmatprep.subr.mxu0 0.0
      %3521 = vmatpush2.msra.mxu0 0.0
      %3522 = vmatprep.subr.mxu0 0.0
      %3523 = vmatpush2.msra.mxu0 0.0
      %3524 = vmatprep.subr.mxu0 0.0
      %3525 = vmatpush2.msra.mxu0 0.0
      %3526 = vmatprep.subr.mxu0 0.0
      %3527 = vmatpush2.msra.mxu0 0.0
      %3528 = vmatprep.subr.mxu0 0.0
      %3529 = vmatpush2.msra.mxu0 0.0
      %3530 = vmatprep.subr.mxu0 0.0
      %3531 = vmatpush2.msra.mxu0 0.0
      %3532 = vmatprep.subr.mxu0 0.0
      %3533 = vmatpush2.msra.mxu0 0.0
      %3534 = vmatprep.subr.mxu0 0.0
      %3535 = vmatpush2.msra.mxu0 0.0
      %3536 = vmatprep.subr.mxu0 0.0
      %3537 = vmatpush2.msra.mxu0 0.0
      %3538 = vmatprep.subr.mxu0 0.0
      %3539 = vmatpush2.msra.mxu0 0.0
      %3540 = vmatprep.subr.mxu0 0.0
      %3541 = vmatpush2.msra.mxu0 0.0
      %3542 = vmatprep.subr.mxu0 0.0
      %3543 = vmatpush2.msra.mxu0 0.0
      %3544 = vmatprep.subr.mxu0 0.0
      %3545 = vmatpush2.msra.mxu0 0.0
      %3546 = vmatprep.subr.mxu0 0.0
      %3547 = vmatpush2.msra.mxu0 0.0
      %3548 = vmatprep.subr.mxu0 0.0
      %3549 = vmatpush2.msra.mxu0 0.0
      %3550 = vmatprep.subr.mxu0 0.0
      %3551 = vmatpush2.msra.mxu0 0.0
      %3552 = vmatprep.mubr.f32.mxu0 0.0
      %3553 = vmatmul.mubr.f32.gmra.mxu0 %v3486
      %v3554 = vpop.f32.mrf.mxu0
      %v3555 = vadd.f32 0.0, %v3554
      %v3556 = vpop.f32.mrf.mxu0
      %3557 = vdwg.mxu0
      %v3559 = vsel %vm571, %v3555, 0
      %3561 = vmatprep.subr.mxu0 0.0
      %3562 = vmatpush1.msra.mxu0 0.0
      %3563 = vmatprep.subr.mxu0 0.0
      %3564 = vmatpush1.msra.mxu0 0.0
      %3565 = vmatprep.subr.mxu0 0.0
      %3566 = vmatpush1.msra.mxu0 0.0
      %3567 = vmatprep.subr.mxu0 0.0
      %3568 = vmatpush1.msra.mxu0 0.0
      %3569 = vmatprep.subr.mxu0 0.0
      %3570 = vmatpush1.msra.mxu0 0.0
      %3571 = vmatprep.subr.mxu0 0.0
      %3572 = vmatpush1.msra.mxu0 0.0
      %3573 = vmatprep.subr.mxu0 0.0
      %3574 = vmatpush1.msra.mxu0 0.0
      %3575 = vmatprep.subr.mxu0 0.0
      %3576 = vmatpush1.msra.mxu0 0.0
      %3577 = vmatprep.subr.mxu0 0.0
      %3578 = vmatpush1.msra.mxu0 0.0
      %3579 = vmatprep.subr.mxu0 0.0
      %3580 = vmatpush1.msra.mxu0 0.0
      %3581 = vmatprep.subr.mxu0 0.0
      %3582 = vmatpush1.msra.mxu0 0.0
      %3583 = vmatprep.subr.mxu0 0.0
      %3584 = vmatpush1.msra.mxu0 0.0
      %3585 = vmatprep.subr.mxu0 0.0
      %3586 = vmatpush1.msra.mxu0 0.0
      %3587 = vmatprep.subr.mxu0 0.0
      %3588 = vmatpush1.msra.mxu0 0.0
      %3589 = vmatprep.subr.mxu0 0.0
      %3590 = vmatpush1.msra.mxu0 0.0
      %3591 = vmatprep.subr.mxu0 0.0
      %3592 = vmatpush1.msra.mxu0 %v3173
      %3593 = vmatprep.subr.mxu0 0.0
      %3594 = vmatpush2.msra.mxu0 0.0
      %3595 = vmatprep.subr.mxu0 0.0
      %3596 = vmatpush2.msra.mxu0 0.0
      %3597 = vmatprep.subr.mxu0 0.0
      %3598 = vmatpush2.msra.mxu0 0.0
      %3599 = vmatprep.subr.mxu0 0.0
      %3600 = vmatpush2.msra.mxu0 0.0
      %3601 = vmatprep.subr.mxu0 0.0
      %3602 = vmatpush2.msra.mxu0 0.0
      %3603 = vmatprep.subr.mxu0 0.0
      %3604 = vmatpush2.msra.mxu0 0.0
      %3605 = vmatprep.subr.mxu0 0.0
      %3606 = vmatpush2.msra.mxu0 0.0
      %3607 = vmatprep.subr.mxu0 0.0
      %3608 = vmatpush2.msra.mxu0 0.0
      %3609 = vmatprep.subr.mxu0 0.0
      %3610 = vmatpush2.msra.mxu0 0.0
      %3611 = vmatprep.subr.mxu0 0.0
      %3612 = vmatpush2.msra.mxu0 0.0
      %3613 = vmatprep.subr.mxu0 0.0
      %3614 = vmatpush2.msra.mxu0 0.0
      %3615 = vmatprep.subr.mxu0 0.0
      %3616 = vmatpush2.msra.mxu0 0.0
      %3617 = vmatprep.subr.mxu0 0.0
      %3618 = vmatpush2.msra.mxu0 0.0
      %3619 = vmatprep.subr.mxu0 0.0
      %3620 = vmatpush2.msra.mxu0 0.0
      %3621 = vmatprep.subr.mxu0 0.0
      %3622 = vmatpush2.msra.mxu0 0.0
      %3623 = vmatprep.subr.mxu0 0.0
      %3624 = vmatpush2.msra.mxu0 0.0
      %3625 = vmatprep.mubr.f32.mxu0 0.0
      %3626 = vmatmul.mubr.f32.gmra.mxu0 %v3559
      %v3627 = vpop.f32.mrf.mxu0
      %v3628 = vadd.f32 0.0, %v3627
      %v3629 = vpop.f32.mrf.mxu0
      %3630 = vdwg.mxu0
      %v3631 = vadd.f32 %v3159, %v3628
      %s3632 = sadd.s32 24, 128
      %s3633 = scalar_lea.vmem %s2, %s3632
      %v3634 = vld [vmem:[%s3633] sm:$0xff]
      %s3635 = sadd.s32 24, 160
      %s3636 = scalar_lea.vmem %s2, %s3635
      %v3637 = vld [vmem:[%s3636] sm:$0xff]
      %s3638 = sadd.s32 24, 192
      %s3639 = scalar_lea.vmem %s2, %s3638
      %v3640 = vld [vmem:[%s3639] sm:$0xff]
      %s3641 = sadd.s32 24, 224
      %s3642 = scalar_lea.vmem %s2, %s3641
      %v3643 = vld [vmem:[%s3642] sm:$0xff]
      %v3644 = vld [vmem:[%s3 + $0x7] sm:$0x1]
      %v3645 = vlaneseq
      %v3646 = vshrl.u32 %v3645, 7
      %v3647 = vsub.s32 0, %v3646
      %v3648 = vrot.slane %v3644, %v3647
      %v3650 = vsel %vm348, %v3634, 0
      %3652 = vmatprep.subr.mxu0 0.0
      %3653 = vmatpush1.xpose.msra.mxu0 0.0
      %3654 = vmatprep.subr.mxu0 0.0
      %3655 = vmatpush1.xpose.msra.mxu0 0.0
      %3656 = vmatprep.subr.mxu0 0.0
      %3657 = vmatpush1.xpose.msra.mxu0 0.0
      %3658 = vmatprep.subr.mxu0 0.0
      %3659 = vmatpush1.xpose.msra.mxu0 0.0
      %3660 = vmatprep.subr.mxu0 0.0
      %3661 = vmatpush1.xpose.msra.mxu0 0.0
      %3662 = vmatprep.subr.mxu0 0.0
      %3663 = vmatpush1.xpose.msra.mxu0 0.0
      %3664 = vmatprep.subr.mxu0 0.0
      %3665 = vmatpush1.xpose.msra.mxu0 0.0
      %3666 = vmatprep.subr.mxu0 0.0
      %3667 = vmatpush1.xpose.msra.mxu0 0.0
      %3668 = vmatprep.subr.mxu0 0.0
      %3669 = vmatpush1.xpose.msra.mxu0 0.0
      %3670 = vmatprep.subr.mxu0 0.0
      %3671 = vmatpush1.xpose.msra.mxu0 0.0
      %3672 = vmatprep.subr.mxu0 0.0
      %3673 = vmatpush1.xpose.msra.mxu0 0.0
      %3674 = vmatprep.subr.mxu0 0.0
      %3675 = vmatpush1.xpose.msra.mxu0 0.0
      %3676 = vmatprep.subr.mxu0 0.0
      %3677 = vmatpush1.xpose.msra.mxu0 0.0
      %3678 = vmatprep.subr.mxu0 0.0
      %3679 = vmatpush1.xpose.msra.mxu0 0.0
      %3680 = vmatprep.subr.mxu0 0.0
      %3681 = vmatpush1.xpose.msra.mxu0 0.0
      %3682 = vmatprep.subr.mxu0 0.0
      %3683 = vmatpush1.xpose.msra.mxu0 %v3650
      %3684 = vmatprep.subr.mxu0 0.0
      %3685 = vmatpush2.xpose.msra.mxu0 0.0
      %3686 = vmatprep.subr.mxu0 0.0
      %3687 = vmatpush2.xpose.msra.mxu0 0.0
      %3688 = vmatprep.subr.mxu0 0.0
      %3689 = vmatpush2.xpose.msra.mxu0 0.0
      %3690 = vmatprep.subr.mxu0 0.0
      %3691 = vmatpush2.xpose.msra.mxu0 0.0
      %3692 = vmatprep.subr.mxu0 0.0
      %3693 = vmatpush2.xpose.msra.mxu0 0.0
      %3694 = vmatprep.subr.mxu0 0.0
      %3695 = vmatpush2.xpose.msra.mxu0 0.0
      %3696 = vmatprep.subr.mxu0 0.0
      %3697 = vmatpush2.xpose.msra.mxu0 0.0
      %3698 = vmatprep.subr.mxu0 0.0
      %3699 = vmatpush2.xpose.msra.mxu0 0.0
      %3700 = vmatprep.subr.mxu0 0.0
      %3701 = vmatpush2.xpose.msra.mxu0 0.0
      %3702 = vmatprep.subr.mxu0 0.0
      %3703 = vmatpush2.xpose.msra.mxu0 0.0
      %3704 = vmatprep.subr.mxu0 0.0
      %3705 = vmatpush2.xpose.msra.mxu0 0.0
      %3706 = vmatprep.subr.mxu0 0.0
      %3707 = vmatpush2.xpose.msra.mxu0 0.0
      %3708 = vmatprep.subr.mxu0 0.0
      %3709 = vmatpush2.xpose.msra.mxu0 0.0
      %3710 = vmatprep.subr.mxu0 0.0
      %3711 = vmatpush2.xpose.msra.mxu0 0.0
      %3712 = vmatprep.subr.mxu0 0.0
      %3713 = vmatpush2.xpose.msra.mxu0 0.0
      %3714 = vmatprep.subr.mxu0 0.0
      %3715 = vmatpush2.xpose.msra.mxu0 0.0
      %3716 = vmatprep.mubr.f32.mxu0 0.0
      %3717 = vmatmul.mubr.f32.gmra.mxu0 %v2236
      %v3718 = vpop.f32.mrf.mxu0
      %v3719 = vadd.f32 %v3648, %v3718
      %v3720 = vpop.f32.mrf.mxu0
      %3721 = vdwg.mxu0
      %v3723 = vsel %vm348, %v3637, 0
      %3725 = vmatprep.subr.mxu0 0.0
      %3726 = vmatpush1.xpose.msra.mxu0 0.0
      %3727 = vmatprep.subr.mxu0 0.0
      %3728 = vmatpush1.xpose.msra.mxu0 0.0
      %3729 = vmatprep.subr.mxu0 0.0
      %3730 = vmatpush1.xpose.msra.mxu0 0.0
      %3731 = vmatprep.subr.mxu0 0.0
      %3732 = vmatpush1.xpose.msra.mxu0 0.0
      %3733 = vmatprep.subr.mxu0 0.0
      %3734 = vmatpush1.xpose.msra.mxu0 0.0
      %3735 = vmatprep.subr.mxu0 0.0
      %3736 = vmatpush1.xpose.msra.mxu0 0.0
      %3737 = vmatprep.subr.mxu0 0.0
      %3738 = vmatpush1.xpose.msra.mxu0 0.0
      %3739 = vmatprep.subr.mxu0 0.0
      %3740 = vmatpush1.xpose.msra.mxu0 0.0
      %3741 = vmatprep.subr.mxu0 0.0
      %3742 = vmatpush1.xpose.msra.mxu0 0.0
      %3743 = vmatprep.subr.mxu0 0.0
      %3744 = vmatpush1.xpose.msra.mxu0 0.0
      %3745 = vmatprep.subr.mxu0 0.0
      %3746 = vmatpush1.xpose.msra.mxu0 0.0
      %3747 = vmatprep.subr.mxu0 0.0
      %3748 = vmatpush1.xpose.msra.mxu0 0.0
      %3749 = vmatprep.subr.mxu0 0.0
      %3750 = vmatpush1.xpose.msra.mxu0 0.0
      %3751 = vmatprep.subr.mxu0 0.0
      %3752 = vmatpush1.xpose.msra.mxu0 0.0
      %3753 = vmatprep.subr.mxu0 0.0
      %3754 = vmatpush1.xpose.msra.mxu0 0.0
      %3755 = vmatprep.subr.mxu0 0.0
      %3756 = vmatpush1.xpose.msra.mxu0 %v3723
      %3757 = vmatprep.subr.mxu0 0.0
      %3758 = vmatpush2.xpose.msra.mxu0 0.0
      %3759 = vmatprep.subr.mxu0 0.0
      %3760 = vmatpush2.xpose.msra.mxu0 0.0
      %3761 = vmatprep.subr.mxu0 0.0
      %3762 = vmatpush2.xpose.msra.mxu0 0.0
      %3763 = vmatprep.subr.mxu0 0.0
      %3764 = vmatpush2.xpose.msra.mxu0 0.0
      %3765 = vmatprep.subr.mxu0 0.0
      %3766 = vmatpush2.xpose.msra.mxu0 0.0
      %3767 = vmatprep.subr.mxu0 0.0
      %3768 = vmatpush2.xpose.msra.mxu0 0.0
      %3769 = vmatprep.subr.mxu0 0.0
      %3770 = vmatpush2.xpose.msra.mxu0 0.0
      %3771 = vmatprep.subr.mxu0 0.0
      %3772 = vmatpush2.xpose.msra.mxu0 0.0
      %3773 = vmatprep.subr.mxu0 0.0
      %3774 = vmatpush2.xpose.msra.mxu0 0.0
      %3775 = vmatprep.subr.mxu0 0.0
      %3776 = vmatpush2.xpose.msra.mxu0 0.0
      %3777 = vmatprep.subr.mxu0 0.0
      %3778 = vmatpush2.xpose.msra.mxu0 0.0
      %3779 = vmatprep.subr.mxu0 0.0
      %3780 = vmatpush2.xpose.msra.mxu0 0.0
      %3781 = vmatprep.subr.mxu0 0.0
      %3782 = vmatpush2.xpose.msra.mxu0 0.0
      %3783 = vmatprep.subr.mxu0 0.0
      %3784 = vmatpush2.xpose.msra.mxu0 0.0
      %3785 = vmatprep.subr.mxu0 0.0
      %3786 = vmatpush2.xpose.msra.mxu0 0.0
      %3787 = vmatprep.subr.mxu0 0.0
      %3788 = vmatpush2.xpose.msra.mxu0 0.0
      %3789 = vmatprep.mubr.f32.mxu0 0.0
      %3790 = vmatmul.mubr.f32.gmra.mxu0 %v2312
      %v3791 = vpop.f32.mrf.mxu0
      %v3792 = vadd.f32 0.0, %v3791
      %v3793 = vpop.f32.mrf.mxu0
      %3794 = vdwg.mxu0
      %v3796 = vsel %vm348, %v3640, 0
      %3798 = vmatprep.subr.mxu0 0.0
      %3799 = vmatpush1.xpose.msra.mxu0 0.0
      %3800 = vmatprep.subr.mxu0 0.0
      %3801 = vmatpush1.xpose.msra.mxu0 0.0
      %3802 = vmatprep.subr.mxu0 0.0
      %3803 = vmatpush1.xpose.msra.mxu0 0.0
      %3804 = vmatprep.subr.mxu0 0.0
      %3805 = vmatpush1.xpose.msra.mxu0 0.0
      %3806 = vmatprep.subr.mxu0 0.0
      %3807 = vmatpush1.xpose.msra.mxu0 0.0
      %3808 = vmatprep.subr.mxu0 0.0
      %3809 = vmatpush1.xpose.msra.mxu0 0.0
      %3810 = vmatprep.subr.mxu0 0.0
      %3811 = vmatpush1.xpose.msra.mxu0 0.0
      %3812 = vmatprep.subr.mxu0 0.0
      %3813 = vmatpush1.xpose.msra.mxu0 0.0
      %3814 = vmatprep.subr.mxu0 0.0
      %3815 = vmatpush1.xpose.msra.mxu0 0.0
      %3816 = vmatprep.subr.mxu0 0.0
      %3817 = vmatpush1.xpose.msra.mxu0 0.0
      %3818 = vmatprep.subr.mxu0 0.0
      %3819 = vmatpush1.xpose.msra.mxu0 0.0
      %3820 = vmatprep.subr.mxu0 0.0
      %3821 = vmatpush1.xpose.msra.mxu0 0.0
      %3822 = vmatprep.subr.mxu0 0.0
      %3823 = vmatpush1.xpose.msra.mxu0 0.0
      %3824 = vmatprep.subr.mxu0 0.0
      %3825 = vmatpush1.xpose.msra.mxu0 0.0
      %3826 = vmatprep.subr.mxu0 0.0
      %3827 = vmatpush1.xpose.msra.mxu0 0.0
      %3828 = vmatprep.subr.mxu0 0.0
      %3829 = vmatpush1.xpose.msra.mxu0 %v3796
      %3830 = vmatprep.subr.mxu0 0.0
      %3831 = vmatpush2.xpose.msra.mxu0 0.0
      %3832 = vmatprep.subr.mxu0 0.0
      %3833 = vmatpush2.xpose.msra.mxu0 0.0
      %3834 = vmatprep.subr.mxu0 0.0
      %3835 = vmatpush2.xpose.msra.mxu0 0.0
      %3836 = vmatprep.subr.mxu0 0.0
      %3837 = vmatpush2.xpose.msra.mxu0 0.0
      %3838 = vmatprep.subr.mxu0 0.0
      %3839 = vmatpush2.xpose.msra.mxu0 0.0
      %3840 = vmatprep.subr.mxu0 0.0
      %3841 = vmatpush2.xpose.msra.mxu0 0.0
      %3842 = vmatprep.subr.mxu0 0.0
      %3843 = vmatpush2.xpose.msra.mxu0 0.0
      %3844 = vmatprep.subr.mxu0 0.0
      %3845 = vmatpush2.xpose.msra.mxu0 0.0
      %3846 = vmatprep.subr.mxu0 0.0
      %3847 = vmatpush2.xpose.msra.mxu0 0.0
      %3848 = vmatprep.subr.mxu0 0.0
      %3849 = vmatpush2.xpose.msra.mxu0 0.0
      %3850 = vmatprep.subr.mxu0 0.0
      %3851 = vmatpush2.xpose.msra.mxu0 0.0
      %3852 = vmatprep.subr.mxu0 0.0
      %3853 = vmatpush2.xpose.msra.mxu0 0.0
      %3854 = vmatprep.subr.mxu0 0.0
      %3855 = vmatpush2.xpose.msra.mxu0 0.0
      %3856 = vmatprep.subr.mxu0 0.0
      %3857 = vmatpush2.xpose.msra.mxu0 0.0
      %3858 = vmatprep.subr.mxu0 0.0
      %3859 = vmatpush2.xpose.msra.mxu0 0.0
      %3860 = vmatprep.subr.mxu0 0.0
      %3861 = vmatpush2.xpose.msra.mxu0 0.0
      %3862 = vmatprep.mubr.f32.mxu0 0.0
      %3863 = vmatmul.mubr.f32.gmra.mxu0 %v2312
      %v3864 = vpop.f32.mrf.mxu0
      %v3865 = vadd.f32 0.0, %v3864
      %v3866 = vpop.f32.mrf.mxu0
      %3867 = vdwg.mxu0
      %v3869 = vsel %vm571, %v3719, 0
      %v3872 = vsel %vm571, %v3792, 0
      %3874 = vmatprep.subr.mxu0 0.0
      %3875 = vmatpush1.xpose.msra.mxu0 0.0
      %3876 = vmatprep.subr.mxu0 0.0
      %3877 = vmatpush1.xpose.msra.mxu0 0.0
      %3878 = vmatprep.subr.mxu0 0.0
      %3879 = vmatpush1.xpose.msra.mxu0 0.0
      %3880 = vmatprep.subr.mxu0 0.0
      %3881 = vmatpush1.xpose.msra.mxu0 0.0
      %3882 = vmatprep.subr.mxu0 0.0
      %3883 = vmatpush1.xpose.msra.mxu0 0.0
      %3884 = vmatprep.subr.mxu0 0.0
      %3885 = vmatpush1.xpose.msra.mxu0 0.0
      %3886 = vmatprep.subr.mxu0 0.0
      %3887 = vmatpush1.xpose.msra.mxu0 0.0
      %3888 = vmatprep.subr.mxu0 0.0
      %3889 = vmatpush1.xpose.msra.mxu0 0.0
      %3890 = vmatprep.subr.mxu0 0.0
      %3891 = vmatpush1.xpose.msra.mxu0 0.0
      %3892 = vmatprep.subr.mxu0 0.0
      %3893 = vmatpush1.xpose.msra.mxu0 0.0
      %3894 = vmatprep.subr.mxu0 0.0
      %3895 = vmatpush1.xpose.msra.mxu0 0.0
      %3896 = vmatprep.subr.mxu0 0.0
      %3897 = vmatpush1.xpose.msra.mxu0 0.0
      %3898 = vmatprep.subr.mxu0 0.0
      %3899 = vmatpush1.xpose.msra.mxu0 0.0
      %3900 = vmatprep.subr.mxu0 0.0
      %3901 = vmatpush1.xpose.msra.mxu0 0.0
      %3902 = vmatprep.subr.mxu0 0.0
      %3903 = vmatpush1.xpose.msra.mxu0 0.0
      %3904 = vmatprep.subr.mxu0 0.0
      %3905 = vmatpush1.xpose.msra.mxu0 %v3872
      %3906 = vmatprep.subr.mxu0 0.0
      %3907 = vmatpush2.xpose.msra.mxu0 0.0
      %3908 = vmatprep.subr.mxu0 0.0
      %3909 = vmatpush2.xpose.msra.mxu0 0.0
      %3910 = vmatprep.subr.mxu0 0.0
      %3911 = vmatpush2.xpose.msra.mxu0 0.0
      %3912 = vmatprep.subr.mxu0 0.0
      %3913 = vmatpush2.xpose.msra.mxu0 0.0
      %3914 = vmatprep.subr.mxu0 0.0
      %3915 = vmatpush2.xpose.msra.mxu0 0.0
      %3916 = vmatprep.subr.mxu0 0.0
      %3917 = vmatpush2.xpose.msra.mxu0 0.0
      %3918 = vmatprep.subr.mxu0 0.0
      %3919 = vmatpush2.xpose.msra.mxu0 0.0
      %3920 = vmatprep.subr.mxu0 0.0
      %3921 = vmatpush2.xpose.msra.mxu0 0.0
      %3922 = vmatprep.subr.mxu0 0.0
      %3923 = vmatpush2.xpose.msra.mxu0 0.0
      %3924 = vmatprep.subr.mxu0 0.0
      %3925 = vmatpush2.xpose.msra.mxu0 0.0
      %3926 = vmatprep.subr.mxu0 0.0
      %3927 = vmatpush2.xpose.msra.mxu0 0.0
      %3928 = vmatprep.subr.mxu0 0.0
      %3929 = vmatpush2.xpose.msra.mxu0 0.0
      %3930 = vmatprep.subr.mxu0 0.0
      %3931 = vmatpush2.xpose.msra.mxu0 0.0
      %3932 = vmatprep.subr.mxu0 0.0
      %3933 = vmatpush2.xpose.msra.mxu0 0.0
      %3934 = vmatprep.subr.mxu0 0.0
      %3935 = vmatpush2.xpose.msra.mxu0 0.0
      %3936 = vmatprep.subr.mxu0 0.0
      %3937 = vmatpush2.xpose.msra.mxu0 0.0
      %3938 = vmatprep.mubr.f32.mxu0 0.0
      %3939 = vmatmul.mubr.f32.gmra.mxu0 %v3869
      %v3940 = vpop.f32.mrf.mxu0
      %v3941 = vadd.f32 0.0, %v3940
      %v3942 = vpop.f32.mrf.mxu0
      %3943 = vdwg.mxu0
      %v3944 = vsel %vm571, %v3941, -inf
      %3945 = vmax.xlane.f32.xlu0 %v3944
      %v3946 = vpop.xlane.xlu0 %3945
      %v3947 = vsub.f32 %v3941, %v3946
      %v3948 = vmul.f32 %v3947, 1.442695
      %v3949 = vpow.pop %v3948
      %v3950 = vsel %vm571, %v3949, 0.0
      %3951 = vadd.xlane.f32.xlu0 %v3950
      %v3952 = vpop.xlane.xlu0 %3951
      %v3953 = vrcp.pop %v3952
      %v3954 = vmul.f32 %v3949, %v3953
      %v3956 = vsel %vm571, %v3954, 0
      %3958 = vmatprep.subr.mxu0 0.0
      %3959 = vmatpush1.msra.mxu0 0.0
      %3960 = vmatprep.subr.mxu0 0.0
      %3961 = vmatpush1.msra.mxu0 0.0
      %3962 = vmatprep.subr.mxu0 0.0
      %3963 = vmatpush1.msra.mxu0 0.0
      %3964 = vmatprep.subr.mxu0 0.0
      %3965 = vmatpush1.msra.mxu0 0.0
      %3966 = vmatprep.subr.mxu0 0.0
      %3967 = vmatpush1.msra.mxu0 0.0
      %3968 = vmatprep.subr.mxu0 0.0
      %3969 = vmatpush1.msra.mxu0 0.0
      %3970 = vmatprep.subr.mxu0 0.0
      %3971 = vmatpush1.msra.mxu0 0.0
      %3972 = vmatprep.subr.mxu0 0.0
      %3973 = vmatpush1.msra.mxu0 0.0
      %3974 = vmatprep.subr.mxu0 0.0
      %3975 = vmatpush1.msra.mxu0 0.0
      %3976 = vmatprep.subr.mxu0 0.0
      %3977 = vmatpush1.msra.mxu0 0.0
      %3978 = vmatprep.subr.mxu0 0.0
      %3979 = vmatpush1.msra.mxu0 0.0
      %3980 = vmatprep.subr.mxu0 0.0
      %3981 = vmatpush1.msra.mxu0 0.0
      %3982 = vmatprep.subr.mxu0 0.0
      %3983 = vmatpush1.msra.mxu0 0.0
      %3984 = vmatprep.subr.mxu0 0.0
      %3985 = vmatpush1.msra.mxu0 0.0
      %3986 = vmatprep.subr.mxu0 0.0
      %3987 = vmatpush1.msra.mxu0 0.0
      %3988 = vmatprep.subr.mxu0 0.0
      %3989 = vmatpush1.msra.mxu0 %v3865
      %3990 = vmatprep.subr.mxu0 0.0
      %3991 = vmatpush2.msra.mxu0 0.0
      %3992 = vmatprep.subr.mxu0 0.0
      %3993 = vmatpush2.msra.mxu0 0.0
      %3994 = vmatprep.subr.mxu0 0.0
      %3995 = vmatpush2.msra.mxu0 0.0
      %3996 = vmatprep.subr.mxu0 0.0
      %3997 = vmatpush2.msra.mxu0 0.0
      %3998 = vmatprep.subr.mxu0 0.0
      %3999 = vmatpush2.msra.mxu0 0.0
      %4000 = vmatprep.subr.mxu0 0.0
      %4001 = vmatpush2.msra.mxu0 0.0
      %4002 = vmatprep.subr.mxu0 0.0
      %4003 = vmatpush2.msra.mxu0 0.0
      %4004 = vmatprep.subr.mxu0 0.0
      %4005 = vmatpush2.msra.mxu0 0.0
      %4006 = vmatprep.subr.mxu0 0.0
      %4007 = vmatpush2.msra.mxu0 0.0
      %4008 = vmatprep.subr.mxu0 0.0
      %4009 = vmatpush2.msra.mxu0 0.0
      %4010 = vmatprep.subr.mxu0 0.0
      %4011 = vmatpush2.msra.mxu0 0.0
      %4012 = vmatprep.subr.mxu0 0.0
      %4013 = vmatpush2.msra.mxu0 0.0
      %4014 = vmatprep.subr.mxu0 0.0
      %4015 = vmatpush2.msra.mxu0 0.0
      %4016 = vmatprep.subr.mxu0 0.0
      %4017 = vmatpush2.msra.mxu0 0.0
      %4018 = vmatprep.subr.mxu0 0.0
      %4019 = vmatpush2.msra.mxu0 0.0
      %4020 = vmatprep.subr.mxu0 0.0
      %4021 = vmatpush2.msra.mxu0 0.0
      %4022 = vmatprep.mubr.f32.mxu0 0.0
      %4023 = vmatmul.mubr.f32.gmra.mxu0 %v3956
      %v4024 = vpop.f32.mrf.mxu0
      %v4025 = vadd.f32 0.0, %v4024
      %v4026 = vpop.f32.mrf.mxu0
      %4027 = vdwg.mxu0
      %v4029 = vsel %vm571, %v4025, 0
      %4031 = vmatprep.subr.mxu0 0.0
      %4032 = vmatpush1.msra.mxu0 0.0
      %4033 = vmatprep.subr.mxu0 0.0
      %4034 = vmatpush1.msra.mxu0 0.0
      %4035 = vmatprep.subr.mxu0 0.0
      %4036 = vmatpush1.msra.mxu0 0.0
      %4037 = vmatprep.subr.mxu0 0.0
      %4038 = vmatpush1.msra.mxu0 0.0
      %4039 = vmatprep.subr.mxu0 0.0
      %4040 = vmatpush1.msra.mxu0 0.0
      %4041 = vmatprep.subr.mxu0 0.0
      %4042 = vmatpush1.msra.mxu0 0.0
      %4043 = vmatprep.subr.mxu0 0.0
      %4044 = vmatpush1.msra.mxu0 0.0
      %4045 = vmatprep.subr.mxu0 0.0
      %4046 = vmatpush1.msra.mxu0 0.0
      %4047 = vmatprep.subr.mxu0 0.0
      %4048 = vmatpush1.msra.mxu0 0.0
      %4049 = vmatprep.subr.mxu0 0.0
      %4050 = vmatpush1.msra.mxu0 0.0
      %4051 = vmatprep.subr.mxu0 0.0
      %4052 = vmatpush1.msra.mxu0 0.0
      %4053 = vmatprep.subr.mxu0 0.0
      %4054 = vmatpush1.msra.mxu0 0.0
      %4055 = vmatprep.subr.mxu0 0.0
      %4056 = vmatpush1.msra.mxu0 0.0
      %4057 = vmatprep.subr.mxu0 0.0
      %4058 = vmatpush1.msra.mxu0 0.0
      %4059 = vmatprep.subr.mxu0 0.0
      %4060 = vmatpush1.msra.mxu0 0.0
      %4061 = vmatprep.subr.mxu0 0.0
      %4062 = vmatpush1.msra.mxu0 %v3643
      %4063 = vmatprep.subr.mxu0 0.0
      %4064 = vmatpush2.msra.mxu0 0.0
      %4065 = vmatprep.subr.mxu0 0.0
      %4066 = vmatpush2.msra.mxu0 0.0
      %4067 = vmatprep.subr.mxu0 0.0
      %4068 = vmatpush2.msra.mxu0 0.0
      %4069 = vmatprep.subr.mxu0 0.0
      %4070 = vmatpush2.msra.mxu0 0.0
      %4071 = vmatprep.subr.mxu0 0.0
      %4072 = vmatpush2.msra.mxu0 0.0
      %4073 = vmatprep.subr.mxu0 0.0
      %4074 = vmatpush2.msra.mxu0 0.0
      %4075 = vmatprep.subr.mxu0 0.0
      %4076 = vmatpush2.msra.mxu0 0.0
      %4077 = vmatprep.subr.mxu0 0.0
      %4078 = vmatpush2.msra.mxu0 0.0
      %4079 = vmatprep.subr.mxu0 0.0
      %4080 = vmatpush2.msra.mxu0 0.0
      %4081 = vmatprep.subr.mxu0 0.0
      %4082 = vmatpush2.msra.mxu0 0.0
      %4083 = vmatprep.subr.mxu0 0.0
      %4084 = vmatpush2.msra.mxu0 0.0
      %4085 = vmatprep.subr.mxu0 0.0
      %4086 = vmatpush2.msra.mxu0 0.0
      %4087 = vmatprep.subr.mxu0 0.0
      %4088 = vmatpush2.msra.mxu0 0.0
      %4089 = vmatprep.subr.mxu0 0.0
      %4090 = vmatpush2.msra.mxu0 0.0
      %4091 = vmatprep.subr.mxu0 0.0
      %4092 = vmatpush2.msra.mxu0 0.0
      %4093 = vmatprep.subr.mxu0 0.0
      %4094 = vmatpush2.msra.mxu0 0.0
      %4095 = vmatprep.mubr.f32.mxu0 0.0
      %4096 = vmatmul.mubr.f32.gmra.mxu0 %v4029
      %v4097 = vpop.f32.mrf.mxu0
      %v4098 = vadd.f32 0.0, %v4097
      %v4099 = vpop.f32.mrf.mxu0
      %4100 = vdwg.mxu0
      %v4101 = vadd.f32 %v3631, %v4098
      %v4102 = vadd.f32 %v2217, %v4101
      %v4103 = vld [vmem:[%s2 + $0x141] sm:$0x1]
      %v4104 = vlaneseq
      %v4105 = vshrl.u32 %v4104, 7
      %v4106 = vsub.s32 0, %v4105
      %v4107 = vrot.slane %v4103, %v4106
      %v4108 = vadd.f32 %v4102, %v4107
      %v4109 = vld [vmem:[%s2 + $0x100] sm:$0xff]
      %v4110 = vld [vmem:[%s2 + $0x108] sm:$0xff]
      %v4111 = vld [vmem:[%s2 + $0x110] sm:$0xff]
      %v4112 = vld [vmem:[%s2 + $0x118] sm:$0xff]
      %v4113 = vld [vmem:[%s2 + $0x142] sm:$0x1]
      %v4114 = vlaneseq
      %v4115 = vshrl.u32 %v4114, 7
      %v4116 = vsub.s32 0, %v4115
      %v4117 = vrot.slane %v4113, %v4116
      %v4119 = vsel %vm348, %v4108, 0
      %v4122 = vsel %vm348, %v4109, 0
      %v4125 = vsel %vm348, %v4110, 0
      %v4128 = vsel %vm348, %v4111, 0
      %v4131 = vsel %vm348, %v4112, 0
      %4133 = vmatprep.subr.mxu0 0.0
      %4134 = vmatpush1.xpose.msra.mxu0 0.0
      %4135 = vmatprep.subr.mxu0 0.0
      %4136 = vmatpush1.xpose.msra.mxu0 0.0
      %4137 = vmatprep.subr.mxu0 0.0
      %4138 = vmatpush1.xpose.msra.mxu0 0.0
      %4139 = vmatprep.subr.mxu0 0.0
      %4140 = vmatpush1.xpose.msra.mxu0 0.0
      %4141 = vmatprep.subr.mxu0 0.0
      %4142 = vmatpush1.xpose.msra.mxu0 0.0
      %4143 = vmatprep.subr.mxu0 0.0
      %4144 = vmatpush1.xpose.msra.mxu0 0.0
      %4145 = vmatprep.subr.mxu0 0.0
      %4146 = vmatpush1.xpose.msra.mxu0 0.0
      %4147 = vmatprep.subr.mxu0 0.0
      %4148 = vmatpush1.xpose.msra.mxu0 0.0
      %4149 = vmatprep.subr.mxu0 0.0
      %4150 = vmatpush1.xpose.msra.mxu0 0.0
      %4151 = vmatprep.subr.mxu0 0.0
      %4152 = vmatpush1.xpose.msra.mxu0 0.0
      %4153 = vmatprep.subr.mxu0 0.0
      %4154 = vmatpush1.xpose.msra.mxu0 0.0
      %4155 = vmatprep.subr.mxu0 0.0
      %4156 = vmatpush1.xpose.msra.mxu0 0.0
      %4157 = vmatprep.subr.mxu0 0.0
      %4158 = vmatpush1.xpose.msra.mxu0 %v4131
      %4159 = vmatprep.subr.mxu0 0.0
      %4160 = vmatpush1.xpose.msra.mxu0 %v4128
      %4161 = vmatprep.subr.mxu0 0.0
      %4162 = vmatpush1.xpose.msra.mxu0 %v4125
      %4163 = vmatprep.subr.mxu0 0.0
      %4164 = vmatpush1.xpose.msra.mxu0 %v4122
      %4165 = vmatprep.subr.mxu0 0.0
      %4166 = vmatpush2.xpose.msra.mxu0 0.0
      %4167 = vmatprep.subr.mxu0 0.0
      %4168 = vmatpush2.xpose.msra.mxu0 0.0
      %4169 = vmatprep.subr.mxu0 0.0
      %4170 = vmatpush2.xpose.msra.mxu0 0.0
      %4171 = vmatprep.subr.mxu0 0.0
      %4172 = vmatpush2.xpose.msra.mxu0 0.0
      %4173 = vmatprep.subr.mxu0 0.0
      %4174 = vmatpush2.xpose.msra.mxu0 0.0
      %4175 = vmatprep.subr.mxu0 0.0
      %4176 = vmatpush2.xpose.msra.mxu0 0.0
      %4177 = vmatprep.subr.mxu0 0.0
      %4178 = vmatpush2.xpose.msra.mxu0 0.0
      %4179 = vmatprep.subr.mxu0 0.0
      %4180 = vmatpush2.xpose.msra.mxu0 0.0
      %4181 = vmatprep.subr.mxu0 0.0
      %4182 = vmatpush2.xpose.msra.mxu0 0.0
      %4183 = vmatprep.subr.mxu0 0.0
      %4184 = vmatpush2.xpose.msra.mxu0 0.0
      %4185 = vmatprep.subr.mxu0 0.0
      %4186 = vmatpush2.xpose.msra.mxu0 0.0
      %4187 = vmatprep.subr.mxu0 0.0
      %4188 = vmatpush2.xpose.msra.mxu0 0.0
      %4189 = vmatprep.subr.mxu0 0.0
      %4190 = vmatpush2.xpose.msra.mxu0 0.0
      %4191 = vmatprep.subr.mxu0 0.0
      %4192 = vmatpush2.xpose.msra.mxu0 0.0
      %4193 = vmatprep.subr.mxu0 0.0
      %4194 = vmatpush2.xpose.msra.mxu0 0.0
      %4195 = vmatprep.subr.mxu0 0.0
      %4196 = vmatpush2.xpose.msra.mxu0 0.0
      %4197 = vmatprep.mubr.f32.mxu0 0.0
      %4198 = vmatmul.mubr.f32.gmra.mxu0 %v4119
      %v4199 = vpop.f32.mrf.mxu0
      %v4200 = vadd.f32 %v4117, %v4199
      %v4201 = vpop.f32.mrf.mxu0
      %4202 = vdwg.mxu0
      %v4203 = vld [vmem:[%s2 + $0x120] sm:$0xff]
      %v4204 = vld [vmem:[%s2 + $0x128] sm:$0xff]
      %v4205 = vld [vmem:[%s2 + $0x130] sm:$0xff]
      %v4206 = vld [vmem:[%s2 + $0x138] sm:$0xff]
      %v4207 = vld [vmem:[%s2 + $0x143] sm:$0x1]
      %v4208 = vlaneseq
      %v4209 = vshrl.u32 %v4208, 7
      %v4210 = vsub.s32 0, %v4209
      %v4211 = vrot.slane %v4207, %v4210
      %v4213 = vsel %vm348, %v4200, 0
      %4215 = vmatprep.subr.mxu0 0.0
      %4216 = vmatpush1.msra.mxu0 0.0
      %4217 = vmatprep.subr.mxu0 0.0
      %4218 = vmatpush1.msra.mxu0 0.0
      %4219 = vmatprep.subr.mxu0 0.0
      %4220 = vmatpush1.msra.mxu0 0.0
      %4221 = vmatprep.subr.mxu0 0.0
      %4222 = vmatpush1.msra.mxu0 0.0
      %4223 = vmatprep.subr.mxu0 0.0
      %4224 = vmatpush1.msra.mxu0 0.0
      %4225 = vmatprep.subr.mxu0 0.0
      %4226 = vmatpush1.msra.mxu0 0.0
      %4227 = vmatprep.subr.mxu0 0.0
      %4228 = vmatpush1.msra.mxu0 0.0
      %4229 = vmatprep.subr.mxu0 0.0
      %4230 = vmatpush1.msra.mxu0 0.0
      %4231 = vmatprep.subr.mxu0 0.0
      %4232 = vmatpush1.msra.mxu0 0.0
      %4233 = vmatprep.subr.mxu0 0.0
      %4234 = vmatpush1.msra.mxu0 0.0
      %4235 = vmatprep.subr.mxu0 0.0
      %4236 = vmatpush1.msra.mxu0 0.0
      %4237 = vmatprep.subr.mxu0 0.0
      %4238 = vmatpush1.msra.mxu0 0.0
      %4239 = vmatprep.subr.mxu0 0.0
      %4240 = vmatpush1.msra.mxu0 %v4206
      %4241 = vmatprep.subr.mxu0 0.0
      %4242 = vmatpush1.msra.mxu0 %v4205
      %4243 = vmatprep.subr.mxu0 0.0
      %4244 = vmatpush1.msra.mxu0 %v4204
      %4245 = vmatprep.subr.mxu0 0.0
      %4246 = vmatpush1.msra.mxu0 %v4203
      %4247 = vmatprep.subr.mxu0 0.0
      %4248 = vmatpush2.msra.mxu0 0.0
      %4249 = vmatprep.subr.mxu0 0.0
      %4250 = vmatpush2.msra.mxu0 0.0
      %4251 = vmatprep.subr.mxu0 0.0
      %4252 = vmatpush2.msra.mxu0 0.0
      %4253 = vmatprep.subr.mxu0 0.0
      %4254 = vmatpush2.msra.mxu0 0.0
      %4255 = vmatprep.subr.mxu0 0.0
      %4256 = vmatpush2.msra.mxu0 0.0
      %4257 = vmatprep.subr.mxu0 0.0
      %4258 = vmatpush2.msra.mxu0 0.0
      %4259 = vmatprep.subr.mxu0 0.0
      %4260 = vmatpush2.msra.mxu0 0.0
      %4261 = vmatprep.subr.mxu0 0.0
      %4262 = vmatpush2.msra.mxu0 0.0
      %4263 = vmatprep.subr.mxu0 0.0
      %4264 = vmatpush2.msra.mxu0 0.0
      %4265 = vmatprep.subr.mxu0 0.0
      %4266 = vmatpush2.msra.mxu0 0.0
      %4267 = vmatprep.subr.mxu0 0.0
      %4268 = vmatpush2.msra.mxu0 0.0
      %4269 = vmatprep.subr.mxu0 0.0
      %4270 = vmatpush2.msra.mxu0 0.0
      %4271 = vmatprep.subr.mxu0 0.0
      %4272 = vmatpush2.msra.mxu0 0.0
      %4273 = vmatprep.subr.mxu0 0.0
      %4274 = vmatpush2.msra.mxu0 0.0
      %4275 = vmatprep.subr.mxu0 0.0
      %4276 = vmatpush2.msra.mxu0 0.0
      %4277 = vmatprep.subr.mxu0 0.0
      %4278 = vmatpush2.msra.mxu0 0.0
      %4279 = vmatprep.mubr.f32.mxu0 0.0
      %4280 = vmatmul.mubr.f32.gmra.mxu0 %v4213
      %v4281 = vpop.f32.mrf.mxu0
      %v4282 = vadd.f32 %v4211, %v4281
      %v4283 = vpop.f32.mrf.mxu0
      %4284 = vdwg.mxu0
      %v4285 = vadd.f32 %v4108, %v4282
      %4286 = vst.msk [vmem:[%s175] sm:$0xff] %vm348, %v4285
      %p4287 = scmp.lt.s32.totalorder %s15, 1
      %s4288 = scalar_select %p4287, %s15, 1
      %s4289 = smul.addr %s4288, 8
      %s4290 = scalar_lea.vmem %s4, %s4289
      // Predicated region
      $region37: #{transformer_decoder_layer.1} parent=35 // pred_check
        %p4291 = pneg %p117
      $region38: #{transformer_decoder_layer.1} parent=35 // pred_check_branch
        %4293 = sbr.rel (%p4291) target = $region40
      $region39: #{transformer_decoder_layer.1} parent=35 // pred_region
        _
      $region40: #{transformer_decoder_layer.1} parent=35 // pred_fallthru
        _
    $region36: #{transformer_decoder_layer.1} parent=5 // pred_fallthru
      _
    %p4294 = scmp.le.s32.totalorder 2, %s10
    // Predicated region
    $region41: #{transformer_decoder_layer.1} parent=5 // pred_check
      %p4295 = pneg %p4294
    $region42: #{transformer_decoder_layer.1} parent=5 // pred_check_branch
      %4297 = sbr.rel (%p4295) target = $region44
    $region43: #{transformer_decoder_layer.1} parent=5 // pred_region
      %s4298 = ssub.s32 %s10, 2
      // Predicated region
      $region45: #{transformer_decoder_layer.1} parent=43 // pred_check
        %p4299 = pneg %p123
      $region46: #{transformer_decoder_layer.1} parent=43 // pred_check_branch
        %4301 = sbr.rel (%p4299) target = $region48
      $region47: #{transformer_decoder_layer.1} parent=43 // pred_region
        %p4302 = scmp.lt.s32.totalorder %s16, 1
        %s4303 = scalar_select %p4302, %s16, 1
        %s4304 = smul.addr %s4303, 8
        %s4305 = scalar_lea.vmem %s4, %s4304
      $region48: #{transformer_decoder_layer.1} parent=43 // pred_fallthru
        _
    $region44: #{transformer_decoder_layer.1} parent=5 // pred_fallthru
      _
  $region6: #{transformer_decoder_layer.1} parent=0 // loop_footer
    %s14 = sadd.s32 1, %s10
  $region7: #{transformer_decoder_layer.1} parent=0 // loop_footer_branch
    %9 = sbr.rel target = $region3
  $region8: #{transformer_decoder_layer.1} parent=0 // loop_exit
    _

</llo_original>
